<compile_context>
chip_gen: v5e
topology: v5e:2x2
jax: 0.10.0
libtpu: 0.0.40
codegen_flags: <defaults>
</compile_context>

<pallas_src>
import jax
import jax.numpy as jnp
from jax.experimental import pallas as pl
from jax.experimental.pallas import tpu as pltpu

# ----------------------------- configuration --------------------------------
BATCH = 2
IN_CH = 3          # RGB (CLIP visual input)
IMG = 16           # image spatial size
PATCH = 8          # conv1 kernel == stride (non-overlapping patches)
WIDTH = 32         # args.embd_dim == ViT width
PROMPT_LEN = 4     # args.prompt_length
HEADS = 4
LAYERS = 2
OUT_DIM = 16       # image_encoder.output_dim (feature_dim)
NUM_CLASSES = 5
EPS = 1e-5         # LayerNorm eps (PyTorch default)

HEAD_DIM = WIDTH // HEADS
NLN = 2 + 2 * LAYERS       # ln_pre, (ln1, ln2) per layer, ln_post
PAD_F = 128                # lane-dense padded feature width (real OUT_DIM cols in front)
PAD_N = 128                # lane-dense padded class count  (real NUM_CLASSES cols in front)

F32 = jnp.float32


def _spec(shape):
    """Full-array BlockSpec for a size-1 grid."""
    nd = len(shape)
    return pl.BlockSpec(shape, lambda i, _nd=nd: (0,) * _nd)


# NOTE(v7x): with larger batch / real CLIP widths, expose a "parallel" batch grid
# axis and tile w_fc1/w_fc2 (bf16 weights) to respect 64 MiB VMEM; at this size a
# single "arbitrary" grid step is optimal.
_CPARAMS = pltpu.CompilerParams(dimension_semantics=("arbitrary",))


# ------------------------------- fused kernel --------------------------------
def _vit_prompt_kernel(scale_ref, a_ref, wemb_ref, lng_ref, lnb_ref,
                       wqkv_ref, bqkv_ref, wo_ref, bo_ref,
                       w1_ref, b1_ref, w2_ref, b2_ref,
                       mask_ref, sel_ref, proj_ref, zsw_ref,
                       logits_ref, feat_ref):
    """Whole ViT-prompt forward on a flat [B*S, WIDTH] activation (all 2-D ops)."""

    def layer_norm(v, idx):
        m = jnp.mean(v, axis=-1, keepdims=True)
        var = jnp.mean((v - m) ** 2, axis=-1, keepdims=True)
        return (v - m) * jax.lax.rsqrt(var + EPS) * lng_ref[idx] + lnb_ref[idx]

    # --- patch embedding + cls/prompt/pos token assembly in ONE matmul ---
    # a = [patch_pixels | one-hot(position)], wemb = [wconv ; base_tokens]
    x = jnp.dot(a_ref[...], wemb_ref[...], preferred_element_type=F32)   # [B*S, W]
    x = layer_norm(x, 0)                                                  # ln_pre

    scale = 1.0 / (HEAD_DIM ** 0.5)
    mask = mask_ref[...]                                                  # block-diag (per image)

    for l in range(LAYERS):
        # ---- multi-head self-attention (pre-LN), per-head weights pre-split ----
        h = layer_norm(x, 1 + 2 * l)
        attn = bo_ref[l]                                                  # [1, W], broadcasts
        for hd in range(HEADS):
            q = jnp.dot(h, wqkv_ref[l, hd],
                        preferred_element_type=F32) + bqkv_ref[l, hd]
            k = jnp.dot(h, wqkv_ref[l, HEADS + hd],
                        preferred_element_type=F32) + bqkv_ref[l, HEADS + hd]
            v = jnp.dot(h, wqkv_ref[l, 2 * HEADS + hd],
                        preferred_element_type=F32) + bqkv_ref[l, 2 * HEADS + hd]
            s = jnp.einsum('qd,kd->qk', q, k,
                           preferred_element_type=F32) * scale + mask     # [B*S, B*S]
            s = s - jnp.max(s, axis=-1, keepdims=True)
            p = jnp.exp(s)
            p = p * pl.reciprocal(jnp.sum(p, axis=-1, keepdims=True), approx=True)
            ctx = jnp.dot(p, v, preferred_element_type=F32)               # [B*S, Dh]
            attn = attn + jnp.dot(ctx, wo_ref[l, hd],
                                  preferred_element_type=F32)             # [B*S, W]
        x = x + attn

        # ---- MLP (QuickGELU, as in CLIP) ----
        h = layer_norm(x, 2 + 2 * l)
        h1 = jnp.dot(h, w1_ref[l], preferred_element_type=F32) + b1_ref[l]
        h1 = h1 * (1.0 / (1.0 + jnp.exp(-1.702 * h1)))
        x = x + jnp.dot(h1, w2_ref[l], preferred_element_type=F32) + b2_ref[l]

    # ---- head: select cls rows, ln_post, proj, L2-normalize, classify ----
    cls = jnp.dot(sel_ref[...], x, preferred_element_type=F32)            # [B, W]
    cls = layer_norm(cls, NLN - 1)
    feat = jnp.dot(cls, proj_ref[...], preferred_element_type=F32)        # [B, PAD_F]
    # no eps: parity with PyTorch x / x.norm(dim=-1, keepdim=True)
    inv_norm = jax.lax.rsqrt(jnp.sum(feat * feat, axis=-1, keepdims=True))
    featn = feat * inv_norm
    feat_ref[...] = featn
    # exp(logit_scale) applied from SMEM scalar (padded zsw columns stay zero)
    logits_ref[...] = scale_ref[0] * jnp.dot(featn, zsw_ref[...],
                                             preferred_element_type=F32)


# ------------------------------ forward pass ---------------------------------
def vit_prompt_forward(image, params, prompt=True, return_features=False):
    # `image` is NCHW [B, C, H, W] float32 (matching PyTorch conv1 input).
    B, C, Himg, Wimg = image.shape
    gh, gw = Himg // PATCH, Wimg // PATCH
    P = gh * gw
    n_pre = 1 + (PROMPT_LEN if prompt else 0)
    S = n_pre + P
    N = B * S
    CKK = C * PATCH * PATCH

    # --- wrapper glue (plain JAX): im2col + augmented embedding operands ---
    patches = image.reshape(B, C, gh, PATCH, gw, PATCH)
    patches = patches.transpose(0, 2, 4, 1, 3, 5).reshape(B, P, CKK)
    patch_rows = jnp.concatenate([jnp.zeros((B, n_pre, CKK), F32), patches], axis=1)
    onehot = jnp.broadcast_to(jnp.eye(S, dtype=F32)[None], (B, S, S))
    a_aug = jnp.concatenate([patch_rows, onehot], axis=-1).reshape(N, CKK + S)

    # base tokens (selected by the one-hot columns): cls+pos[0], prompt rows, pos[1:]
    # TODO(synk): exact prompt-insertion point in the modified CLIP encoder is not
    # shown; assume VPT-shallow right after the class token, no pos-emb on prompts.
    cls_tok = (params['class_emb'] + params['pos_emb'][0])[None, :]
    pieces = [cls_tok]
    if prompt:
        pieces.append(params['prompt_w'])
    pieces.append(params['pos_emb'][1:])
    base_tokens = jnp.concatenate(pieces, axis=0)                         # [S, WIDTH]
    w_emb = jnp.concatenate([params['wconv'], base_tokens], axis=0)       # [CKK+S, WIDTH]

    # block-diagonal (per-image) attention bias and cls-row selector
    # (built from constants -> XLA constant-folds them; only a tiny input DMA remains)
    seg = jnp.repeat(jnp.arange(B, dtype=jnp.int32), S)
    mask = jnp.where(seg[:, None] == seg[None, :], 0.0, -1e9).astype(F32)  # [N, N]
    sel = (jnp.arange(N)[None, :] == (jnp.arange(B) * S)[:, None]).astype(F32)  # [B, N]

    # exp(logit_scale): scalar, passed via SMEM and applied in-kernel
    ls = jnp.exp(params['logit_scale']).reshape(1).astype(F32)

    args = [a_aug, w_emb, params['ln_g'], params['ln_b'],
            params['w_qkv'], params['b_qkv'], params['w_out'], params['b_out'],
            params['w_fc1'], params['b_fc1'], params['w_fc2'], params['b_fc2'],
            mask, sel, params['proj_pad'], params['zsw_pad']]

    in_specs = ([pl.BlockSpec(memory_space=pltpu.MemorySpace.SMEM)]
                + [_spec(a.shape) for a in args])

    logits_pad, feat_pad = pl.pallas_call(
        _vit_prompt_kernel,
        grid=(1,),
        in_specs=in_specs,
        out_specs=(_spec((B, PAD_N)), _spec((B, PAD_F))),
        out_shape=(jax.ShapeDtypeStruct((B, PAD_N), F32),
                   jax.ShapeDtypeStruct((B, PAD_F), F32)),
        compiler_params=_CPARAMS,
    )(ls, *args)

    logits = logits_pad[:, :NUM_CLASSES]
    if return_features:
        return logits, feat_pad[:, :OUT_DIM]
    return logits


# ------------------------------ parameters -----------------------------------
def init_params(seed=0):
    keys = iter(jax.random.split(jax.random.PRNGKey(seed), 64))

    def nrm(shape, std=0.02):
        return (std * jax.random.normal(next(keys), shape)).astype(F32)

    dh = HEAD_DIM
    conv1_w = nrm((WIDTH, IN_CH, PATCH, PATCH))          # conv1.weight (bias=False)
    params = {
        'wconv':      conv1_w.reshape(WIDTH, IN_CH * PATCH * PATCH).T,  # pre-transposed once
        'class_emb':  nrm((WIDTH,)),
        'pos_emb':    nrm((1 + (IMG // PATCH) ** 2, WIDTH)),
        'prompt_w':   nrm((PROMPT_LEN, WIDTH)),          # nn.Linear(embd_dim, prompt_length).weight
        'logit_scale': jnp.asarray(jnp.log(1.0 / 0.07), F32),           # CLIP init
    }

    ln_g = [jnp.ones((1, WIDTH), F32)]                   # ln_pre
    ln_b = [jnp.zeros((1, WIDTH), F32)]
    w_qkv, b_qkv, w_out, b_out = [], [], [], []
    w_fc1, b_fc1, w_fc2, b_fc2 = [], [], [], []
    for _ in range(LAYERS):
        ln_g += [jnp.ones((1, WIDTH), F32), jnp.ones((1, WIDTH), F32)]   # ln1, ln2
        ln_b += [jnp.zeros((1, WIDTH), F32), jnp.zeros((1, WIDTH), F32)]
        wqkv = nrm((WIDTH, 3 * WIDTH))                   # applied as x @ wqkv
        bqkv = jnp.zeros((3 * WIDTH,), F32)
        # pre-split per head: [3*H, WIDTH, dh], ordered (q heads, k heads, v heads)
        w_qkv.append(jnp.transpose(wqkv.reshape(WIDTH, 3, HEADS, dh),
                                   (1, 2, 0, 3)).reshape(3 * HEADS, WIDTH, dh))
        b_qkv.append(bqkv.reshape(3 * HEADS, 1, dh))
        wo = nrm((WIDTH, WIDTH))
        w_out.append(wo.reshape(HEADS, dh, WIDTH))       # per-head rows of out-proj
        b_out.append(jnp.zeros((1, WIDTH), F32))
        w_fc1.append(nrm((WIDTH, 4 * WIDTH)))
        b_fc1.append(jnp.zeros((1, 4 * WIDTH), F32))
        w_fc2.append(nrm((4 * WIDTH, WIDTH)))
        b_fc2.append(jnp.zeros((1, WIDTH), F32))
    ln_g.append(jnp.ones((1, WIDTH), F32))               # ln_post
    ln_b.append(jnp.zeros((1, WIDTH), F32))

    params.update(
        ln_g=jnp.stack(ln_g), ln_b=jnp.stack(ln_b),          # [NLN, 1, WIDTH]
        w_qkv=jnp.stack(w_qkv), b_qkv=jnp.stack(b_qkv),      # [L, 3H, W, dh] / [L, 3H, 1, dh]
        w_out=jnp.stack(w_out), b_out=jnp.stack(b_out),      # [L, H, dh, W]  / [L, 1, W]
        w_fc1=jnp.stack(w_fc1), b_fc1=jnp.stack(b_fc1),      # [L, W, 4W]     / [L, 1, 4W]
        w_fc2=jnp.stack(w_fc2), b_fc2=jnp.stack(b_fc2),      # [L, 4W, W]     / [L, 1, W]
    )

    proj = nrm((WIDTH, OUT_DIM))
    params['proj_pad'] = jnp.zeros((WIDTH, PAD_F), F32).at[:, :OUT_DIM].set(proj)
    # zeroshot_weights[key]: [output_dim, num_classes], each column unit-norm
    # (stands in for normalized CLIP text embeddings stacked along dim=1).
    zsw = jax.random.normal(next(keys), (OUT_DIM, NUM_CLASSES)).astype(F32)
    zsw = zsw / jnp.linalg.norm(zsw, axis=0, keepdims=True)
    params['zsw_pad'] = jnp.zeros((PAD_F, PAD_N), F32).at[:OUT_DIM, :NUM_CLASSES].set(zsw)
    return params


# --------------------------------- main ---------------------------------------
if __name__ == "__main__":
    params = init_params(seed=0)
    image = jax.random.normal(jax.random.PRNGKey(0), (BATCH, IN_CH, IMG, IMG), F32)

    fwd = jax.jit(vit_prompt_forward, static_argnames=("prompt", "return_features"))

    logits = fwd(image, params, prompt=True)
    logits = jax.block_until_ready(logits)
    assert logits.shape == (BATCH, NUM_CLASSES)
    assert bool(jnp.all(jnp.isfinite(logits)))

    # also exercise the return_features path once
    logits2, feats = fwd(image, params, prompt=True, return_features=True)
    jax.block_until_ready((logits2, feats))
    assert feats.shape == (BATCH, OUT_DIM)
    assert bool(jnp.all(jnp.isfinite(feats)))

    print("KERNEL_OK")
</pallas_src>

<mosaic_0001>
module attributes {stable_mosaic.version = 11 : i64} {
  func.func @_vit_prompt_kernel(%arg0: i32, %arg1: memref<1xf32, #tpu.memory_space<smem>>, %arg2: memref<18x201xf32, #tpu.memory_space<vmem>>, %arg3: memref<201x32xf32, #tpu.memory_space<vmem>>, %arg4: memref<6x1x32xf32, #tpu.memory_space<vmem>>, %arg5: memref<6x1x32xf32, #tpu.memory_space<vmem>>, %arg6: memref<2x12x32x8xf32, #tpu.memory_space<vmem>>, %arg7: memref<2x12x1x8xf32, #tpu.memory_space<vmem>>, %arg8: memref<2x4x8x32xf32, #tpu.memory_space<vmem>>, %arg9: memref<2x1x32xf32, #tpu.memory_space<vmem>>, %arg10: memref<2x32x128xf32, #tpu.memory_space<vmem>>, %arg11: memref<2x1x128xf32, #tpu.memory_space<vmem>>, %arg12: memref<2x128x32xf32, #tpu.memory_space<vmem>>, %arg13: memref<2x1x32xf32, #tpu.memory_space<vmem>>, %arg14: memref<18x18xf32, #tpu.memory_space<vmem>>, %arg15: memref<2x18xf32, #tpu.memory_space<vmem>>, %arg16: memref<32x128xf32, #tpu.memory_space<vmem>>, %arg17: memref<128x128xf32, #tpu.memory_space<vmem>>, %arg18: memref<2x128xf32, #tpu.memory_space<vmem>>, %arg19: memref<2x128xf32, #tpu.memory_space<vmem>>) attributes {dimension_semantics = [#tpu.dimension_semantics<arbitrary>], iteration_bounds = array<i64: 1>, scalar_prefetch = 0 : i64, scratch_operands = 0 : i64, tpu.core_type = #tpu.core_type<tc>, window_params = [{transform_indices = @transform_0, window_bounds = array<i64: 1>}, {pipeline_mode = #tpu.pipeline_mode<synchronous>, transform_indices = @transform_1, window_bounds = array<i64: 18, 201>}, {pipeline_mode = #tpu.pipeline_mode<synchronous>, transform_indices = @transform_2, window_bounds = array<i64: 201, 32>}, {pipeline_mode = #tpu.pipeline_mode<synchronous>, transform_indices = @transform_3, window_bounds = array<i64: 6, 1, 32>}, {pipeline_mode = #tpu.pipeline_mode<synchronous>, transform_indices = @transform_4, window_bounds = array<i64: 6, 1, 32>}, {pipeline_mode = #tpu.pipeline_mode<synchronous>, transform_indices = @transform_5, window_bounds = array<i64: 2, 12, 32, 8>}, {pipeline_mode = #tpu.pipeline_mode<synchronous>, transform_indices = @transform_6, window_bounds = array<i64: 2, 12, 1, 8>}, {pipeline_mode = #tpu.pipeline_mode<synchronous>, transform_indices = @transform_7, window_bounds = array<i64: 2, 4, 8, 32>}, {pipeline_mode = #tpu.pipeline_mode<synchronous>, transform_indices = @transform_8, window_bounds = array<i64: 2, 1, 32>}, {pipeline_mode = #tpu.pipeline_mode<synchronous>, transform_indices = @transform_9, window_bounds = array<i64: 2, 32, 128>}, {pipeline_mode = #tpu.pipeline_mode<synchronous>, transform_indices = @transform_10, window_bounds = array<i64: 2, 1, 128>}, {pipeline_mode = #tpu.pipeline_mode<synchronous>, transform_indices = @transform_11, window_bounds = array<i64: 2, 128, 32>}, {pipeline_mode = #tpu.pipeline_mode<synchronous>, transform_indices = @transform_12, window_bounds = array<i64: 2, 1, 32>}, {pipeline_mode = #tpu.pipeline_mode<synchronous>, transform_indices = @transform_13, window_bounds = array<i64: 18, 18>}, {pipeline_mode = #tpu.pipeline_mode<synchronous>, transform_indices = @transform_14, window_bounds = array<i64: 2, 18>}, {pipeline_mode = #tpu.pipeline_mode<synchronous>, transform_indices = @transform_15, window_bounds = array<i64: 32, 128>}, {pipeline_mode = #tpu.pipeline_mode<synchronous>, transform_indices = @transform_16, window_bounds = array<i64: 128, 128>}, {pipeline_mode = #tpu.pipeline_mode<synchronous>, transform_indices = @transform_17, window_bounds = array<i64: 2, 128>}, {pipeline_mode = #tpu.pipeline_mode<synchronous>, transform_indices = @transform_18, window_bounds = array<i64: 2, 128>}]} {
    %c0 = arith.constant 0 : index
    %c0_0 = arith.constant 0 : index
    %0 = vector.load %arg2[%c0, %c0_0] : memref<18x201xf32, #tpu.memory_space<vmem>>, vector<18x201xf32>
    %c0_1 = arith.constant 0 : index
    %c0_2 = arith.constant 0 : index
    %1 = vector.load %arg3[%c0_1, %c0_2] : memref<201x32xf32, #tpu.memory_space<vmem>>, vector<201x32xf32>
    %cst = arith.constant dense<0.000000e+00> : vector<18x32xf32>
    %2 = tpu.matmul %0, %1, %cst {dimension_numbers = #tpu.dot_dimension_numbers<[1], [0], [0], [1], [0, 0, 1, 1], [], []>} : vector<18x201xf32>, vector<201x32xf32>, vector<18x32xf32> -> vector<18x32xf32>
    %cst_3 = arith.constant dense<0.000000e+00> : vector<18xf32>
    %3 = vector.multi_reduction <add>, %2, %cst_3 [1] : vector<18x32xf32> to vector<18xf32>
    %4 = vector.shape_cast %3 : vector<18xf32> to vector<18x1xf32>
    %cst_4 = arith.constant 3.200000e+01 : f32
    %5 = vector.broadcast %cst_4 : f32 to vector<18x1xf32>
    %6 = arith.divf %4, %5 : vector<18x1xf32>
    %7 = vector.broadcast %6 : vector<18x1xf32> to vector<18x32xf32>
    %8 = arith.subf %2, %7 : vector<18x32xf32>
    %9 = arith.mulf %8, %8 : vector<18x32xf32>
    %cst_5 = arith.constant dense<0.000000e+00> : vector<18xf32>
    %10 = vector.multi_reduction <add>, %9, %cst_5 [1] : vector<18x32xf32> to vector<18xf32>
    %11 = vector.shape_cast %10 : vector<18xf32> to vector<18x1xf32>
    %cst_6 = arith.constant 3.200000e+01 : f32
    %12 = vector.broadcast %cst_6 : f32 to vector<18x1xf32>
    %13 = arith.divf %11, %12 : vector<18x1xf32>
    %14 = vector.broadcast %6 : vector<18x1xf32> to vector<18x32xf32>
    %15 = arith.subf %2, %14 : vector<18x32xf32>
    %cst_7 = arith.constant 9.99999974E-6 : f32
    %16 = vector.broadcast %cst_7 : f32 to vector<18x1xf32>
    %17 = arith.addf %13, %16 : vector<18x1xf32>
    %18 = math.rsqrt %17 : vector<18x1xf32>
    %19 = vector.broadcast %18 : vector<18x1xf32> to vector<18x32xf32>
    %20 = arith.mulf %15, %19 : vector<18x32xf32>
    %c0_8 = arith.constant 0 : index
    %c0_9 = arith.constant 0 : index
    %c0_10 = arith.constant 0 : index
    %21 = vector.load %arg4[%c0_8, %c0_9, %c0_10] : memref<6x1x32xf32, #tpu.memory_space<vmem>>, vector<1x1x32xf32>
    %22 = vector.shape_cast %21 : vector<1x1x32xf32> to vector<1x32xf32>
    %23 = vector.broadcast %22 : vector<1x32xf32> to vector<18x32xf32>
    %24 = arith.mulf %20, %23 : vector<18x32xf32>
    %c0_11 = arith.constant 0 : index
    %c0_12 = arith.constant 0 : index
    %c0_13 = arith.constant 0 : index
    %25 = vector.load %arg5[%c0_11, %c0_12, %c0_13] : memref<6x1x32xf32, #tpu.memory_space<vmem>>, vector<1x1x32xf32>
    %26 = vector.shape_cast %25 : vector<1x1x32xf32> to vector<1x32xf32>
    %27 = vector.broadcast %26 : vector<1x32xf32> to vector<18x32xf32>
    %28 = arith.addf %24, %27 : vector<18x32xf32>
    %c0_14 = arith.constant 0 : index
    %c0_15 = arith.constant 0 : index
    %29 = vector.load %arg14[%c0_14, %c0_15] : memref<18x18xf32, #tpu.memory_space<vmem>>, vector<18x18xf32>
    %cst_16 = arith.constant dense<0.000000e+00> : vector<18xf32>
    %30 = vector.multi_reduction <add>, %28, %cst_16 [1] : vector<18x32xf32> to vector<18xf32>
    %31 = vector.shape_cast %30 : vector<18xf32> to vector<18x1xf32>
    %cst_17 = arith.constant 3.200000e+01 : f32
    %32 = vector.broadcast %cst_17 : f32 to vector<18x1xf32>
    %33 = arith.divf %31, %32 : vector<18x1xf32>
    %34 = vector.broadcast %33 : vector<18x1xf32> to vector<18x32xf32>
    %35 = arith.subf %28, %34 : vector<18x32xf32>
    %36 = arith.mulf %35, %35 : vector<18x32xf32>
    %cst_18 = arith.constant dense<0.000000e+00> : vector<18xf32>
    %37 = vector.multi_reduction <add>, %36, %cst_18 [1] : vector<18x32xf32> to vector<18xf32>
    %38 = vector.shape_cast %37 : vector<18xf32> to vector<18x1xf32>
    %cst_19 = arith.constant 3.200000e+01 : f32
    %39 = vector.broadcast %cst_19 : f32 to vector<18x1xf32>
    %40 = arith.divf %38, %39 : vector<18x1xf32>
    %41 = vector.broadcast %33 : vector<18x1xf32> to vector<18x32xf32>
    %42 = arith.subf %28, %41 : vector<18x32xf32>
    %cst_20 = arith.constant 9.99999974E-6 : f32
    %43 = vector.broadcast %cst_20 : f32 to vector<18x1xf32>
    %44 = arith.addf %40, %43 : vector<18x1xf32>
    %45 = math.rsqrt %44 : vector<18x1xf32>
    %46 = vector.broadcast %45 : vector<18x1xf32> to vector<18x32xf32>
    %47 = arith.mulf %42, %46 : vector<18x32xf32>
    %c1 = arith.constant 1 : index
    %c0_21 = arith.constant 0 : index
    %c0_22 = arith.constant 0 : index
    %48 = vector.load %arg4[%c1, %c0_21, %c0_22] : memref<6x1x32xf32, #tpu.memory_space<vmem>>, vector<1x1x32xf32>
    %49 = vector.shape_cast %48 : vector<1x1x32xf32> to vector<1x32xf32>
    %50 = vector.broadcast %49 : vector<1x32xf32> to vector<18x32xf32>
    %51 = arith.mulf %47, %50 : vector<18x32xf32>
    %c1_23 = arith.constant 1 : index
    %c0_24 = arith.constant 0 : index
    %c0_25 = arith.constant 0 : index
    %52 = vector.load %arg5[%c1_23, %c0_24, %c0_25] : memref<6x1x32xf32, #tpu.memory_space<vmem>>, vector<1x1x32xf32>
    %53 = vector.shape_cast %52 : vector<1x1x32xf32> to vector<1x32xf32>
    %54 = vector.broadcast %53 : vector<1x32xf32> to vector<18x32xf32>
    %55 = arith.addf %51, %54 : vector<18x32xf32>
    %c0_26 = arith.constant 0 : index
    %c0_27 = arith.constant 0 : index
    %c0_28 = arith.constant 0 : index
    %56 = vector.load %arg9[%c0_26, %c0_27, %c0_28] : memref<2x1x32xf32, #tpu.memory_space<vmem>>, vector<1x1x32xf32>
    %57 = vector.shape_cast %56 : vector<1x1x32xf32> to vector<1x32xf32>
    %c0_29 = arith.constant 0 : index
    %c0_30 = arith.constant 0 : index
    %c0_31 = arith.constant 0 : index
    %c0_32 = arith.constant 0 : index
    %58 = vector.load %arg6[%c0_29, %c0_30, %c0_31, %c0_32] : memref<2x12x32x8xf32, #tpu.memory_space<vmem>>, vector<1x1x32x8xf32>
    %59 = vector.shape_cast %58 : vector<1x1x32x8xf32> to vector<32x8xf32>
    %cst_33 = arith.constant dense<0.000000e+00> : vector<18x8xf32>
    %60 = tpu.matmul %55, %59, %cst_33 {dimension_numbers = #tpu.dot_dimension_numbers<[1], [0], [0], [1], [0, 0, 1, 1], [], []>} : vector<18x32xf32>, vector<32x8xf32>, vector<18x8xf32> -> vector<18x8xf32>
    %c0_34 = arith.constant 0 : index
    %c0_35 = arith.constant 0 : index
    %c0_36 = arith.constant 0 : index
    %c0_37 = arith.constant 0 : index
    %61 = vector.load %arg7[%c0_34, %c0_35, %c0_36, %c0_37] : memref<2x12x1x8xf32, #tpu.memory_space<vmem>>, vector<1x1x1x8xf32>
    %62 = vector.shape_cast %61 : vector<1x1x1x8xf32> to vector<1x8xf32>
    %63 = vector.broadcast %62 : vector<1x8xf32> to vector<18x8xf32>
    %64 = arith.addf %60, %63 : vector<18x8xf32>
    %c0_38 = arith.constant 0 : index
    %c4 = arith.constant 4 : index
    %c0_39 = arith.constant 0 : index
    %c0_40 = arith.constant 0 : index
    %65 = vector.load %arg6[%c0_38, %c4, %c0_39, %c0_40] : memref<2x12x32x8xf32, #tpu.memory_space<vmem>>, vector<1x1x32x8xf32>
    %66 = vector.shape_cast %65 : vector<1x1x32x8xf32> to vector<32x8xf32>
    %cst_41 = arith.constant dense<0.000000e+00> : vector<18x8xf32>
    %67 = tpu.matmul %55, %66, %cst_41 {dimension_numbers = #tpu.dot_dimension_numbers<[1], [0], [0], [1], [0, 0, 1, 1], [], []>} : vector<18x32xf32>, vector<32x8xf32>, vector<18x8xf32> -> vector<18x8xf32>
    %c0_42 = arith.constant 0 : index
    %c4_43 = arith.constant 4 : index
    %c0_44 = arith.constant 0 : index
    %c0_45 = arith.constant 0 : index
    %68 = vector.load %arg7[%c0_42, %c4_43, %c0_44, %c0_45] : memref<2x12x1x8xf32, #tpu.memory_space<vmem>>, vector<1x1x1x8xf32>
    %69 = vector.shape_cast %68 : vector<1x1x1x8xf32> to vector<1x8xf32>
    %70 = vector.broadcast %69 : vector<1x8xf32> to vector<18x8xf32>
    %71 = arith.addf %67, %70 : vector<18x8xf32>
    %c0_46 = arith.constant 0 : index
    %c8 = arith.constant 8 : index
    %c0_47 = arith.constant 0 : index
    %c0_48 = arith.constant 0 : index
    %72 = vector.load %arg6[%c0_46, %c8, %c0_47, %c0_48] : memref<2x12x32x8xf32, #tpu.memory_space<vmem>>, vector<1x1x32x8xf32>
    %73 = vector.shape_cast %72 : vector<1x1x32x8xf32> to vector<32x8xf32>
    %cst_49 = arith.constant dense<0.000000e+00> : vector<18x8xf32>
    %74 = tpu.matmul %55, %73, %cst_49 {dimension_numbers = #tpu.dot_dimension_numbers<[1], [0], [0], [1], [0, 0, 1, 1], [], []>} : vector<18x32xf32>, vector<32x8xf32>, vector<18x8xf32> -> vector<18x8xf32>
    %c0_50 = arith.constant 0 : index
    %c8_51 = arith.constant 8 : index
    %c0_52 = arith.constant 0 : index
    %c0_53 = arith.constant 0 : index
    %75 = vector.load %arg7[%c0_50, %c8_51, %c0_52, %c0_53] : memref<2x12x1x8xf32, #tpu.memory_space<vmem>>, vector<1x1x1x8xf32>
    %76 = vector.shape_cast %75 : vector<1x1x1x8xf32> to vector<1x8xf32>
    %77 = vector.broadcast %76 : vector<1x8xf32> to vector<18x8xf32>
    %78 = arith.addf %74, %77 : vector<18x8xf32>
    "tpu.trace_start"() <{level = 10 : i32, message = "qd,kd->qk"}> : () -> ()
    %cst_54 = arith.constant dense<0.000000e+00> : vector<18x18xf32>
    %79 = tpu.matmul %64, %71, %cst_54 {dimension_numbers = #tpu.dot_dimension_numbers<[1], [1], [0], [0], [0, 0, 1, 0], [], []>} : vector<18x8xf32>, vector<18x8xf32>, vector<18x18xf32> -> vector<18x18xf32>
    "tpu.trace_stop"() : () -> ()
    %cst_55 = arith.constant 0.353553385 : f32
    %80 = vector.broadcast %cst_55 : f32 to vector<18x18xf32>
    %81 = arith.mulf %79, %80 : vector<18x18xf32>
    %82 = arith.addf %81, %29 : vector<18x18xf32>
    %cst_56 = arith.constant dense<0xFF800000> : vector<18xf32>
    %83 = vector.multi_reduction <maximumf>, %82, %cst_56 [1] : vector<18x18xf32> to vector<18xf32>
    %84 = vector.shape_cast %83 : vector<18xf32> to vector<18x1xf32>
    %85 = vector.broadcast %84 : vector<18x1xf32> to vector<18x18xf32>
    %86 = arith.subf %82, %85 : vector<18x18xf32>
    %87 = math.exp %86 : vector<18x18xf32>
    %cst_57 = arith.constant dense<0.000000e+00> : vector<18xf32>
    %88 = vector.multi_reduction <add>, %87, %cst_57 [1] : vector<18x18xf32> to vector<18xf32>
    %89 = vector.shape_cast %88 : vector<18xf32> to vector<18x1xf32>
    %90 = tpu.reciprocal %89 {approx = true} : vector<18x1xf32> -> vector<18x1xf32>
    %91 = vector.broadcast %90 : vector<18x1xf32> to vector<18x18xf32>
    %92 = arith.mulf %87, %91 : vector<18x18xf32>
    %cst_58 = arith.constant dense<0.000000e+00> : vector<18x8xf32>
    %93 = tpu.matmul %92, %78, %cst_58 {dimension_numbers = #tpu.dot_dimension_numbers<[1], [0], [0], [1], [0, 0, 1, 1], [], []>} : vector<18x18xf32>, vector<18x8xf32>, vector<18x8xf32> -> vector<18x8xf32>
    %c0_59 = arith.constant 0 : index
    %c0_60 = arith.constant 0 : index
    %c0_61 = arith.constant 0 : index
    %c0_62 = arith.constant 0 : index
    %94 = vector.load %arg8[%c0_59, %c0_60, %c0_61, %c0_62] : memref<2x4x8x32xf32, #tpu.memory_space<vmem>>, vector<1x1x8x32xf32>
    %95 = vector.shape_cast %94 : vector<1x1x8x32xf32> to vector<8x32xf32>
    %cst_63 = arith.constant dense<0.000000e+00> : vector<18x32xf32>
    %96 = tpu.matmul %93, %95, %cst_63 {dimension_numbers = #tpu.dot_dimension_numbers<[1], [0], [0], [1], [0, 0, 1, 1], [], []>} : vector<18x8xf32>, vector<8x32xf32>, vector<18x32xf32> -> vector<18x32xf32>
    %97 = vector.broadcast %57 : vector<1x32xf32> to vector<18x32xf32>
    %98 = arith.addf %97, %96 : vector<18x32xf32>
    %c0_64 = arith.constant 0 : index
    %c1_65 = arith.constant 1 : index
    %c0_66 = arith.constant 0 : index
    %c0_67 = arith.constant 0 : index
    %99 = vector.load %arg6[%c0_64, %c1_65, %c0_66, %c0_67] : memref<2x12x32x8xf32, #tpu.memory_space<vmem>>, vector<1x1x32x8xf32>
    %100 = vector.shape_cast %99 : vector<1x1x32x8xf32> to vector<32x8xf32>
    %cst_68 = arith.constant dense<0.000000e+00> : vector<18x8xf32>
    %101 = tpu.matmul %55, %100, %cst_68 {dimension_numbers = #tpu.dot_dimension_numbers<[1], [0], [0], [1], [0, 0, 1, 1], [], []>} : vector<18x32xf32>, vector<32x8xf32>, vector<18x8xf32> -> vector<18x8xf32>
    %c0_69 = arith.constant 0 : index
    %c1_70 = arith.constant 1 : index
    %c0_71 = arith.constant 0 : index
    %c0_72 = arith.constant 0 : index
    %102 = vector.load %arg7[%c0_69, %c1_70, %c0_71, %c0_72] : memref<2x12x1x8xf32, #tpu.memory_space<vmem>>, vector<1x1x1x8xf32>
    %103 = vector.shape_cast %102 : vector<1x1x1x8xf32> to vector<1x8xf32>
    %104 = vector.broadcast %103 : vector<1x8xf32> to vector<18x8xf32>
    %105 = arith.addf %101, %104 : vector<18x8xf32>
    %c0_73 = arith.constant 0 : index
    %c5 = arith.constant 5 : index
    %c0_74 = arith.constant 0 : index
    %c0_75 = arith.constant 0 : index
    %106 = vector.load %arg6[%c0_73, %c5, %c0_74, %c0_75] : memref<2x12x32x8xf32, #tpu.memory_space<vmem>>, vector<1x1x32x8xf32>
    %107 = vector.shape_cast %106 : vector<1x1x32x8xf32> to vector<32x8xf32>
    %cst_76 = arith.constant dense<0.000000e+00> : vector<18x8xf32>
    %108 = tpu.matmul %55, %107, %cst_76 {dimension_numbers = #tpu.dot_dimension_numbers<[1], [0], [0], [1], [0, 0, 1, 1], [], []>} : vector<18x32xf32>, vector<32x8xf32>, vector<18x8xf32> -> vector<18x8xf32>
    %c0_77 = arith.constant 0 : index
    %c5_78 = arith.constant 5 : index
    %c0_79 = arith.constant 0 : index
    %c0_80 = arith.constant 0 : index
    %109 = vector.load %arg7[%c0_77, %c5_78, %c0_79, %c0_80] : memref<2x12x1x8xf32, #tpu.memory_space<vmem>>, vector<1x1x1x8xf32>
    %110 = vector.shape_cast %109 : vector<1x1x1x8xf32> to vector<1x8xf32>
    %111 = vector.broadcast %110 : vector<1x8xf32> to vector<18x8xf32>
    %112 = arith.addf %108, %111 : vector<18x8xf32>
    %c0_81 = arith.constant 0 : index
    %c9 = arith.constant 9 : index
    %c0_82 = arith.constant 0 : index
    %c0_83 = arith.constant 0 : index
    %113 = vector.load %arg6[%c0_81, %c9, %c0_82, %c0_83] : memref<2x12x32x8xf32, #tpu.memory_space<vmem>>, vector<1x1x32x8xf32>
    %114 = vector.shape_cast %113 : vector<1x1x32x8xf32> to vector<32x8xf32>
    %cst_84 = arith.constant dense<0.000000e+00> : vector<18x8xf32>
    %115 = tpu.matmul %55, %114, %cst_84 {dimension_numbers = #tpu.dot_dimension_numbers<[1], [0], [0], [1], [0, 0, 1, 1], [], []>} : vector<18x32xf32>, vector<32x8xf32>, vector<18x8xf32> -> vector<18x8xf32>
    %c0_85 = arith.constant 0 : index
    %c9_86 = arith.constant 9 : index
    %c0_87 = arith.constant 0 : index
    %c0_88 = arith.constant 0 : index
    %116 = vector.load %arg7[%c0_85, %c9_86, %c0_87, %c0_88] : memref<2x12x1x8xf32, #tpu.memory_space<vmem>>, vector<1x1x1x8xf32>
    %117 = vector.shape_cast %116 : vector<1x1x1x8xf32> to vector<1x8xf32>
    %118 = vector.broadcast %117 : vector<1x8xf32> to vector<18x8xf32>
    %119 = arith.addf %115, %118 : vector<18x8xf32>
    "tpu.trace_start"() <{level = 10 : i32, message = "qd,kd->qk"}> : () -> ()
    %cst_89 = arith.constant dense<0.000000e+00> : vector<18x18xf32>
    %120 = tpu.matmul %105, %112, %cst_89 {dimension_numbers = #tpu.dot_dimension_numbers<[1], [1], [0], [0], [0, 0, 1, 0], [], []>} : vector<18x8xf32>, vector<18x8xf32>, vector<18x18xf32> -> vector<18x18xf32>
    "tpu.trace_stop"() : () -> ()
    %cst_90 = arith.constant 0.353553385 : f32
    %121 = vector.broadcast %cst_90 : f32 to vector<18x18xf32>
    %122 = arith.mulf %120, %121 : vector<18x18xf32>
    %123 = arith.addf %122, %29 : vector<18x18xf32>
    %cst_91 = arith.constant dense<0xFF800000> : vector<18xf32>
    %124 = vector.multi_reduction <maximumf>, %123, %cst_91 [1] : vector<18x18xf32> to vector<18xf32>
    %125 = vector.shape_cast %124 : vector<18xf32> to vector<18x1xf32>
    %126 = vector.broadcast %125 : vector<18x1xf32> to vector<18x18xf32>
    %127 = arith.subf %123, %126 : vector<18x18xf32>
    %128 = math.exp %127 : vector<18x18xf32>
    %cst_92 = arith.constant dense<0.000000e+00> : vector<18xf32>
    %129 = vector.multi_reduction <add>, %128, %cst_92 [1] : vector<18x18xf32> to vector<18xf32>
    %130 = vector.shape_cast %129 : vector<18xf32> to vector<18x1xf32>
    %131 = tpu.reciprocal %130 {approx = true} : vector<18x1xf32> -> vector<18x1xf32>
    %132 = vector.broadcast %131 : vector<18x1xf32> to vector<18x18xf32>
    %133 = arith.mulf %128, %132 : vector<18x18xf32>
    %cst_93 = arith.constant dense<0.000000e+00> : vector<18x8xf32>
    %134 = tpu.matmul %133, %119, %cst_93 {dimension_numbers = #tpu.dot_dimension_numbers<[1], [0], [0], [1], [0, 0, 1, 1], [], []>} : vector<18x18xf32>, vector<18x8xf32>, vector<18x8xf32> -> vector<18x8xf32>
    %c0_94 = arith.constant 0 : index
    %c1_95 = arith.constant 1 : index
    %c0_96 = arith.constant 0 : index
    %c0_97 = arith.constant 0 : index
    %135 = vector.load %arg8[%c0_94, %c1_95, %c0_96, %c0_97] : memref<2x4x8x32xf32, #tpu.memory_space<vmem>>, vector<1x1x8x32xf32>
    %136 = vector.shape_cast %135 : vector<1x1x8x32xf32> to vector<8x32xf32>
    %cst_98 = arith.constant dense<0.000000e+00> : vector<18x32xf32>
    %137 = tpu.matmul %134, %136, %cst_98 {dimension_numbers = #tpu.dot_dimension_numbers<[1], [0], [0], [1], [0, 0, 1, 1], [], []>} : vector<18x8xf32>, vector<8x32xf32>, vector<18x32xf32> -> vector<18x32xf32>
    %138 = arith.addf %98, %137 : vector<18x32xf32>
    %c0_99 = arith.constant 0 : index
    %c2 = arith.constant 2 : index
    %c0_100 = arith.constant 0 : index
    %c0_101 = arith.constant 0 : index
    %139 = vector.load %arg6[%c0_99, %c2, %c0_100, %c0_101] : memref<2x12x32x8xf32, #tpu.memory_space<vmem>>, vector<1x1x32x8xf32>
    %140 = vector.shape_cast %139 : vector<1x1x32x8xf32> to vector<32x8xf32>
    %cst_102 = arith.constant dense<0.000000e+00> : vector<18x8xf32>
    %141 = tpu.matmul %55, %140, %cst_102 {dimension_numbers = #tpu.dot_dimension_numbers<[1], [0], [0], [1], [0, 0, 1, 1], [], []>} : vector<18x32xf32>, vector<32x8xf32>, vector<18x8xf32> -> vector<18x8xf32>
    %c0_103 = arith.constant 0 : index
    %c2_104 = arith.constant 2 : index
    %c0_105 = arith.constant 0 : index
    %c0_106 = arith.constant 0 : index
    %142 = vector.load %arg7[%c0_103, %c2_104, %c0_105, %c0_106] : memref<2x12x1x8xf32, #tpu.memory_space<vmem>>, vector<1x1x1x8xf32>
    %143 = vector.shape_cast %142 : vector<1x1x1x8xf32> to vector<1x8xf32>
    %144 = vector.broadcast %143 : vector<1x8xf32> to vector<18x8xf32>
    %145 = arith.addf %141, %144 : vector<18x8xf32>
    %c0_107 = arith.constant 0 : index
    %c6 = arith.constant 6 : index
    %c0_108 = arith.constant 0 : index
    %c0_109 = arith.constant 0 : index
    %146 = vector.load %arg6[%c0_107, %c6, %c0_108, %c0_109] : memref<2x12x32x8xf32, #tpu.memory_space<vmem>>, vector<1x1x32x8xf32>
    %147 = vector.shape_cast %146 : vector<1x1x32x8xf32> to vector<32x8xf32>
    %cst_110 = arith.constant dense<0.000000e+00> : vector<18x8xf32>
    %148 = tpu.matmul %55, %147, %cst_110 {dimension_numbers = #tpu.dot_dimension_numbers<[1], [0], [0], [1], [0, 0, 1, 1], [], []>} : vector<18x32xf32>, vector<32x8xf32>, vector<18x8xf32> -> vector<18x8xf32>
    %c0_111 = arith.constant 0 : index
    %c6_112 = arith.constant 6 : index
    %c0_113 = arith.constant 0 : index
    %c0_114 = arith.constant 0 : index
    %149 = vector.load %arg7[%c0_111, %c6_112, %c0_113, %c0_114] : memref<2x12x1x8xf32, #tpu.memory_space<vmem>>, vector<1x1x1x8xf32>
    %150 = vector.shape_cast %149 : vector<1x1x1x8xf32> to vector<1x8xf32>
    %151 = vector.broadcast %150 : vector<1x8xf32> to vector<18x8xf32>
    %152 = arith.addf %148, %151 : vector<18x8xf32>
    %c0_115 = arith.constant 0 : index
    %c10 = arith.constant 10 : index
    %c0_116 = arith.constant 0 : index
    %c0_117 = arith.constant 0 : index
    %153 = vector.load %arg6[%c0_115, %c10, %c0_116, %c0_117] : memref<2x12x32x8xf32, #tpu.memory_space<vmem>>, vector<1x1x32x8xf32>
    %154 = vector.shape_cast %153 : vector<1x1x32x8xf32> to vector<32x8xf32>
    %cst_118 = arith.constant dense<0.000000e+00> : vector<18x8xf32>
    %155 = tpu.matmul %55, %154, %cst_118 {dimension_numbers = #tpu.dot_dimension_numbers<[1], [0], [0], [1], [0, 0, 1, 1], [], []>} : vector<18x32xf32>, vector<32x8xf32>, vector<18x8xf32> -> vector<18x8xf32>
    %c0_119 = arith.constant 0 : index
    %c10_120 = arith.constant 10 : index
    %c0_121 = arith.constant 0 : index
    %c0_122 = arith.constant 0 : index
    %156 = vector.load %arg7[%c0_119, %c10_120, %c0_121, %c0_122] : memref<2x12x1x8xf32, #tpu.memory_space<vmem>>, vector<1x1x1x8xf32>
    %157 = vector.shape_cast %156 : vector<1x1x1x8xf32> to vector<1x8xf32>
    %158 = vector.broadcast %157 : vector<1x8xf32> to vector<18x8xf32>
    %159 = arith.addf %155, %158 : vector<18x8xf32>
    "tpu.trace_start"() <{level = 10 : i32, message = "qd,kd->qk"}> : () -> ()
    %cst_123 = arith.constant dense<0.000000e+00> : vector<18x18xf32>
    %160 = tpu.matmul %145, %152, %cst_123 {dimension_numbers = #tpu.dot_dimension_numbers<[1], [1], [0], [0], [0, 0, 1, 0], [], []>} : vector<18x8xf32>, vector<18x8xf32>, vector<18x18xf32> -> vector<18x18xf32>
    "tpu.trace_stop"() : () -> ()
    %cst_124 = arith.constant 0.353553385 : f32
    %161 = vector.broadcast %cst_124 : f32 to vector<18x18xf32>
    %162 = arith.mulf %160, %161 : vector<18x18xf32>
    %163 = arith.addf %162, %29 : vector<18x18xf32>
    %cst_125 = arith.constant dense<0xFF800000> : vector<18xf32>
    %164 = vector.multi_reduction <maximumf>, %163, %cst_125 [1] : vector<18x18xf32> to vector<18xf32>
    %165 = vector.shape_cast %164 : vector<18xf32> to vector<18x1xf32>
    %166 = vector.broadcast %165 : vector<18x1xf32> to vector<18x18xf32>
    %167 = arith.subf %163, %166 : vector<18x18xf32>
    %168 = math.exp %167 : vector<18x18xf32>
    %cst_126 = arith.constant dense<0.000000e+00> : vector<18xf32>
    %169 = vector.multi_reduction <add>, %168, %cst_126 [1] : vector<18x18xf32> to vector<18xf32>
    %170 = vector.shape_cast %169 : vector<18xf32> to vector<18x1xf32>
    %171 = tpu.reciprocal %170 {approx = true} : vector<18x1xf32> -> vector<18x1xf32>
    %172 = vector.broadcast %171 : vector<18x1xf32> to vector<18x18xf32>
    %173 = arith.mulf %168, %172 : vector<18x18xf32>
    %cst_127 = arith.constant dense<0.000000e+00> : vector<18x8xf32>
    %174 = tpu.matmul %173, %159, %cst_127 {dimension_numbers = #tpu.dot_dimension_numbers<[1], [0], [0], [1], [0, 0, 1, 1], [], []>} : vector<18x18xf32>, vector<18x8xf32>, vector<18x8xf32> -> vector<18x8xf32>
    %c0_128 = arith.constant 0 : index
    %c2_129 = arith.constant 2 : index
    %c0_130 = arith.constant 0 : index
    %c0_131 = arith.constant 0 : index
    %175 = vector.load %arg8[%c0_128, %c2_129, %c0_130, %c0_131] : memref<2x4x8x32xf32, #tpu.memory_space<vmem>>, vector<1x1x8x32xf32>
    %176 = vector.shape_cast %175 : vector<1x1x8x32xf32> to vector<8x32xf32>
    %cst_132 = arith.constant dense<0.000000e+00> : vector<18x32xf32>
    %177 = tpu.matmul %174, %176, %cst_132 {dimension_numbers = #tpu.dot_dimension_numbers<[1], [0], [0], [1], [0, 0, 1, 1], [], []>} : vector<18x8xf32>, vector<8x32xf32>, vector<18x32xf32> -> vector<18x32xf32>
    %178 = arith.addf %138, %177 : vector<18x32xf32>
    %c0_133 = arith.constant 0 : index
    %c3 = arith.constant 3 : index
    %c0_134 = arith.constant 0 : index
    %c0_135 = arith.constant 0 : index
    %179 = vector.load %arg6[%c0_133, %c3, %c0_134, %c0_135] : memref<2x12x32x8xf32, #tpu.memory_space<vmem>>, vector<1x1x32x8xf32>
    %180 = vector.shape_cast %179 : vector<1x1x32x8xf32> to vector<32x8xf32>
    %cst_136 = arith.constant dense<0.000000e+00> : vector<18x8xf32>
    %181 = tpu.matmul %55, %180, %cst_136 {dimension_numbers = #tpu.dot_dimension_numbers<[1], [0], [0], [1], [0, 0, 1, 1], [], []>} : vector<18x32xf32>, vector<32x8xf32>, vector<18x8xf32> -> vector<18x8xf32>
    %c0_137 = arith.constant 0 : index
    %c3_138 = arith.constant 3 : index
    %c0_139 = arith.constant 0 : index
    %c0_140 = arith.constant 0 : index
    %182 = vector.load %arg7[%c0_137, %c3_138, %c0_139, %c0_140] : memref<2x12x1x8xf32, #tpu.memory_space<vmem>>, vector<1x1x1x8xf32>
    %183 = vector.shape_cast %182 : vector<1x1x1x8xf32> to vector<1x8xf32>
    %184 = vector.broadcast %183 : vector<1x8xf32> to vector<18x8xf32>
    %185 = arith.addf %181, %184 : vector<18x8xf32>
    %c0_141 = arith.constant 0 : index
    %c7 = arith.constant 7 : index
    %c0_142 = arith.constant 0 : index
    %c0_143 = arith.constant 0 : index
    %186 = vector.load %arg6[%c0_141, %c7, %c0_142, %c0_143] : memref<2x12x32x8xf32, #tpu.memory_space<vmem>>, vector<1x1x32x8xf32>
    %187 = vector.shape_cast %186 : vector<1x1x32x8xf32> to vector<32x8xf32>
    %cst_144 = arith.constant dense<0.000000e+00> : vector<18x8xf32>
    %188 = tpu.matmul %55, %187, %cst_144 {dimension_numbers = #tpu.dot_dimension_numbers<[1], [0], [0], [1], [0, 0, 1, 1], [], []>} : vector<18x32xf32>, vector<32x8xf32>, vector<18x8xf32> -> vector<18x8xf32>
    %c0_145 = arith.constant 0 : index
    %c7_146 = arith.constant 7 : index
    %c0_147 = arith.constant 0 : index
    %c0_148 = arith.constant 0 : index
    %189 = vector.load %arg7[%c0_145, %c7_146, %c0_147, %c0_148] : memref<2x12x1x8xf32, #tpu.memory_space<vmem>>, vector<1x1x1x8xf32>
    %190 = vector.shape_cast %189 : vector<1x1x1x8xf32> to vector<1x8xf32>
    %191 = vector.broadcast %190 : vector<1x8xf32> to vector<18x8xf32>
    %192 = arith.addf %188, %191 : vector<18x8xf32>
    %c0_149 = arith.constant 0 : index
    %c11 = arith.constant 11 : index
    %c0_150 = arith.constant 0 : index
    %c0_151 = arith.constant 0 : index
    %193 = vector.load %arg6[%c0_149, %c11, %c0_150, %c0_151] : memref<2x12x32x8xf32, #tpu.memory_space<vmem>>, vector<1x1x32x8xf32>
    %194 = vector.shape_cast %193 : vector<1x1x32x8xf32> to vector<32x8xf32>
    %cst_152 = arith.constant dense<0.000000e+00> : vector<18x8xf32>
    %195 = tpu.matmul %55, %194, %cst_152 {dimension_numbers = #tpu.dot_dimension_numbers<[1], [0], [0], [1], [0, 0, 1, 1], [], []>} : vector<18x32xf32>, vector<32x8xf32>, vector<18x8xf32> -> vector<18x8xf32>
    %c0_153 = arith.constant 0 : index
    %c11_154 = arith.constant 11 : index
    %c0_155 = arith.constant 0 : index
    %c0_156 = arith.constant 0 : index
    %196 = vector.load %arg7[%c0_153, %c11_154, %c0_155, %c0_156] : memref<2x12x1x8xf32, #tpu.memory_space<vmem>>, vector<1x1x1x8xf32>
    %197 = vector.shape_cast %196 : vector<1x1x1x8xf32> to vector<1x8xf32>
    %198 = vector.broadcast %197 : vector<1x8xf32> to vector<18x8xf32>
    %199 = arith.addf %195, %198 : vector<18x8xf32>
    "tpu.trace_start"() <{level = 10 : i32, message = "qd,kd->qk"}> : () -> ()
    %cst_157 = arith.constant dense<0.000000e+00> : vector<18x18xf32>
    %200 = tpu.matmul %185, %192, %cst_157 {dimension_numbers = #tpu.dot_dimension_numbers<[1], [1], [0], [0], [0, 0, 1, 0], [], []>} : vector<18x8xf32>, vector<18x8xf32>, vector<18x18xf32> -> vector<18x18xf32>
    "tpu.trace_stop"() : () -> ()
    %cst_158 = arith.constant 0.353553385 : f32
    %201 = vector.broadcast %cst_158 : f32 to vector<18x18xf32>
    %202 = arith.mulf %200, %201 : vector<18x18xf32>
    %203 = arith.addf %202, %29 : vector<18x18xf32>
    %cst_159 = arith.constant dense<0xFF800000> : vector<18xf32>
    %204 = vector.multi_reduction <maximumf>, %203, %cst_159 [1] : vector<18x18xf32> to vector<18xf32>
    %205 = vector.shape_cast %204 : vector<18xf32> to vector<18x1xf32>
    %206 = vector.broadcast %205 : vector<18x1xf32> to vector<18x18xf32>
    %207 = arith.subf %203, %206 : vector<18x18xf32>
    %208 = math.exp %207 : vector<18x18xf32>
    %cst_160 = arith.constant dense<0.000000e+00> : vector<18xf32>
    %209 = vector.multi_reduction <add>, %208, %cst_160 [1] : vector<18x18xf32> to vector<18xf32>
    %210 = vector.shape_cast %209 : vector<18xf32> to vector<18x1xf32>
    %211 = tpu.reciprocal %210 {approx = true} : vector<18x1xf32> -> vector<18x1xf32>
    %212 = vector.broadcast %211 : vector<18x1xf32> to vector<18x18xf32>
    %213 = arith.mulf %208, %212 : vector<18x18xf32>
    %cst_161 = arith.constant dense<0.000000e+00> : vector<18x8xf32>
    %214 = tpu.matmul %213, %199, %cst_161 {dimension_numbers = #tpu.dot_dimension_numbers<[1], [0], [0], [1], [0, 0, 1, 1], [], []>} : vector<18x18xf32>, vector<18x8xf32>, vector<18x8xf32> -> vector<18x8xf32>
    %c0_162 = arith.constant 0 : index
    %c3_163 = arith.constant 3 : index
    %c0_164 = arith.constant 0 : index
    %c0_165 = arith.constant 0 : index
    %215 = vector.load %arg8[%c0_162, %c3_163, %c0_164, %c0_165] : memref<2x4x8x32xf32, #tpu.memory_space<vmem>>, vector<1x1x8x32xf32>
    %216 = vector.shape_cast %215 : vector<1x1x8x32xf32> to vector<8x32xf32>
    %cst_166 = arith.constant dense<0.000000e+00> : vector<18x32xf32>
    %217 = tpu.matmul %214, %216, %cst_166 {dimension_numbers = #tpu.dot_dimension_numbers<[1], [0], [0], [1], [0, 0, 1, 1], [], []>} : vector<18x8xf32>, vector<8x32xf32>, vector<18x32xf32> -> vector<18x32xf32>
    %218 = arith.addf %178, %217 : vector<18x32xf32>
    %219 = arith.addf %28, %218 : vector<18x32xf32>
    %cst_167 = arith.constant dense<0.000000e+00> : vector<18xf32>
    %220 = vector.multi_reduction <add>, %219, %cst_167 [1] : vector<18x32xf32> to vector<18xf32>
    %221 = vector.shape_cast %220 : vector<18xf32> to vector<18x1xf32>
    %cst_168 = arith.constant 3.200000e+01 : f32
    %222 = vector.broadcast %cst_168 : f32 to vector<18x1xf32>
    %223 = arith.divf %221, %222 : vector<18x1xf32>
    %224 = vector.broadcast %223 : vector<18x1xf32> to vector<18x32xf32>
    %225 = arith.subf %219, %224 : vector<18x32xf32>
    %226 = arith.mulf %225, %225 : vector<18x32xf32>
    %cst_169 = arith.constant dense<0.000000e+00> : vector<18xf32>
    %227 = vector.multi_reduction <add>, %226, %cst_169 [1] : vector<18x32xf32> to vector<18xf32>
    %228 = vector.shape_cast %227 : vector<18xf32> to vector<18x1xf32>
    %cst_170 = arith.constant 3.200000e+01 : f32
    %229 = vector.broadcast %cst_170 : f32 to vector<18x1xf32>
    %230 = arith.divf %228, %229 : vector<18x1xf32>
    %231 = vector.broadcast %223 : vector<18x1xf32> to vector<18x32xf32>
    %232 = arith.subf %219, %231 : vector<18x32xf32>
    %cst_171 = arith.constant 9.99999974E-6 : f32
    %233 = vector.broadcast %cst_171 : f32 to vector<18x1xf32>
    %234 = arith.addf %230, %233 : vector<18x1xf32>
    %235 = math.rsqrt %234 : vector<18x1xf32>
    %236 = vector.broadcast %235 : vector<18x1xf32> to vector<18x32xf32>
    %237 = arith.mulf %232, %236 : vector<18x32xf32>
    %c2_172 = arith.constant 2 : index
    %c0_173 = arith.constant 0 : index
    %c0_174 = arith.constant 0 : index
    %238 = vector.load %arg4[%c2_172, %c0_173, %c0_174] : memref<6x1x32xf32, #tpu.memory_space<vmem>>, vector<1x1x32xf32>
    %239 = vector.shape_cast %238 : vector<1x1x32xf32> to vector<1x32xf32>
    %240 = vector.broadcast %239 : vector<1x32xf32> to vector<18x32xf32>
    %241 = arith.mulf %237, %240 : vector<18x32xf32>
    %c2_175 = arith.constant 2 : index
    %c0_176 = arith.constant 0 : index
    %c0_177 = arith.constant 0 : index
    %242 = vector.load %arg5[%c2_175, %c0_176, %c0_177] : memref<6x1x32xf32, #tpu.memory_space<vmem>>, vector<1x1x32xf32>
    %243 = vector.shape_cast %242 : vector<1x1x32xf32> to vector<1x32xf32>
    %244 = vector.broadcast %243 : vector<1x32xf32> to vector<18x32xf32>
    %245 = arith.addf %241, %244 : vector<18x32xf32>
    %c0_178 = arith.constant 0 : index
    %c0_179 = arith.constant 0 : index
    %c0_180 = arith.constant 0 : index
    %246 = vector.load %arg10[%c0_178, %c0_179, %c0_180] : memref<2x32x128xf32, #tpu.memory_space<vmem>>, vector<1x32x128xf32>
    %247 = vector.shape_cast %246 : vector<1x32x128xf32> to vector<32x128xf32>
    %cst_181 = arith.constant dense<0.000000e+00> : vector<18x128xf32>
    %248 = tpu.matmul %245, %247, %cst_181 {dimension_numbers = #tpu.dot_dimension_numbers<[1], [0], [0], [1], [0, 0, 1, 1], [], []>} : vector<18x32xf32>, vector<32x128xf32>, vector<18x128xf32> -> vector<18x128xf32>
    %c0_182 = arith.constant 0 : index
    %c0_183 = arith.constant 0 : index
    %c0_184 = arith.constant 0 : index
    %249 = vector.load %arg11[%c0_182, %c0_183, %c0_184] : memref<2x1x128xf32, #tpu.memory_space<vmem>>, vector<1x1x128xf32>
    %250 = vector.shape_cast %249 : vector<1x1x128xf32> to vector<1x128xf32>
    %251 = vector.broadcast %250 : vector<1x128xf32> to vector<18x128xf32>
    %252 = arith.addf %248, %251 : vector<18x128xf32>
    %cst_185 = arith.constant -1.702000e+00 : f32
    %253 = vector.broadcast %cst_185 : f32 to vector<18x128xf32>
    %254 = arith.mulf %253, %252 : vector<18x128xf32>
    %255 = math.exp %254 : vector<18x128xf32>
    %cst_186 = arith.constant 1.000000e+00 : f32
    %256 = vector.broadcast %cst_186 : f32 to vector<18x128xf32>
    %257 = arith.addf %256, %255 : vector<18x128xf32>
    %cst_187 = arith.constant 1.000000e+00 : f32
    %258 = vector.broadcast %cst_187 : f32 to vector<18x128xf32>
    %259 = arith.divf %258, %257 : vector<18x128xf32>
    %260 = arith.mulf %252, %259 : vector<18x128xf32>
    %c0_188 = arith.constant 0 : index
    %c0_189 = arith.constant 0 : index
    %c0_190 = arith.constant 0 : index
    %261 = vector.load %arg12[%c0_188, %c0_189, %c0_190] : memref<2x128x32xf32, #tpu.memory_space<vmem>>, vector<1x128x32xf32>
    %262 = vector.shape_cast %261 : vector<1x128x32xf32> to vector<128x32xf32>
    %cst_191 = arith.constant dense<0.000000e+00> : vector<18x32xf32>
    %263 = tpu.matmul %260, %262, %cst_191 {dimension_numbers = #tpu.dot_dimension_numbers<[1], [0], [0], [1], [0, 0, 1, 1], [], []>} : vector<18x128xf32>, vector<128x32xf32>, vector<18x32xf32> -> vector<18x32xf32>
    %264 = arith.addf %219, %263 : vector<18x32xf32>
    %c0_192 = arith.constant 0 : index
    %c0_193 = arith.constant 0 : index
    %c0_194 = arith.constant 0 : index
    %265 = vector.load %arg13[%c0_192, %c0_193, %c0_194] : memref<2x1x32xf32, #tpu.memory_space<vmem>>, vector<1x1x32xf32>
    %266 = vector.shape_cast %265 : vector<1x1x32xf32> to vector<1x32xf32>
    %267 = vector.broadcast %266 : vector<1x32xf32> to vector<18x32xf32>
    %268 = arith.addf %264, %267 : vector<18x32xf32>
    %cst_195 = arith.constant dense<0.000000e+00> : vector<18xf32>
    %269 = vector.multi_reduction <add>, %268, %cst_195 [1] : vector<18x32xf32> to vector<18xf32>
    %270 = vector.shape_cast %269 : vector<18xf32> to vector<18x1xf32>
    %cst_196 = arith.constant 3.200000e+01 : f32
    %271 = vector.broadcast %cst_196 : f32 to vector<18x1xf32>
    %272 = arith.divf %270, %271 : vector<18x1xf32>
    %273 = vector.broadcast %272 : vector<18x1xf32> to vector<18x32xf32>
    %274 = arith.subf %268, %273 : vector<18x32xf32>
    %275 = arith.mulf %274, %274 : vector<18x32xf32>
    %cst_197 = arith.constant dense<0.000000e+00> : vector<18xf32>
    %276 = vector.multi_reduction <add>, %275, %cst_197 [1] : vector<18x32xf32> to vector<18xf32>
    %277 = vector.shape_cast %276 : vector<18xf32> to vector<18x1xf32>
    %cst_198 = arith.constant 3.200000e+01 : f32
    %278 = vector.broadcast %cst_198 : f32 to vector<18x1xf32>
    %279 = arith.divf %277, %278 : vector<18x1xf32>
    %280 = vector.broadcast %272 : vector<18x1xf32> to vector<18x32xf32>
    %281 = arith.subf %268, %280 : vector<18x32xf32>
    %cst_199 = arith.constant 9.99999974E-6 : f32
    %282 = vector.broadcast %cst_199 : f32 to vector<18x1xf32>
    %283 = arith.addf %279, %282 : vector<18x1xf32>
    %284 = math.rsqrt %283 : vector<18x1xf32>
    %285 = vector.broadcast %284 : vector<18x1xf32> to vector<18x32xf32>
    %286 = arith.mulf %281, %285 : vector<18x32xf32>
    %c3_200 = arith.constant 3 : index
    %c0_201 = arith.constant 0 : index
    %c0_202 = arith.constant 0 : index
    %287 = vector.load %arg4[%c3_200, %c0_201, %c0_202] : memref<6x1x32xf32, #tpu.memory_space<vmem>>, vector<1x1x32xf32>
    %288 = vector.shape_cast %287 : vector<1x1x32xf32> to vector<1x32xf32>
    %289 = vector.broadcast %288 : vector<1x32xf32> to vector<18x32xf32>
    %290 = arith.mulf %286, %289 : vector<18x32xf32>
    %c3_203 = arith.constant 3 : index
    %c0_204 = arith.constant 0 : index
    %c0_205 = arith.constant 0 : index
    %291 = vector.load %arg5[%c3_203, %c0_204, %c0_205] : memref<6x1x32xf32, #tpu.memory_space<vmem>>, vector<1x1x32xf32>
    %292 = vector.shape_cast %291 : vector<1x1x32xf32> to vector<1x32xf32>
    %293 = vector.broadcast %292 : vector<1x32xf32> to vector<18x32xf32>
    %294 = arith.addf %290, %293 : vector<18x32xf32>
    %c1_206 = arith.constant 1 : index
    %c0_207 = arith.constant 0 : index
    %c0_208 = arith.constant 0 : index
    %295 = vector.load %arg9[%c1_206, %c0_207, %c0_208] : memref<2x1x32xf32, #tpu.memory_space<vmem>>, vector<1x1x32xf32>
    %296 = vector.shape_cast %295 : vector<1x1x32xf32> to vector<1x32xf32>
    %c1_209 = arith.constant 1 : index
    %c0_210 = arith.constant 0 : index
    %c0_211 = arith.constant 0 : index
    %c0_212 = arith.constant 0 : index
    %297 = vector.load %arg6[%c1_209, %c0_210, %c0_211, %c0_212] : memref<2x12x32x8xf32, #tpu.memory_space<vmem>>, vector<1x1x32x8xf32>
    %298 = vector.shape_cast %297 : vector<1x1x32x8xf32> to vector<32x8xf32>
    %cst_213 = arith.constant dense<0.000000e+00> : vector<18x8xf32>
    %299 = tpu.matmul %294, %298, %cst_213 {dimension_numbers = #tpu.dot_dimension_numbers<[1], [0], [0], [1], [0, 0, 1, 1], [], []>} : vector<18x32xf32>, vector<32x8xf32>, vector<18x8xf32> -> vector<18x8xf32>
    %c1_214 = arith.constant 1 : index
    %c0_215 = arith.constant 0 : index
    %c0_216 = arith.constant 0 : index
    %c0_217 = arith.constant 0 : index
    %300 = vector.load %arg7[%c1_214, %c0_215, %c0_216, %c0_217] : memref<2x12x1x8xf32, #tpu.memory_space<vmem>>, vector<1x1x1x8xf32>
    %301 = vector.shape_cast %300 : vector<1x1x1x8xf32> to vector<1x8xf32>
    %302 = vector.broadcast %301 : vector<1x8xf32> to vector<18x8xf32>
    %303 = arith.addf %299, %302 : vector<18x8xf32>
    %c1_218 = arith.constant 1 : index
    %c4_219 = arith.constant 4 : index
    %c0_220 = arith.constant 0 : index
    %c0_221 = arith.constant 0 : index
    %304 = vector.load %arg6[%c1_218, %c4_219, %c0_220, %c0_221] : memref<2x12x32x8xf32, #tpu.memory_space<vmem>>, vector<1x1x32x8xf32>
    %305 = vector.shape_cast %304 : vector<1x1x32x8xf32> to vector<32x8xf32>
    %cst_222 = arith.constant dense<0.000000e+00> : vector<18x8xf32>
    %306 = tpu.matmul %294, %305, %cst_222 {dimension_numbers = #tpu.dot_dimension_numbers<[1], [0], [0], [1], [0, 0, 1, 1], [], []>} : vector<18x32xf32>, vector<32x8xf32>, vector<18x8xf32> -> vector<18x8xf32>
    %c1_223 = arith.constant 1 : index
    %c4_224 = arith.constant 4 : index
    %c0_225 = arith.constant 0 : index
    %c0_226 = arith.constant 0 : index
    %307 = vector.load %arg7[%c1_223, %c4_224, %c0_225, %c0_226] : memref<2x12x1x8xf32, #tpu.memory_space<vmem>>, vector<1x1x1x8xf32>
    %308 = vector.shape_cast %307 : vector<1x1x1x8xf32> to vector<1x8xf32>
    %309 = vector.broadcast %308 : vector<1x8xf32> to vector<18x8xf32>
    %310 = arith.addf %306, %309 : vector<18x8xf32>
    %c1_227 = arith.constant 1 : index
    %c8_228 = arith.constant 8 : index
    %c0_229 = arith.constant 0 : index
    %c0_230 = arith.constant 0 : index
    %311 = vector.load %arg6[%c1_227, %c8_228, %c0_229, %c0_230] : memref<2x12x32x8xf32, #tpu.memory_space<vmem>>, vector<1x1x32x8xf32>
    %312 = vector.shape_cast %311 : vector<1x1x32x8xf32> to vector<32x8xf32>
    %cst_231 = arith.constant dense<0.000000e+00> : vector<18x8xf32>
    %313 = tpu.matmul %294, %312, %cst_231 {dimension_numbers = #tpu.dot_dimension_numbers<[1], [0], [0], [1], [0, 0, 1, 1], [], []>} : vector<18x32xf32>, vector<32x8xf32>, vector<18x8xf32> -> vector<18x8xf32>
    %c1_232 = arith.constant 1 : index
    %c8_233 = arith.constant 8 : index
    %c0_234 = arith.constant 0 : index
    %c0_235 = arith.constant 0 : index
    %314 = vector.load %arg7[%c1_232, %c8_233, %c0_234, %c0_235] : memref<2x12x1x8xf32, #tpu.memory_space<vmem>>, vector<1x1x1x8xf32>
    %315 = vector.shape_cast %314 : vector<1x1x1x8xf32> to vector<1x8xf32>
    %316 = vector.broadcast %315 : vector<1x8xf32> to vector<18x8xf32>
    %317 = arith.addf %313, %316 : vector<18x8xf32>
    "tpu.trace_start"() <{level = 10 : i32, message = "qd,kd->qk"}> : () -> ()
    %cst_236 = arith.constant dense<0.000000e+00> : vector<18x18xf32>
    %318 = tpu.matmul %303, %310, %cst_236 {dimension_numbers = #tpu.dot_dimension_numbers<[1], [1], [0], [0], [0, 0, 1, 0], [], []>} : vector<18x8xf32>, vector<18x8xf32>, vector<18x18xf32> -> vector<18x18xf32>
    "tpu.trace_stop"() : () -> ()
    %cst_237 = arith.constant 0.353553385 : f32
    %319 = vector.broadcast %cst_237 : f32 to vector<18x18xf32>
    %320 = arith.mulf %318, %319 : vector<18x18xf32>
    %321 = arith.addf %320, %29 : vector<18x18xf32>
    %cst_238 = arith.constant dense<0xFF800000> : vector<18xf32>
    %322 = vector.multi_reduction <maximumf>, %321, %cst_238 [1] : vector<18x18xf32> to vector<18xf32>
    %323 = vector.shape_cast %322 : vector<18xf32> to vector<18x1xf32>
    %324 = vector.broadcast %323 : vector<18x1xf32> to vector<18x18xf32>
    %325 = arith.subf %321, %324 : vector<18x18xf32>
    %326 = math.exp %325 : vector<18x18xf32>
    %cst_239 = arith.constant dense<0.000000e+00> : vector<18xf32>
    %327 = vector.multi_reduction <add>, %326, %cst_239 [1] : vector<18x18xf32> to vector<18xf32>
    %328 = vector.shape_cast %327 : vector<18xf32> to vector<18x1xf32>
    %329 = tpu.reciprocal %328 {approx = true} : vector<18x1xf32> -> vector<18x1xf32>
    %330 = vector.broadcast %329 : vector<18x1xf32> to vector<18x18xf32>
    %331 = arith.mulf %326, %330 : vector<18x18xf32>
    %cst_240 = arith.constant dense<0.000000e+00> : vector<18x8xf32>
    %332 = tpu.matmul %331, %317, %cst_240 {dimension_numbers = #tpu.dot_dimension_numbers<[1], [0], [0], [1], [0, 0, 1, 1], [], []>} : vector<18x18xf32>, vector<18x8xf32>, vector<18x8xf32> -> vector<18x8xf32>
    %c1_241 = arith.constant 1 : index
    %c0_242 = arith.constant 0 : index
    %c0_243 = arith.constant 0 : index
    %c0_244 = arith.constant 0 : index
    %333 = vector.load %arg8[%c1_241, %c0_242, %c0_243, %c0_244] : memref<2x4x8x32xf32, #tpu.memory_space<vmem>>, vector<1x1x8x32xf32>
    %334 = vector.shape_cast %333 : vector<1x1x8x32xf32> to vector<8x32xf32>
    %cst_245 = arith.constant dense<0.000000e+00> : vector<18x32xf32>
    %335 = tpu.matmul %332, %334, %cst_245 {dimension_numbers = #tpu.dot_dimension_numbers<[1], [0], [0], [1], [0, 0, 1, 1], [], []>} : vector<18x8xf32>, vector<8x32xf32>, vector<18x32xf32> -> vector<18x32xf32>
    %336 = vector.broadcast %296 : vector<1x32xf32> to vector<18x32xf32>
    %337 = arith.addf %336, %335 : vector<18x32xf32>
    %c1_246 = arith.constant 1 : index
    %c1_247 = arith.constant 1 : index
    %c0_248 = arith.constant 0 : index
    %c0_249 = arith.constant 0 : index
    %338 = vector.load %arg6[%c1_246, %c1_247, %c0_248, %c0_249] : memref<2x12x32x8xf32, #tpu.memory_space<vmem>>, vector<1x1x32x8xf32>
    %339 = vector.shape_cast %338 : vector<1x1x32x8xf32> to vector<32x8xf32>
    %cst_250 = arith.constant dense<0.000000e+00> : vector<18x8xf32>
    %340 = tpu.matmul %294, %339, %cst_250 {dimension_numbers = #tpu.dot_dimension_numbers<[1], [0], [0], [1], [0, 0, 1, 1], [], []>} : vector<18x32xf32>, vector<32x8xf32>, vector<18x8xf32> -> vector<18x8xf32>
    %c1_251 = arith.constant 1 : index
    %c1_252 = arith.constant 1 : index
    %c0_253 = arith.constant 0 : index
    %c0_254 = arith.constant 0 : index
    %341 = vector.load %arg7[%c1_251, %c1_252, %c0_253, %c0_254] : memref<2x12x1x8xf32, #tpu.memory_space<vmem>>, vector<1x1x1x8xf32>
    %342 = vector.shape_cast %341 : vector<1x1x1x8xf32> to vector<1x8xf32>
    %343 = vector.broadcast %342 : vector<1x8xf32> to vector<18x8xf32>
    %344 = arith.addf %340, %343 : vector<18x8xf32>
    %c1_255 = arith.constant 1 : index
    %c5_256 = arith.constant 5 : index
    %c0_257 = arith.constant 0 : index
    %c0_258 = arith.constant 0 : index
    %345 = vector.load %arg6[%c1_255, %c5_256, %c0_257, %c0_258] : memref<2x12x32x8xf32, #tpu.memory_space<vmem>>, vector<1x1x32x8xf32>
    %346 = vector.shape_cast %345 : vector<1x1x32x8xf32> to vector<32x8xf32>
    %cst_259 = arith.constant dense<0.000000e+00> : vector<18x8xf32>
    %347 = tpu.matmul %294, %346, %cst_259 {dimension_numbers = #tpu.dot_dimension_numbers<[1], [0], [0], [1], [0, 0, 1, 1], [], []>} : vector<18x32xf32>, vector<32x8xf32>, vector<18x8xf32> -> vector<18x8xf32>
    %c1_260 = arith.constant 1 : index
    %c5_261 = arith.constant 5 : index
    %c0_262 = arith.constant 0 : index
    %c0_263 = arith.constant 0 : index
    %348 = vector.load %arg7[%c1_260, %c5_261, %c0_262, %c0_263] : memref<2x12x1x8xf32, #tpu.memory_space<vmem>>, vector<1x1x1x8xf32>
    %349 = vector.shape_cast %348 : vector<1x1x1x8xf32> to vector<1x8xf32>
    %350 = vector.broadcast %349 : vector<1x8xf32> to vector<18x8xf32>
    %351 = arith.addf %347, %350 : vector<18x8xf32>
    %c1_264 = arith.constant 1 : index
    %c9_265 = arith.constant 9 : index
    %c0_266 = arith.constant 0 : index
    %c0_267 = arith.constant 0 : index
    %352 = vector.load %arg6[%c1_264, %c9_265, %c0_266, %c0_267] : memref<2x12x32x8xf32, #tpu.memory_space<vmem>>, vector<1x1x32x8xf32>
    %353 = vector.shape_cast %352 : vector<1x1x32x8xf32> to vector<32x8xf32>
    %cst_268 = arith.constant dense<0.000000e+00> : vector<18x8xf32>
    %354 = tpu.matmul %294, %353, %cst_268 {dimension_numbers = #tpu.dot_dimension_numbers<[1], [0], [0], [1], [0, 0, 1, 1], [], []>} : vector<18x32xf32>, vector<32x8xf32>, vector<18x8xf32> -> vector<18x8xf32>
    %c1_269 = arith.constant 1 : index
    %c9_270 = arith.constant 9 : index
    %c0_271 = arith.constant 0 : index
    %c0_272 = arith.constant 0 : index
    %355 = vector.load %arg7[%c1_269, %c9_270, %c0_271, %c0_272] : memref<2x12x1x8xf32, #tpu.memory_space<vmem>>, vector<1x1x1x8xf32>
    %356 = vector.shape_cast %355 : vector<1x1x1x8xf32> to vector<1x8xf32>
    %357 = vector.broadcast %356 : vector<1x8xf32> to vector<18x8xf32>
    %358 = arith.addf %354, %357 : vector<18x8xf32>
    "tpu.trace_start"() <{level = 10 : i32, message = "qd,kd->qk"}> : () -> ()
    %cst_273 = arith.constant dense<0.000000e+00> : vector<18x18xf32>
    %359 = tpu.matmul %344, %351, %cst_273 {dimension_numbers = #tpu.dot_dimension_numbers<[1], [1], [0], [0], [0, 0, 1, 0], [], []>} : vector<18x8xf32>, vector<18x8xf32>, vector<18x18xf32> -> vector<18x18xf32>
    "tpu.trace_stop"() : () -> ()
    %cst_274 = arith.constant 0.353553385 : f32
    %360 = vector.broadcast %cst_274 : f32 to vector<18x18xf32>
    %361 = arith.mulf %359, %360 : vector<18x18xf32>
    %362 = arith.addf %361, %29 : vector<18x18xf32>
    %cst_275 = arith.constant dense<0xFF800000> : vector<18xf32>
    %363 = vector.multi_reduction <maximumf>, %362, %cst_275 [1] : vector<18x18xf32> to vector<18xf32>
    %364 = vector.shape_cast %363 : vector<18xf32> to vector<18x1xf32>
    %365 = vector.broadcast %364 : vector<18x1xf32> to vector<18x18xf32>
    %366 = arith.subf %362, %365 : vector<18x18xf32>
    %367 = math.exp %366 : vector<18x18xf32>
    %cst_276 = arith.constant dense<0.000000e+00> : vector<18xf32>
    %368 = vector.multi_reduction <add>, %367, %cst_276 [1] : vector<18x18xf32> to vector<18xf32>
    %369 = vector.shape_cast %368 : vector<18xf32> to vector<18x1xf32>
    %370 = tpu.reciprocal %369 {approx = true} : vector<18x1xf32> -> vector<18x1xf32>
    %371 = vector.broadcast %370 : vector<18x1xf32> to vector<18x18xf32>
    %372 = arith.mulf %367, %371 : vector<18x18xf32>
    %cst_277 = arith.constant dense<0.000000e+00> : vector<18x8xf32>
    %373 = tpu.matmul %372, %358, %cst_277 {dimension_numbers = #tpu.dot_dimension_numbers<[1], [0], [0], [1], [0, 0, 1, 1], [], []>} : vector<18x18xf32>, vector<18x8xf32>, vector<18x8xf32> -> vector<18x8xf32>
    %c1_278 = arith.constant 1 : index
    %c1_279 = arith.constant 1 : index
    %c0_280 = arith.constant 0 : index
    %c0_281 = arith.constant 0 : index
    %374 = vector.load %arg8[%c1_278, %c1_279, %c0_280, %c0_281] : memref<2x4x8x32xf32, #tpu.memory_space<vmem>>, vector<1x1x8x32xf32>
    %375 = vector.shape_cast %374 : vector<1x1x8x32xf32> to vector<8x32xf32>
    %cst_282 = arith.constant dense<0.000000e+00> : vector<18x32xf32>
    %376 = tpu.matmul %373, %375, %cst_282 {dimension_numbers = #tpu.dot_dimension_numbers<[1], [0], [0], [1], [0, 0, 1, 1], [], []>} : vector<18x8xf32>, vector<8x32xf32>, vector<18x32xf32> -> vector<18x32xf32>
    %377 = arith.addf %337, %376 : vector<18x32xf32>
    %c1_283 = arith.constant 1 : index
    %c2_284 = arith.constant 2 : index
    %c0_285 = arith.constant 0 : index
    %c0_286 = arith.constant 0 : index
    %378 = vector.load %arg6[%c1_283, %c2_284, %c0_285, %c0_286] : memref<2x12x32x8xf32, #tpu.memory_space<vmem>>, vector<1x1x32x8xf32>
    %379 = vector.shape_cast %378 : vector<1x1x32x8xf32> to vector<32x8xf32>
    %cst_287 = arith.constant dense<0.000000e+00> : vector<18x8xf32>
    %380 = tpu.matmul %294, %379, %cst_287 {dimension_numbers = #tpu.dot_dimension_numbers<[1], [0], [0], [1], [0, 0, 1, 1], [], []>} : vector<18x32xf32>, vector<32x8xf32>, vector<18x8xf32> -> vector<18x8xf32>
    %c1_288 = arith.constant 1 : index
    %c2_289 = arith.constant 2 : index
    %c0_290 = arith.constant 0 : index
    %c0_291 = arith.constant 0 : index
    %381 = vector.load %arg7[%c1_288, %c2_289, %c0_290, %c0_291] : memref<2x12x1x8xf32, #tpu.memory_space<vmem>>, vector<1x1x1x8xf32>
    %382 = vector.shape_cast %381 : vector<1x1x1x8xf32> to vector<1x8xf32>
    %383 = vector.broadcast %382 : vector<1x8xf32> to vector<18x8xf32>
    %384 = arith.addf %380, %383 : vector<18x8xf32>
    %c1_292 = arith.constant 1 : index
    %c6_293 = arith.constant 6 : index
    %c0_294 = arith.constant 0 : index
    %c0_295 = arith.constant 0 : index
    %385 = vector.load %arg6[%c1_292, %c6_293, %c0_294, %c0_295] : memref<2x12x32x8xf32, #tpu.memory_space<vmem>>, vector<1x1x32x8xf32>
    %386 = vector.shape_cast %385 : vector<1x1x32x8xf32> to vector<32x8xf32>
    %cst_296 = arith.constant dense<0.000000e+00> : vector<18x8xf32>
    %387 = tpu.matmul %294, %386, %cst_296 {dimension_numbers = #tpu.dot_dimension_numbers<[1], [0], [0], [1], [0, 0, 1, 1], [], []>} : vector<18x32xf32>, vector<32x8xf32>, vector<18x8xf32> -> vector<18x8xf32>
    %c1_297 = arith.constant 1 : index
    %c6_298 = arith.constant 6 : index
    %c0_299 = arith.constant 0 : index
    %c0_300 = arith.constant 0 : index
    %388 = vector.load %arg7[%c1_297, %c6_298, %c0_299, %c0_300] : memref<2x12x1x8xf32, #tpu.memory_space<vmem>>, vector<1x1x1x8xf32>
    %389 = vector.shape_cast %388 : vector<1x1x1x8xf32> to vector<1x8xf32>
    %390 = vector.broadcast %389 : vector<1x8xf32> to vector<18x8xf32>
    %391 = arith.addf %387, %390 : vector<18x8xf32>
    %c1_301 = arith.constant 1 : index
    %c10_302 = arith.constant 10 : index
    %c0_303 = arith.constant 0 : index
    %c0_304 = arith.constant 0 : index
    %392 = vector.load %arg6[%c1_301, %c10_302, %c0_303, %c0_304] : memref<2x12x32x8xf32, #tpu.memory_space<vmem>>, vector<1x1x32x8xf32>
    %393 = vector.shape_cast %392 : vector<1x1x32x8xf32> to vector<32x8xf32>
    %cst_305 = arith.constant dense<0.000000e+00> : vector<18x8xf32>
    %394 = tpu.matmul %294, %393, %cst_305 {dimension_numbers = #tpu.dot_dimension_numbers<[1], [0], [0], [1], [0, 0, 1, 1], [], []>} : vector<18x32xf32>, vector<32x8xf32>, vector<18x8xf32> -> vector<18x8xf32>
    %c1_306 = arith.constant 1 : index
    %c10_307 = arith.constant 10 : index
    %c0_308 = arith.constant 0 : index
    %c0_309 = arith.constant 0 : index
    %395 = vector.load %arg7[%c1_306, %c10_307, %c0_308, %c0_309] : memref<2x12x1x8xf32, #tpu.memory_space<vmem>>, vector<1x1x1x8xf32>
    %396 = vector.shape_cast %395 : vector<1x1x1x8xf32> to vector<1x8xf32>
    %397 = vector.broadcast %396 : vector<1x8xf32> to vector<18x8xf32>
    %398 = arith.addf %394, %397 : vector<18x8xf32>
    "tpu.trace_start"() <{level = 10 : i32, message = "qd,kd->qk"}> : () -> ()
    %cst_310 = arith.constant dense<0.000000e+00> : vector<18x18xf32>
    %399 = tpu.matmul %384, %391, %cst_310 {dimension_numbers = #tpu.dot_dimension_numbers<[1], [1], [0], [0], [0, 0, 1, 0], [], []>} : vector<18x8xf32>, vector<18x8xf32>, vector<18x18xf32> -> vector<18x18xf32>
    "tpu.trace_stop"() : () -> ()
    %cst_311 = arith.constant 0.353553385 : f32
    %400 = vector.broadcast %cst_311 : f32 to vector<18x18xf32>
    %401 = arith.mulf %399, %400 : vector<18x18xf32>
    %402 = arith.addf %401, %29 : vector<18x18xf32>
    %cst_312 = arith.constant dense<0xFF800000> : vector<18xf32>
    %403 = vector.multi_reduction <maximumf>, %402, %cst_312 [1] : vector<18x18xf32> to vector<18xf32>
    %404 = vector.shape_cast %403 : vector<18xf32> to vector<18x1xf32>
    %405 = vector.broadcast %404 : vector<18x1xf32> to vector<18x18xf32>
    %406 = arith.subf %402, %405 : vector<18x18xf32>
    %407 = math.exp %406 : vector<18x18xf32>
    %cst_313 = arith.constant dense<0.000000e+00> : vector<18xf32>
    %408 = vector.multi_reduction <add>, %407, %cst_313 [1] : vector<18x18xf32> to vector<18xf32>
    %409 = vector.shape_cast %408 : vector<18xf32> to vector<18x1xf32>
    %410 = tpu.reciprocal %409 {approx = true} : vector<18x1xf32> -> vector<18x1xf32>
    %411 = vector.broadcast %410 : vector<18x1xf32> to vector<18x18xf32>
    %412 = arith.mulf %407, %411 : vector<18x18xf32>
    %cst_314 = arith.constant dense<0.000000e+00> : vector<18x8xf32>
    %413 = tpu.matmul %412, %398, %cst_314 {dimension_numbers = #tpu.dot_dimension_numbers<[1], [0], [0], [1], [0, 0, 1, 1], [], []>} : vector<18x18xf32>, vector<18x8xf32>, vector<18x8xf32> -> vector<18x8xf32>
    %c1_315 = arith.constant 1 : index
    %c2_316 = arith.constant 2 : index
    %c0_317 = arith.constant 0 : index
    %c0_318 = arith.constant 0 : index
    %414 = vector.load %arg8[%c1_315, %c2_316, %c0_317, %c0_318] : memref<2x4x8x32xf32, #tpu.memory_space<vmem>>, vector<1x1x8x32xf32>
    %415 = vector.shape_cast %414 : vector<1x1x8x32xf32> to vector<8x32xf32>
    %cst_319 = arith.constant dense<0.000000e+00> : vector<18x32xf32>
    %416 = tpu.matmul %413, %415, %cst_319 {dimension_numbers = #tpu.dot_dimension_numbers<[1], [0], [0], [1], [0, 0, 1, 1], [], []>} : vector<18x8xf32>, vector<8x32xf32>, vector<18x32xf32> -> vector<18x32xf32>
    %417 = arith.addf %377, %416 : vector<18x32xf32>
    %c1_320 = arith.constant 1 : index
    %c3_321 = arith.constant 3 : index
    %c0_322 = arith.constant 0 : index
    %c0_323 = arith.constant 0 : index
    %418 = vector.load %arg6[%c1_320, %c3_321, %c0_322, %c0_323] : memref<2x12x32x8xf32, #tpu.memory_space<vmem>>, vector<1x1x32x8xf32>
    %419 = vector.shape_cast %418 : vector<1x1x32x8xf32> to vector<32x8xf32>
    %cst_324 = arith.constant dense<0.000000e+00> : vector<18x8xf32>
    %420 = tpu.matmul %294, %419, %cst_324 {dimension_numbers = #tpu.dot_dimension_numbers<[1], [0], [0], [1], [0, 0, 1, 1], [], []>} : vector<18x32xf32>, vector<32x8xf32>, vector<18x8xf32> -> vector<18x8xf32>
    %c1_325 = arith.constant 1 : index
    %c3_326 = arith.constant 3 : index
    %c0_327 = arith.constant 0 : index
    %c0_328 = arith.constant 0 : index
    %421 = vector.load %arg7[%c1_325, %c3_326, %c0_327, %c0_328] : memref<2x12x1x8xf32, #tpu.memory_space<vmem>>, vector<1x1x1x8xf32>
    %422 = vector.shape_cast %421 : vector<1x1x1x8xf32> to vector<1x8xf32>
    %423 = vector.broadcast %422 : vector<1x8xf32> to vector<18x8xf32>
    %424 = arith.addf %420, %423 : vector<18x8xf32>
    %c1_329 = arith.constant 1 : index
    %c7_330 = arith.constant 7 : index
    %c0_331 = arith.constant 0 : index
    %c0_332 = arith.constant 0 : index
    %425 = vector.load %arg6[%c1_329, %c7_330, %c0_331, %c0_332] : memref<2x12x32x8xf32, #tpu.memory_space<vmem>>, vector<1x1x32x8xf32>
    %426 = vector.shape_cast %425 : vector<1x1x32x8xf32> to vector<32x8xf32>
    %cst_333 = arith.constant dense<0.000000e+00> : vector<18x8xf32>
    %427 = tpu.matmul %294, %426, %cst_333 {dimension_numbers = #tpu.dot_dimension_numbers<[1], [0], [0], [1], [0, 0, 1, 1], [], []>} : vector<18x32xf32>, vector<32x8xf32>, vector<18x8xf32> -> vector<18x8xf32>
    %c1_334 = arith.constant 1 : index
    %c7_335 = arith.constant 7 : index
    %c0_336 = arith.constant 0 : index
    %c0_337 = arith.constant 0 : index
    %428 = vector.load %arg7[%c1_334, %c7_335, %c0_336, %c0_337] : memref<2x12x1x8xf32, #tpu.memory_space<vmem>>, vector<1x1x1x8xf32>
    %429 = vector.shape_cast %428 : vector<1x1x1x8xf32> to vector<1x8xf32>
    %430 = vector.broadcast %429 : vector<1x8xf32> to vector<18x8xf32>
    %431 = arith.addf %427, %430 : vector<18x8xf32>
    %c1_338 = arith.constant 1 : index
    %c11_339 = arith.constant 11 : index
    %c0_340 = arith.constant 0 : index
    %c0_341 = arith.constant 0 : index
    %432 = vector.load %arg6[%c1_338, %c11_339, %c0_340, %c0_341] : memref<2x12x32x8xf32, #tpu.memory_space<vmem>>, vector<1x1x32x8xf32>
    %433 = vector.shape_cast %432 : vector<1x1x32x8xf32> to vector<32x8xf32>
    %cst_342 = arith.constant dense<0.000000e+00> : vector<18x8xf32>
    %434 = tpu.matmul %294, %433, %cst_342 {dimension_numbers = #tpu.dot_dimension_numbers<[1], [0], [0], [1], [0, 0, 1, 1], [], []>} : vector<18x32xf32>, vector<32x8xf32>, vector<18x8xf32> -> vector<18x8xf32>
    %c1_343 = arith.constant 1 : index
    %c11_344 = arith.constant 11 : index
    %c0_345 = arith.constant 0 : index
    %c0_346 = arith.constant 0 : index
    %435 = vector.load %arg7[%c1_343, %c11_344, %c0_345, %c0_346] : memref<2x12x1x8xf32, #tpu.memory_space<vmem>>, vector<1x1x1x8xf32>
    %436 = vector.shape_cast %435 : vector<1x1x1x8xf32> to vector<1x8xf32>
    %437 = vector.broadcast %436 : vector<1x8xf32> to vector<18x8xf32>
    %438 = arith.addf %434, %437 : vector<18x8xf32>
    "tpu.trace_start"() <{level = 10 : i32, message = "qd,kd->qk"}> : () -> ()
    %cst_347 = arith.constant dense<0.000000e+00> : vector<18x18xf32>
    %439 = tpu.matmul %424, %431, %cst_347 {dimension_numbers = #tpu.dot_dimension_numbers<[1], [1], [0], [0], [0, 0, 1, 0], [], []>} : vector<18x8xf32>, vector<18x8xf32>, vector<18x18xf32> -> vector<18x18xf32>
    "tpu.trace_stop"() : () -> ()
    %cst_348 = arith.constant 0.353553385 : f32
    %440 = vector.broadcast %cst_348 : f32 to vector<18x18xf32>
    %441 = arith.mulf %439, %440 : vector<18x18xf32>
    %442 = arith.addf %441, %29 : vector<18x18xf32>
    %cst_349 = arith.constant dense<0xFF800000> : vector<18xf32>
    %443 = vector.multi_reduction <maximumf>, %442, %cst_349 [1] : vector<18x18xf32> to vector<18xf32>
    %444 = vector.shape_cast %443 : vector<18xf32> to vector<18x1xf32>
    %445 = vector.broadcast %444 : vector<18x1xf32> to vector<18x18xf32>
    %446 = arith.subf %442, %445 : vector<18x18xf32>
    %447 = math.exp %446 : vector<18x18xf32>
    %cst_350 = arith.constant dense<0.000000e+00> : vector<18xf32>
    %448 = vector.multi_reduction <add>, %447, %cst_350 [1] : vector<18x18xf32> to vector<18xf32>
    %449 = vector.shape_cast %448 : vector<18xf32> to vector<18x1xf32>
    %450 = tpu.reciprocal %449 {approx = true} : vector<18x1xf32> -> vector<18x1xf32>
    %451 = vector.broadcast %450 : vector<18x1xf32> to vector<18x18xf32>
    %452 = arith.mulf %447, %451 : vector<18x18xf32>
    %cst_351 = arith.constant dense<0.000000e+00> : vector<18x8xf32>
    %453 = tpu.matmul %452, %438, %cst_351 {dimension_numbers = #tpu.dot_dimension_numbers<[1], [0], [0], [1], [0, 0, 1, 1], [], []>} : vector<18x18xf32>, vector<18x8xf32>, vector<18x8xf32> -> vector<18x8xf32>
    %c1_352 = arith.constant 1 : index
    %c3_353 = arith.constant 3 : index
    %c0_354 = arith.constant 0 : index
    %c0_355 = arith.constant 0 : index
    %454 = vector.load %arg8[%c1_352, %c3_353, %c0_354, %c0_355] : memref<2x4x8x32xf32, #tpu.memory_space<vmem>>, vector<1x1x8x32xf32>
    %455 = vector.shape_cast %454 : vector<1x1x8x32xf32> to vector<8x32xf32>
    %cst_356 = arith.constant dense<0.000000e+00> : vector<18x32xf32>
    %456 = tpu.matmul %453, %455, %cst_356 {dimension_numbers = #tpu.dot_dimension_numbers<[1], [0], [0], [1], [0, 0, 1, 1], [], []>} : vector<18x8xf32>, vector<8x32xf32>, vector<18x32xf32> -> vector<18x32xf32>
    %457 = arith.addf %417, %456 : vector<18x32xf32>
    %458 = arith.addf %268, %457 : vector<18x32xf32>
    %cst_357 = arith.constant dense<0.000000e+00> : vector<18xf32>
    %459 = vector.multi_reduction <add>, %458, %cst_357 [1] : vector<18x32xf32> to vector<18xf32>
    %460 = vector.shape_cast %459 : vector<18xf32> to vector<18x1xf32>
    %cst_358 = arith.constant 3.200000e+01 : f32
    %461 = vector.broadcast %cst_358 : f32 to vector<18x1xf32>
    %462 = arith.divf %460, %461 : vector<18x1xf32>
    %463 = vector.broadcast %462 : vector<18x1xf32> to vector<18x32xf32>
    %464 = arith.subf %458, %463 : vector<18x32xf32>
    %465 = arith.mulf %464, %464 : vector<18x32xf32>
    %cst_359 = arith.constant dense<0.000000e+00> : vector<18xf32>
    %466 = vector.multi_reduction <add>, %465, %cst_359 [1] : vector<18x32xf32> to vector<18xf32>
    %467 = vector.shape_cast %466 : vector<18xf32> to vector<18x1xf32>
    %cst_360 = arith.constant 3.200000e+01 : f32
    %468 = vector.broadcast %cst_360 : f32 to vector<18x1xf32>
    %469 = arith.divf %467, %468 : vector<18x1xf32>
    %470 = vector.broadcast %462 : vector<18x1xf32> to vector<18x32xf32>
    %471 = arith.subf %458, %470 : vector<18x32xf32>
    %cst_361 = arith.constant 9.99999974E-6 : f32
    %472 = vector.broadcast %cst_361 : f32 to vector<18x1xf32>
    %473 = arith.addf %469, %472 : vector<18x1xf32>
    %474 = math.rsqrt %473 : vector<18x1xf32>
    %475 = vector.broadcast %474 : vector<18x1xf32> to vector<18x32xf32>
    %476 = arith.mulf %471, %475 : vector<18x32xf32>
    %c4_362 = arith.constant 4 : index
    %c0_363 = arith.constant 0 : index
    %c0_364 = arith.constant 0 : index
    %477 = vector.load %arg4[%c4_362, %c0_363, %c0_364] : memref<6x1x32xf32, #tpu.memory_space<vmem>>, vector<1x1x32xf32>
    %478 = vector.shape_cast %477 : vector<1x1x32xf32> to vector<1x32xf32>
    %479 = vector.broadcast %478 : vector<1x32xf32> to vector<18x32xf32>
    %480 = arith.mulf %476, %479 : vector<18x32xf32>
    %c4_365 = arith.constant 4 : index
    %c0_366 = arith.constant 0 : index
    %c0_367 = arith.constant 0 : index
    %481 = vector.load %arg5[%c4_365, %c0_366, %c0_367] : memref<6x1x32xf32, #tpu.memory_space<vmem>>, vector<1x1x32xf32>
    %482 = vector.shape_cast %481 : vector<1x1x32xf32> to vector<1x32xf32>
    %483 = vector.broadcast %482 : vector<1x32xf32> to vector<18x32xf32>
    %484 = arith.addf %480, %483 : vector<18x32xf32>
    %c1_368 = arith.constant 1 : index
    %c0_369 = arith.constant 0 : index
    %c0_370 = arith.constant 0 : index
    %485 = vector.load %arg10[%c1_368, %c0_369, %c0_370] : memref<2x32x128xf32, #tpu.memory_space<vmem>>, vector<1x32x128xf32>
    %486 = vector.shape_cast %485 : vector<1x32x128xf32> to vector<32x128xf32>
    %cst_371 = arith.constant dense<0.000000e+00> : vector<18x128xf32>
    %487 = tpu.matmul %484, %486, %cst_371 {dimension_numbers = #tpu.dot_dimension_numbers<[1], [0], [0], [1], [0, 0, 1, 1], [], []>} : vector<18x32xf32>, vector<32x128xf32>, vector<18x128xf32> -> vector<18x128xf32>
    %c1_372 = arith.constant 1 : index
    %c0_373 = arith.constant 0 : index
    %c0_374 = arith.constant 0 : index
    %488 = vector.load %arg11[%c1_372, %c0_373, %c0_374] : memref<2x1x128xf32, #tpu.memory_space<vmem>>, vector<1x1x128xf32>
    %489 = vector.shape_cast %488 : vector<1x1x128xf32> to vector<1x128xf32>
    %490 = vector.broadcast %489 : vector<1x128xf32> to vector<18x128xf32>
    %491 = arith.addf %487, %490 : vector<18x128xf32>
    %cst_375 = arith.constant -1.702000e+00 : f32
    %492 = vector.broadcast %cst_375 : f32 to vector<18x128xf32>
    %493 = arith.mulf %492, %491 : vector<18x128xf32>
    %494 = math.exp %493 : vector<18x128xf32>
    %cst_376 = arith.constant 1.000000e+00 : f32
    %495 = vector.broadcast %cst_376 : f32 to vector<18x128xf32>
    %496 = arith.addf %495, %494 : vector<18x128xf32>
    %cst_377 = arith.constant 1.000000e+00 : f32
    %497 = vector.broadcast %cst_377 : f32 to vector<18x128xf32>
    %498 = arith.divf %497, %496 : vector<18x128xf32>
    %499 = arith.mulf %491, %498 : vector<18x128xf32>
    %c1_378 = arith.constant 1 : index
    %c0_379 = arith.constant 0 : index
    %c0_380 = arith.constant 0 : index
    %500 = vector.load %arg12[%c1_378, %c0_379, %c0_380] : memref<2x128x32xf32, #tpu.memory_space<vmem>>, vector<1x128x32xf32>
    %501 = vector.shape_cast %500 : vector<1x128x32xf32> to vector<128x32xf32>
    %cst_381 = arith.constant dense<0.000000e+00> : vector<18x32xf32>
    %502 = tpu.matmul %499, %501, %cst_381 {dimension_numbers = #tpu.dot_dimension_numbers<[1], [0], [0], [1], [0, 0, 1, 1], [], []>} : vector<18x128xf32>, vector<128x32xf32>, vector<18x32xf32> -> vector<18x32xf32>
    %503 = arith.addf %458, %502 : vector<18x32xf32>
    %c1_382 = arith.constant 1 : index
    %c0_383 = arith.constant 0 : index
    %c0_384 = arith.constant 0 : index
    %504 = vector.load %arg13[%c1_382, %c0_383, %c0_384] : memref<2x1x32xf32, #tpu.memory_space<vmem>>, vector<1x1x32xf32>
    %505 = vector.shape_cast %504 : vector<1x1x32xf32> to vector<1x32xf32>
    %506 = vector.broadcast %505 : vector<1x32xf32> to vector<18x32xf32>
    %507 = arith.addf %503, %506 : vector<18x32xf32>
    %c0_385 = arith.constant 0 : index
    %c0_386 = arith.constant 0 : index
    %508 = vector.load %arg15[%c0_385, %c0_386] : memref<2x18xf32, #tpu.memory_space<vmem>>, vector<2x18xf32>
    %cst_387 = arith.constant dense<0.000000e+00> : vector<2x32xf32>
    %509 = tpu.matmul %508, %507, %cst_387 {dimension_numbers = #tpu.dot_dimension_numbers<[1], [0], [0], [1], [0, 0, 1, 1], [], []>} : vector<2x18xf32>, vector<18x32xf32>, vector<2x32xf32> -> vector<2x32xf32>
    %cst_388 = arith.constant dense<0.000000e+00> : vector<2xf32>
    %510 = vector.multi_reduction <add>, %509, %cst_388 [1] : vector<2x32xf32> to vector<2xf32>
    %511 = vector.shape_cast %510 : vector<2xf32> to vector<2x1xf32>
    %cst_389 = arith.constant 3.200000e+01 : f32
    %512 = vector.broadcast %cst_389 : f32 to vector<2x1xf32>
    %513 = arith.divf %511, %512 : vector<2x1xf32>
    %514 = vector.broadcast %513 : vector<2x1xf32> to vector<2x32xf32>
    %515 = arith.subf %509, %514 : vector<2x32xf32>
    %516 = arith.mulf %515, %515 : vector<2x32xf32>
    %cst_390 = arith.constant dense<0.000000e+00> : vector<2xf32>
    %517 = vector.multi_reduction <add>, %516, %cst_390 [1] : vector<2x32xf32> to vector<2xf32>
    %518 = vector.shape_cast %517 : vector<2xf32> to vector<2x1xf32>
    %cst_391 = arith.constant 3.200000e+01 : f32
    %519 = vector.broadcast %cst_391 : f32 to vector<2x1xf32>
    %520 = arith.divf %518, %519 : vector<2x1xf32>
    %521 = vector.broadcast %513 : vector<2x1xf32> to vector<2x32xf32>
    %522 = arith.subf %509, %521 : vector<2x32xf32>
    %cst_392 = arith.constant 9.99999974E-6 : f32
    %523 = vector.broadcast %cst_392 : f32 to vector<2x1xf32>
    %524 = arith.addf %520, %523 : vector<2x1xf32>
    %525 = math.rsqrt %524 : vector<2x1xf32>
    %526 = vector.broadcast %525 : vector<2x1xf32> to vector<2x32xf32>
    %527 = arith.mulf %522, %526 : vector<2x32xf32>
    %c5_393 = arith.constant 5 : index
    %c0_394 = arith.constant 0 : index
    %c0_395 = arith.constant 0 : index
    %528 = vector.load %arg4[%c5_393, %c0_394, %c0_395] : memref<6x1x32xf32, #tpu.memory_space<vmem>>, vector<1x1x32xf32>
    %529 = vector.shape_cast %528 : vector<1x1x32xf32> to vector<1x32xf32>
    %530 = vector.broadcast %529 : vector<1x32xf32> to vector<2x32xf32>
    %531 = arith.mulf %527, %530 : vector<2x32xf32>
    %c5_396 = arith.constant 5 : index
    %c0_397 = arith.constant 0 : index
    %c0_398 = arith.constant 0 : index
    %532 = vector.load %arg5[%c5_396, %c0_397, %c0_398] : memref<6x1x32xf32, #tpu.memory_space<vmem>>, vector<1x1x32xf32>
    %533 = vector.shape_cast %532 : vector<1x1x32xf32> to vector<1x32xf32>
    %534 = vector.broadcast %533 : vector<1x32xf32> to vector<2x32xf32>
    %535 = arith.addf %531, %534 : vector<2x32xf32>
    %c0_399 = arith.constant 0 : index
    %c0_400 = arith.constant 0 : index
    %536 = vector.load %arg16[%c0_399, %c0_400] : memref<32x128xf32, #tpu.memory_space<vmem>>, vector<32x128xf32>
    %cst_401 = arith.constant dense<0.000000e+00> : vector<2x128xf32>
    %537 = tpu.matmul %535, %536, %cst_401 {dimension_numbers = #tpu.dot_dimension_numbers<[1], [0], [0], [1], [0, 0, 1, 1], [], []>} : vector<2x32xf32>, vector<32x128xf32>, vector<2x128xf32> -> vector<2x128xf32>
    %538 = arith.mulf %537, %537 : vector<2x128xf32>
    %cst_402 = arith.constant dense<0.000000e+00> : vector<2xf32>
    %539 = vector.multi_reduction <add>, %538, %cst_402 [1] : vector<2x128xf32> to vector<2xf32>
    %540 = vector.shape_cast %539 : vector<2xf32> to vector<2x1xf32>
    %541 = math.rsqrt %540 : vector<2x1xf32>
    %542 = vector.broadcast %541 : vector<2x1xf32> to vector<2x128xf32>
    %543 = arith.mulf %537, %542 : vector<2x128xf32>
    %c0_403 = arith.constant 0 : index
    %c0_404 = arith.constant 0 : index
    %544 = vector.load %arg19[%c0_403, %c0_404] : memref<2x128xf32, #tpu.memory_space<vmem>>, vector<2x128xf32>
    tpu.vector_store %arg19[%c0_403, %c0_404], %543 {strides = array<i32>} : memref<2x128xf32, #tpu.memory_space<vmem>>, vector<2x128xf32>,
    %c0_405 = arith.constant 0 : index
    %545 = memref.load %arg1[%c0_405] : memref<1xf32, #tpu.memory_space<smem>>
    %c0_406 = arith.constant 0 : index
    %c0_407 = arith.constant 0 : index
    %546 = vector.load %arg17[%c0_406, %c0_407] : memref<128x128xf32, #tpu.memory_space<vmem>>, vector<128x128xf32>
    %cst_408 = arith.constant dense<0.000000e+00> : vector<2x128xf32>
    %547 = tpu.matmul %543, %546, %cst_408 {dimension_numbers = #tpu.dot_dimension_numbers<[1], [0], [0], [1], [0, 0, 1, 1], [], []>} : vector<2x128xf32>, vector<128x128xf32>, vector<2x128xf32> -> vector<2x128xf32>
    %548 = vector.broadcast %545 : f32 to vector<2x128xf32>
    %549 = arith.mulf %548, %547 : vector<2x128xf32>
    %c0_409 = arith.constant 0 : index
    %c0_410 = arith.constant 0 : index
    %550 = vector.load %arg18[%c0_409, %c0_410] : memref<2x128xf32, #tpu.memory_space<vmem>>, vector<2x128xf32>
    tpu.vector_store %arg18[%c0_409, %c0_410], %549 {strides = array<i32>} : memref<2x128xf32, #tpu.memory_space<vmem>>, vector<2x128xf32>,
    return
  }
  func.func @transform_0(%arg0: i32) -> i32 {
    %c0_i32 = arith.constant 0 : i32
    %c0_i32_0 = arith.constant 0 : i32
    return %c0_i32 : i32
  }
  func.func @transform_1(%arg0: i32) -> (i32, i32) {
    %c0_i32 = arith.constant 0 : i32
    %c0_i32_0 = arith.constant 0 : i32
    %c0_i32_1 = arith.constant 0 : i32
    return %c0_i32, %c0_i32_0 : i32, i32
  }
  func.func @transform_2(%arg0: i32) -> (i32, i32) {
    %c0_i32 = arith.constant 0 : i32
    %c0_i32_0 = arith.constant 0 : i32
    %c0_i32_1 = arith.constant 0 : i32
    return %c0_i32, %c0_i32_0 : i32, i32
  }
  func.func @transform_3(%arg0: i32) -> (i32, i32, i32) {
    %c0_i32 = arith.constant 0 : i32
    %c0_i32_0 = arith.constant 0 : i32
    %c0_i32_1 = arith.constant 0 : i32
    %c0_i32_2 = arith.constant 0 : i32
    return %c0_i32, %c0_i32_0, %c0_i32_1 : i32, i32, i32
  }
  func.func @transform_4(%arg0: i32) -> (i32, i32, i32) {
    %c0_i32 = arith.constant 0 : i32
    %c0_i32_0 = arith.constant 0 : i32
    %c0_i32_1 = arith.constant 0 : i32
    %c0_i32_2 = arith.constant 0 : i32
    return %c0_i32, %c0_i32_0, %c0_i32_1 : i32, i32, i32
  }
  func.func @transform_5(%arg0: i32) -> (i32, i32, i32, i32) {
    %c0_i32 = arith.constant 0 : i32
    %c0_i32_0 = arith.constant 0 : i32
    %c0_i32_1 = arith.constant 0 : i32
    %c0_i32_2 = arith.constant 0 : i32
    %c0_i32_3 = arith.constant 0 : i32
    return %c0_i32, %c0_i32_0, %c0_i32_1, %c0_i32_2 : i32, i32, i32, i32
  }
  func.func @transform_6(%arg0: i32) -> (i32, i32, i32, i32) {
    %c0_i32 = arith.constant 0 : i32
    %c0_i32_0 = arith.constant 0 : i32
    %c0_i32_1 = arith.constant 0 : i32
    %c0_i32_2 = arith.constant 0 : i32
    %c0_i32_3 = arith.constant 0 : i32
    return %c0_i32, %c0_i32_0, %c0_i32_1, %c0_i32_2 : i32, i32, i32, i32
  }
  func.func @transform_7(%arg0: i32) -> (i32, i32, i32, i32) {
    %c0_i32 = arith.constant 0 : i32
    %c0_i32_0 = arith.constant 0 : i32
    %c0_i32_1 = arith.constant 0 : i32
    %c0_i32_2 = arith.constant 0 : i32
    %c0_i32_3 = arith.constant 0 : i32
    return %c0_i32, %c0_i32_0, %c0_i32_1, %c0_i32_2 : i32, i32, i32, i32
  }
  func.func @transform_8(%arg0: i32) -> (i32, i32, i32) {
    %c0_i32 = arith.constant 0 : i32
    %c0_i32_0 = arith.constant 0 : i32
    %c0_i32_1 = arith.constant 0 : i32
    %c0_i32_2 = arith.constant 0 : i32
    return %c0_i32, %c0_i32_0, %c0_i32_1 : i32, i32, i32
  }
  func.func @transform_9(%arg0: i32) -> (i32, i32, i32) {
    %c0_i32 = arith.constant 0 : i32
    %c0_i32_0 = arith.constant 0 : i32
    %c0_i32_1 = arith.constant 0 : i32
    %c0_i32_2 = arith.constant 0 : i32
    return %c0_i32, %c0_i32_0, %c0_i32_1 : i32, i32, i32
  }
  func.func @transform_10(%arg0: i32) -> (i32, i32, i32) {
    %c0_i32 = arith.constant 0 : i32
    %c0_i32_0 = arith.constant 0 : i32
    %c0_i32_1 = arith.constant 0 : i32
    %c0_i32_2 = arith.constant 0 : i32
    return %c0_i32, %c0_i32_0, %c0_i32_1 : i32, i32, i32
  }
  func.func @transform_11(%arg0: i32) -> (i32, i32, i32) {
    %c0_i32 = arith.constant 0 : i32
    %c0_i32_0 = arith.constant 0 : i32
    %c0_i32_1 = arith.constant 0 : i32
    %c0_i32_2 = arith.constant 0 : i32
    return %c0_i32, %c0_i32_0, %c0_i32_1 : i32, i32, i32
  }
  func.func @transform_12(%arg0: i32) -> (i32, i32, i32) {
    %c0_i32 = arith.constant 0 : i32
    %c0_i32_0 = arith.constant 0 : i32
    %c0_i32_1 = arith.constant 0 : i32
    %c0_i32_2 = arith.constant 0 : i32
    return %c0_i32, %c0_i32_0, %c0_i32_1 : i32, i32, i32
  }
  func.func @transform_13(%arg0: i32) -> (i32, i32) {
    %c0_i32 = arith.constant 0 : i32
    %c0_i32_0 = arith.constant 0 : i32
    %c0_i32_1 = arith.constant 0 : i32
    return %c0_i32, %c0_i32_0 : i32, i32
  }
  func.func @transform_14(%arg0: i32) -> (i32, i32) {
    %c0_i32 = arith.constant 0 : i32
    %c0_i32_0 = arith.constant 0 : i32
    %c0_i32_1 = arith.constant 0 : i32
    return %c0_i32, %c0_i32_0 : i32, i32
  }
  func.func @transform_15(%arg0: i32) -> (i32, i32) {
    %c0_i32 = arith.constant 0 : i32
    %c0_i32_0 = arith.constant 0 : i32
    %c0_i32_1 = arith.constant 0 : i32
    return %c0_i32, %c0_i32_0 : i32, i32
  }
  func.func @transform_16(%arg0: i32) -> (i32, i32) {
    %c0_i32 = arith.constant 0 : i32
    %c0_i32_0 = arith.constant 0 : i32
    %c0_i32_1 = arith.constant 0 : i32
    return %c0_i32, %c0_i32_0 : i32, i32
  }
  func.func @transform_17(%arg0: i32) -> (i32, i32) {
    %c0_i32 = arith.constant 0 : i32
    %c0_i32_0 = arith.constant 0 : i32
    %c0_i32_1 = arith.constant 0 : i32
    return %c0_i32, %c0_i32_0 : i32, i32
  }
  func.func @transform_18(%arg0: i32) -> (i32, i32) {
    %c0_i32 = arith.constant 0 : i32
    %c0_i32_0 = arith.constant 0 : i32
    %c0_i32_1 = arith.constant 0 : i32
    return %c0_i32, %c0_i32_0 : i32, i32
  }
}

</mosaic_0001>

<llo_original>
// kernel: eq.17
$region0: #{eq.17}
  %s0 = inlined_call_operand.vmem [shape: s32[2,9], index: 0, kind: input, shape index: {}]
  %s1 = inlined_call_operand.vmem [shape: s32[18], index: 1, kind: output, shape index: {}]
  $region1: #{eq.17} parent=0
    #allocation0 [shape = 'u8[4096]{0}', space=vmem, size = 0x1000, scoped, tag = 'scoped mem for output reshape']
    #allocation1 [shape = 'u8[4096]{0}', space=vmem, size = 0x1000, scoped, tag = 'scoped mem for input reshape']
    %s3 = ssub.s32 4, 1
    %v4 = vld [vmem:[%s0] sm:%s3]
    %5 = vst [vmem:[#allocation1] sm:%s3] %v4
    %v6 = vld [vmem:[#allocation1] sm:$0x1]
    %vm7 = vcmask 72704
    %8 = vst.msk [vmem:[#allocation0] sm:$0x1] %vm7, %v6
    %s9 = scalar_lea.vmem [#allocation1], 1
    %v10 = vld [vmem:[%s9] sm:$0x1]
    %11 = vrot.lane.b32.xlu0 %v10, 9
    %v12 = vpop.permute.xlu0 %11
    %vm13 = vcmask 146504
    %14 = vst.msk [vmem:[#allocation0] sm:$0x1] %vm13, %v12
    %s16 = ssub.s32 2, 1
    %v17 = vld [vmem:[#allocation0] sm:%s16]
    %s19 = ssub.s32 2, 1
    %20 = vst [vmem:[%s1] sm:%s19] %v17

// kernel: vit_prompt_forward.1
$region0: #{vit_prompt_forward.1}
  #allocation0 [shape = 'u32[]', space=smem, size = 0x4, offset = 0x4, fixed_abs, tag = 'smem constant byte address 0x4 - core index']
  #allocation1 [shape = 'u32[72,128]{1,0:T(1,128)}', space=vmem, size = 0x9000, scoped, tag = 'internal scratch']
  #allocation2 [shape = 'f32[1]{0:T(128)S(6)}', space=smem, size = 0x200, scoped, tag = 'scoped memory for vit_prompt_forward.1']
  %s0 = inlined_call_operand.<no memory space> [shape: f32[1], index: 0, kind: input, shape index: {}]
  %s1 = inlined_call_operand.vmem [shape: f32[18,201], index: 1, kind: input, shape index: {}]
  %s2 = inlined_call_operand.vmem [shape: f32[201,32], index: 2, kind: input, shape index: {}]
  %s3 = inlined_call_operand.vmem [shape: f32[6,1,32], index: 3, kind: input, shape index: {}]
  %s4 = inlined_call_operand.vmem [shape: f32[6,1,32], index: 4, kind: input, shape index: {}]
  %s5 = inlined_call_operand.vmem [shape: f32[2,12,32,8], index: 5, kind: input, shape index: {}]
  %s6 = inlined_call_operand.vmem [shape: f32[2,12,1,8], index: 6, kind: input, shape index: {}]
  %s7 = inlined_call_operand.vmem [shape: f32[2,4,8,32], index: 7, kind: input, shape index: {}]
  %s8 = inlined_call_operand.vmem [shape: f32[2,1,32], index: 8, kind: input, shape index: {}]
  %s9 = inlined_call_operand.vmem [shape: f32[2,32,128], index: 9, kind: input, shape index: {}]
  %s10 = inlined_call_operand.vmem [shape: f32[2,1,128], index: 10, kind: input, shape index: {}]
  %s11 = inlined_call_operand.vmem [shape: f32[2,128,32], index: 11, kind: input, shape index: {}]
  %s12 = inlined_call_operand.vmem [shape: f32[2,1,32], index: 12, kind: input, shape index: {}]
  %s13 = inlined_call_operand.vmem [shape: f32[18,18], index: 13, kind: input, shape index: {}]
  %s14 = inlined_call_operand.vmem [shape: f32[2,18], index: 14, kind: input, shape index: {}]
  %s15 = inlined_call_operand.vmem [shape: f32[32,128], index: 15, kind: input, shape index: {}]
  %s16 = inlined_call_operand.vmem [shape: f32[128,128], index: 16, kind: input, shape index: {}]
  %s17 = inlined_call_operand.hbm [shape: f32[2,128], index: 17, kind: output, shape index: {0}]
  %s18 = inlined_call_operand.hbm [shape: f32[2,128], index: 18, kind: output, shape index: {1}]
  %19 = xla_tuple %s17, %s18
  %s20 = sld [smem:[#allocation0]]
  $region86: #{vit_prompt_forward.1} parent=0
    _
  %s22 = ssub.s32 1, %s20
  %s23 = scalar_select 0, %s22, %s20
  %24 = sst [smem:[#allocation2]] %s0
  $region1: #{vit_prompt_forward.1} parent=0
    #allocation3 [shape = 'u8[1024]{0}', space=vmem, size = 0x400, scoped, tag = 'output window, operand 0, single buffered']
    #allocation4 [shape = 's32[1]{0}', space=sflag, size = 0x4, scoped, tag = 'scoped memory for vit_prompt_forward.1']
    #allocation5 [shape = 'u8[1024]{0}', space=vmem, size = 0x400, scoped, tag = 'output window, operand 1, single buffered']
    #allocation6 [shape = 's32[1]{0}', space=sflag, size = 0x4, scoped, tag = 'scoped memory for vit_prompt_forward.1']
    %25 = vsyncpa [#allocation4], 0
    %26 = vsyncpa [#allocation6], 0
    // Predicated region
    $region2: #{vit_prompt_forward.1} parent=1 // pred_check
      _
    $region3: #{vit_prompt_forward.1} parent=1 // pred_check_branch
      %28 = sbr.rel (0) target = $region5
    $region4: #{vit_prompt_forward.1} parent=1 // pred_region
      _
    $region5: #{vit_prompt_forward.1} parent=1 // pred_fallthru
      _
    // Predicated region
    $region6: #{vit_prompt_forward.1} parent=1 // pred_check
      _
    $region7: #{vit_prompt_forward.1} parent=1 // pred_check_branch
      %30 = sbr.rel (0) target = $region9
    $region8: #{vit_prompt_forward.1} parent=1 // pred_region
      _
    $region9: #{vit_prompt_forward.1} parent=1 // pred_fallthru
      _
    // Predicated region
    $region10: #{vit_prompt_forward.1} parent=1 // pred_check
      _
    $region11: #{vit_prompt_forward.1} parent=1 // pred_check_branch
      %32 = sbr.rel (0) target = $region13
    $region12: #{vit_prompt_forward.1} parent=1 // pred_region
      _
    $region13: #{vit_prompt_forward.1} parent=1 // pred_fallthru
      _
    // Predicated region
    $region14: #{vit_prompt_forward.1} parent=1 // pred_check
      _
    $region15: #{vit_prompt_forward.1} parent=1 // pred_check_branch
      %34 = sbr.rel (0) target = $region17
    $region16: #{vit_prompt_forward.1} parent=1 // pred_region
      _
    $region17: #{vit_prompt_forward.1} parent=1 // pred_fallthru
      _
    // Predicated region
    $region18: #{vit_prompt_forward.1} parent=1 // pred_check
      _
    $region19: #{vit_prompt_forward.1} parent=1 // pred_check_branch
      %36 = sbr.rel (0) target = $region21
    $region20: #{vit_prompt_forward.1} parent=1 // pred_region
      _
    $region21: #{vit_prompt_forward.1} parent=1 // pred_fallthru
      _
    // Predicated region
    $region22: #{vit_prompt_forward.1} parent=1 // pred_check
      _
    $region23: #{vit_prompt_forward.1} parent=1 // pred_check_branch
      %38 = sbr.rel (0) target = $region25
    $region24: #{vit_prompt_forward.1} parent=1 // pred_region
      _
    $region25: #{vit_prompt_forward.1} parent=1 // pred_fallthru
      _
    // Predicated region
    $region26: #{vit_prompt_forward.1} parent=1 // pred_check
      _
    $region27: #{vit_prompt_forward.1} parent=1 // pred_check_branch
      %40 = sbr.rel (0) target = $region29
    $region28: #{vit_prompt_forward.1} parent=1 // pred_region
      _
    $region29: #{vit_prompt_forward.1} parent=1 // pred_fallthru
      _
    // Predicated region
    $region30: #{vit_prompt_forward.1} parent=1 // pred_check
      _
    $region31: #{vit_prompt_forward.1} parent=1 // pred_check_branch
      %42 = sbr.rel (0) target = $region33
    $region32: #{vit_prompt_forward.1} parent=1 // pred_region
      _
    $region33: #{vit_prompt_forward.1} parent=1 // pred_fallthru
      _
    // Predicated region
    $region34: #{vit_prompt_forward.1} parent=1 // pred_check
      _
    $region35: #{vit_prompt_forward.1} parent=1 // pred_check_branch
      %44 = sbr.rel (0) target = $region37
    $region36: #{vit_prompt_forward.1} parent=1 // pred_region
      _
    $region37: #{vit_prompt_forward.1} parent=1 // pred_fallthru
      _
    // Predicated region
    $region38: #{vit_prompt_forward.1} parent=1 // pred_check
      _
    $region39: #{vit_prompt_forward.1} parent=1 // pred_check_branch
      %46 = sbr.rel (0) target = $region41
    $region40: #{vit_prompt_forward.1} parent=1 // pred_region
      _
    $region41: #{vit_prompt_forward.1} parent=1 // pred_fallthru
      _
    // Predicated region
    $region42: #{vit_prompt_forward.1} parent=1 // pred_check
      _
    $region43: #{vit_prompt_forward.1} parent=1 // pred_check_branch
      %48 = sbr.rel (0) target = $region45
    $region44: #{vit_prompt_forward.1} parent=1 // pred_region
      _
    $region45: #{vit_prompt_forward.1} parent=1 // pred_fallthru
      _
    // Predicated region
    $region46: #{vit_prompt_forward.1} parent=1 // pred_check
      _
    $region47: #{vit_prompt_forward.1} parent=1 // pred_check_branch
      %50 = sbr.rel (0) target = $region49
    $region48: #{vit_prompt_forward.1} parent=1 // pred_region
      _
    $region49: #{vit_prompt_forward.1} parent=1 // pred_fallthru
      _
    // Predicated region
    $region50: #{vit_prompt_forward.1} parent=1 // pred_check
      _
    $region51: #{vit_prompt_forward.1} parent=1 // pred_check_branch
      %52 = sbr.rel (0) target = $region53
    $region52: #{vit_prompt_forward.1} parent=1 // pred_region
      _
    $region53: #{vit_prompt_forward.1} parent=1 // pred_fallthru
      _
    // Predicated region
    $region54: #{vit_prompt_forward.1} parent=1 // pred_check
      _
    $region55: #{vit_prompt_forward.1} parent=1 // pred_check_branch
      %54 = sbr.rel (0) target = $region57
    $region56: #{vit_prompt_forward.1} parent=1 // pred_region
      _
    $region57: #{vit_prompt_forward.1} parent=1 // pred_fallthru
      _
    // Predicated region
    $region58: #{vit_prompt_forward.1} parent=1 // pred_check
      _
    $region59: #{vit_prompt_forward.1} parent=1 // pred_check_branch
      %56 = sbr.rel (0) target = $region61
    $region60: #{vit_prompt_forward.1} parent=1 // pred_region
      _
    $region61: #{vit_prompt_forward.1} parent=1 // pred_fallthru
      _
    // Predicated region
    $region62: #{vit_prompt_forward.1} parent=1 // pred_check
      _
    $region63: #{vit_prompt_forward.1} parent=1 // pred_check_branch
      %58 = sbr.rel (0) target = $region65
    $region64: #{vit_prompt_forward.1} parent=1 // pred_region
      _
    $region65: #{vit_prompt_forward.1} parent=1 // pred_fallthru
      _
    // Predicated region
    $region66: #{vit_prompt_forward.1} parent=1 // pred_check
      _
    $region67: #{vit_prompt_forward.1} parent=1 // pred_check_branch
      %60 = sbr.rel (0) target = $region69
    $region68: #{vit_prompt_forward.1} parent=1 // pred_region
      _
    $region69: #{vit_prompt_forward.1} parent=1 // pred_fallthru
      _
    %v61 = vld [vmem:[%s1] sm:$0xff]
    %v62 = vld [vmem:[%s1 + $0x8] sm:$0xff]
    %v63 = vld [vmem:[%s1 + $0x10] sm:$0xff]
    %v64 = vld [vmem:[%s1 + $0x18] sm:$0xff]
    %v65 = vld [vmem:[%s1 + $0x20] sm:$0x3]
    %v66 = vld [vmem:[%s1 + $0x28] sm:$0x3]
    %v67 = vld [vmem:[%s2] sm:$0xff]
    %v68 = vld [vmem:[%s2 + $0x8] sm:$0xff]
    %v69 = vld [vmem:[%s2 + $0x10] sm:$0xff]
    %v70 = vld [vmem:[%s2 + $0x18] sm:$0xff]
    %v71 = vld [vmem:[%s2 + $0x20] sm:$0xff]
    %v72 = vld [vmem:[%s2 + $0x28] sm:$0xff]
    %v73 = vld [vmem:[%s2 + $0x30] sm:$0xff]
    %v74 = vld [vmem:[%s2 + $0x38] sm:$0xff]
    %v75 = vld [vmem:[%s2 + $0x40] sm:$0xff]
    %v76 = vld [vmem:[%s2 + $0x48] sm:$0xff]
    %v77 = vld [vmem:[%s2 + $0x50] sm:$0xff]
    %v78 = vld [vmem:[%s2 + $0x58] sm:$0xff]
    %v79 = vld [vmem:[%s2 + $0x60] sm:$0xff]
    %v80 = vld [vmem:[%s2 + $0x68] sm:$0xff]
    %v81 = vld [vmem:[%s2 + $0x70] sm:$0xff]
    %v82 = vld [vmem:[%s2 + $0x78] sm:$0xff]
    %v83 = vld [vmem:[%s2 + $0x80] sm:$0xff]
    %v84 = vld [vmem:[%s2 + $0x88] sm:$0xff]
    %v85 = vld [vmem:[%s2 + $0x90] sm:$0xff]
    %v86 = vld [vmem:[%s2 + $0x98] sm:$0xff]
    %v87 = vld [vmem:[%s2 + $0xa0] sm:$0xff]
    %v88 = vld [vmem:[%s2 + $0xa8] sm:$0xff]
    %v89 = vld [vmem:[%s2 + $0xb0] sm:$0xff]
    %v90 = vld [vmem:[%s2 + $0xb8] sm:$0xff]
    %v91 = vld [vmem:[%s2 + $0xc0] sm:$0xff]
    %v92 = vld [vmem:[%s2 + $0xc8] sm:$0x1]
    %vm93 = vcmask 596992
    %v95 = vsel %vm93, %v62, 0
    %v98 = vsel %vm93, %v64, 0
    %v101 = vsel %vm93, %v66, 0
    %vm103 = vcmask 1040384
    %v105 = vsel %vm103, %v92, 0
    %107 = vmatpush.msra.mxu0 %v82
    %108 = vmatpush.msra.mxu0 %v81
    %109 = vmatpush.msra.mxu0 %v80
    %110 = vmatpush.msra.mxu0 %v79
    %111 = vmatpush.msra.mxu0 %v78
    %112 = vmatpush.msra.mxu0 %v77
    %113 = vmatpush.msra.mxu0 %v76
    %114 = vmatpush.msra.mxu0 %v75
    %115 = vmatpush.msra.mxu0 %v74
    %116 = vmatpush.msra.mxu0 %v73
    %117 = vmatpush.msra.mxu0 %v72
    %118 = vmatpush.msra.mxu0 %v71
    %119 = vmatpush.msra.mxu0 %v70
    %120 = vmatpush.msra.mxu0 %v69
    %121 = vmatpush.msra.mxu0 %v68
    %122 = vmatpush.msra.mxu0 %v67
    %123 = vmatmul.f32.gmra.mxu0 %v61
    %v124 = vpop.f32.mrf.mxu0
    %v125 = vadd.f32 0.0, %v124
    %126 = vmatmul.f32.gmra.mxu0 %v63
    %v127 = vpop.f32.mrf.mxu0
    %v128 = vadd.f32 0.0, %v127
    %129 = vmatmul.f32.gmra.mxu0 %v65
    %v130 = vpop.f32.mrf.mxu0
    %v131 = vadd.f32 0.0, %v130
    %132 = vdwg.mxu0
    %133 = vmatpush.msra.mxu0 0.0
    %134 = vmatpush.msra.mxu0 0.0
    %135 = vmatpush.msra.mxu0 0.0
    %136 = vmatpush.msra.mxu0 0.0
    %137 = vmatpush.msra.mxu0 0.0
    %138 = vmatpush.msra.mxu0 0.0
    %139 = vmatpush.msra.mxu0 %v105
    %140 = vmatpush.msra.mxu0 %v91
    %141 = vmatpush.msra.mxu0 %v90
    %142 = vmatpush.msra.mxu0 %v89
    %143 = vmatpush.msra.mxu0 %v88
    %144 = vmatpush.msra.mxu0 %v87
    %145 = vmatpush.msra.mxu0 %v86
    %146 = vmatpush.msra.mxu0 %v85
    %147 = vmatpush.msra.mxu0 %v84
    %148 = vmatpush.msra.mxu0 %v83
    %149 = vmatmul.f32.gmra.mxu0 %v95
    %v150 = vpop.f32.mrf.mxu0
    %v151 = vadd.f32 %v125, %v150
    %152 = vmatmul.f32.gmra.mxu0 %v98
    %v153 = vpop.f32.mrf.mxu0
    %v154 = vadd.f32 %v128, %v153
    %155 = vmatmul.f32.gmra.mxu0 %v101
    %v156 = vpop.f32.mrf.mxu0
    %v157 = vadd.f32 %v131, %v156
    %158 = vdwg.mxu0
    %vm159 = vcmask 261120
    %v160 = vsel %vm159, %v151, 0.0
    %161 = vadd.xlane.f32.xlu0 %v160
    %v162 = vpop.xlane.xlu0 %161
    %v163 = vsel %vm159, %v154, 0.0
    %164 = vadd.xlane.f32.xlu0 %v163
    %v165 = vpop.xlane.xlu0 %164
    %vm166 = vcmask 254976
    %v167 = vsel %vm166, %v157, 0.0
    %168 = vadd.xlane.f32.xlu0 %v167
    %v169 = vpop.xlane.xlu0 %168
    %v170 = vrcp.pop 32.0
    %v171 = vmul.f32 32.0, %v170
    %v172 = vsub.f32 1.0, %v171
    %v173 = vmul.f32 %v170, %v172
    %v174 = vadd.f32 %v170, %v173
    %vm175 = vweird.f32 %v170
    %v176 = vsel %vm175, %v170, %v174
    %v177 = vmul.f32 %v162, %v176
    %v178 = vmul.f32 %v165, %v176
    %v179 = vmul.f32 %v169, %v176
    %v180 = vsub.f32 %v151, %v177
    %v181 = vsub.f32 %v154, %v178
    %v182 = vsub.f32 %v157, %v179
    %v183 = vmul.f32 %v180, %v180
    %v184 = vmul.f32 %v181, %v181
    %v185 = vmul.f32 %v182, %v182
    %v186 = vsel %vm159, %v183, 0.0
    %187 = vadd.xlane.f32.xlu0 %v186
    %v188 = vpop.xlane.xlu0 %187
    %v189 = vsel %vm159, %v184, 0.0
    %190 = vadd.xlane.f32.xlu0 %v189
    %v191 = vpop.xlane.xlu0 %190
    %v192 = vsel %vm166, %v185, 0.0
    %193 = vadd.xlane.f32.xlu0 %v192
    %v194 = vpop.xlane.xlu0 %193
    %v195 = vmul.f32 %v188, %v176
    %v196 = vmul.f32 %v191, %v176
    %v197 = vmul.f32 %v194, %v176
    %v198 = vadd.f32 %v195, 1e-05
    %v199 = vadd.f32 %v196, 1e-05
    %v200 = vadd.f32 %v197, 1e-05
    %v201 = vrsqrt.pop %v198
    %v202 = vmul.f32 %v201, %v198
    %v203 = vmul.f32 %v202, %v201
    %v204 = vmul.f32 0.5, %v203
    %v205 = vsub.f32 1.5, %v204
    %v206 = vmul.f32 %v201, %v205
    %vm207 = vweird.f32 %v198
    %vm208 = vweird.f32 %v201
    %vm209 = vmor %vm207, %vm208
    %v210 = vsel %vm209, %v201, %v206
    %v211 = vrsqrt.pop %v199
    %v212 = vmul.f32 %v211, %v199
    %v213 = vmul.f32 %v212, %v211
    %v214 = vmul.f32 0.5, %v213
    %v215 = vsub.f32 1.5, %v214
    %v216 = vmul.f32 %v211, %v215
    %vm217 = vweird.f32 %v199
    %vm218 = vweird.f32 %v211
    %vm219 = vmor %vm217, %vm218
    %v220 = vsel %vm219, %v211, %v216
    %v221 = vrsqrt.pop %v200
    %v222 = vmul.f32 %v221, %v200
    %v223 = vmul.f32 %v222, %v221
    %v224 = vmul.f32 0.5, %v223
    %v225 = vsub.f32 1.5, %v224
    %v226 = vmul.f32 %v221, %v225
    %vm227 = vweird.f32 %v200
    %vm228 = vweird.f32 %v221
    %vm229 = vmor %vm227, %vm228
    %v230 = vsel %vm229, %v221, %v226
    %v231 = vmul.f32 %v180, %v210
    %v232 = vmul.f32 %v181, %v220
    %v233 = vmul.f32 %v182, %v230
    %v234 = vld [vmem:[%s3] sm:$0x1]
    %v236 = vperm.slane %v234, 0
    %v238 = vmul.f32 %v231, %v236
    %v239 = vmul.f32 %v232, %v236
    %v240 = vmul.f32 %v233, %v236
    %v241 = vld [vmem:[%s4] sm:$0x1]
    %v243 = vperm.slane %v241, 0
    %v245 = vadd.f32 %v238, %v243
    %v246 = vadd.f32 %v239, %v243
    %v247 = vadd.f32 %v240, %v243
    %v248 = vld [vmem:[%s13] sm:$0xff]
    %v249 = vld [vmem:[%s13 + $0x8] sm:$0xff]
    %v250 = vld [vmem:[%s13 + $0x10] sm:$0x3]
    %v251 = vsel %vm159, %v245, 0.0
    %252 = vadd.xlane.f32.xlu0 %v251
    %v253 = vpop.xlane.xlu0 %252
    %v254 = vsel %vm159, %v246, 0.0
    %255 = vadd.xlane.f32.xlu0 %v254
    %v256 = vpop.xlane.xlu0 %255
    %v257 = vsel %vm166, %v247, 0.0
    %258 = vadd.xlane.f32.xlu0 %v257
    %v259 = vpop.xlane.xlu0 %258
    %v260 = vmul.f32 %v253, %v176
    %v261 = vmul.f32 %v256, %v176
    %v262 = vmul.f32 %v259, %v176
    %v263 = vsub.f32 %v245, %v260
    %v264 = vsub.f32 %v246, %v261
    %v265 = vsub.f32 %v247, %v262
    %v266 = vmul.f32 %v263, %v263
    %v267 = vmul.f32 %v264, %v264
    %v268 = vmul.f32 %v265, %v265
    %v269 = vsel %vm159, %v266, 0.0
    %270 = vadd.xlane.f32.xlu0 %v269
    %v271 = vpop.xlane.xlu0 %270
    %v272 = vsel %vm159, %v267, 0.0
    %273 = vadd.xlane.f32.xlu0 %v272
    %v274 = vpop.xlane.xlu0 %273
    %v275 = vsel %vm166, %v268, 0.0
    %276 = vadd.xlane.f32.xlu0 %v275
    %v277 = vpop.xlane.xlu0 %276
    %v278 = vmul.f32 %v271, %v176
    %v279 = vmul.f32 %v274, %v176
    %v280 = vmul.f32 %v277, %v176
    %v281 = vadd.f32 %v278, 1e-05
    %v282 = vadd.f32 %v279, 1e-05
    %v283 = vadd.f32 %v280, 1e-05
    %v284 = vrsqrt.pop %v281
    %v285 = vmul.f32 %v284, %v281
    %v286 = vmul.f32 %v285, %v284
    %v287 = vmul.f32 0.5, %v286
    %v288 = vsub.f32 1.5, %v287
    %v289 = vmul.f32 %v284, %v288
    %vm290 = vweird.f32 %v281
    %vm291 = vweird.f32 %v284
    %vm292 = vmor %vm290, %vm291
    %v293 = vsel %vm292, %v284, %v289
    %v294 = vrsqrt.pop %v282
    %v295 = vmul.f32 %v294, %v282
    %v296 = vmul.f32 %v295, %v294
    %v297 = vmul.f32 0.5, %v296
    %v298 = vsub.f32 1.5, %v297
    %v299 = vmul.f32 %v294, %v298
    %vm300 = vweird.f32 %v282
    %vm301 = vweird.f32 %v294
    %vm302 = vmor %vm300, %vm301
    %v303 = vsel %vm302, %v294, %v299
    %v304 = vrsqrt.pop %v283
    %v305 = vmul.f32 %v304, %v283
    %v306 = vmul.f32 %v305, %v304
    %v307 = vmul.f32 0.5, %v306
    %v308 = vsub.f32 1.5, %v307
    %v309 = vmul.f32 %v304, %v308
    %vm310 = vweird.f32 %v283
    %vm311 = vweird.f32 %v304
    %vm312 = vmor %vm310, %vm311
    %v313 = vsel %vm312, %v304, %v309
    %v314 = vmul.f32 %v263, %v293
    %v315 = vmul.f32 %v264, %v303
    %v316 = vmul.f32 %v265, %v313
    %s317 = scalar_lea.vmem %s3, 1
    %v318 = vld [vmem:[%s317] sm:$0x1]
    %v320 = vperm.slane %v318, 0
    %v322 = vmul.f32 %v314, %v320
    %v323 = vmul.f32 %v315, %v320
    %v324 = vmul.f32 %v316, %v320
    %s325 = scalar_lea.vmem %s4, 1
    %v326 = vld [vmem:[%s325] sm:$0x1]
    %v328 = vperm.slane %v326, 0
    %v330 = vadd.f32 %v322, %v328
    %v331 = vadd.f32 %v323, %v328
    %v332 = vadd.f32 %v324, %v328
    %v333 = vld [vmem:[%s8] sm:$0x1]
    %v334 = vld [vmem:[%s5] sm:$0xff]
    %v335 = vld [vmem:[%s5 + $0x8] sm:$0xff]
    %v336 = vld [vmem:[%s5 + $0x10] sm:$0xff]
    %v337 = vld [vmem:[%s5 + $0x18] sm:$0xff]
    %v338 = vld [vmem:[%s6] sm:$0x1]
    %v340 = vperm.slane %v338, 0
    %v343 = vsel %vm159, %v330, 0
    %v346 = vsel %vm159, %v331, 0
    %v349 = vsel %vm159, %v332, 0
    %351 = vmatpush.msra.mxu0 0.0
    %352 = vmatpush.msra.mxu0 0.0
    %353 = vmatpush.msra.mxu0 0.0
    %354 = vmatpush.msra.mxu0 0.0
    %355 = vmatpush.msra.mxu0 0.0
    %356 = vmatpush.msra.mxu0 0.0
    %357 = vmatpush.msra.mxu0 0.0
    %358 = vmatpush.msra.mxu0 0.0
    %359 = vmatpush.msra.mxu0 0.0
    %360 = vmatpush.msra.mxu0 0.0
    %361 = vmatpush.msra.mxu0 0.0
    %362 = vmatpush.msra.mxu0 0.0
    %363 = vmatpush.msra.mxu0 %v337
    %364 = vmatpush.msra.mxu0 %v336
    %365 = vmatpush.msra.mxu0 %v335
    %366 = vmatpush.msra.mxu0 %v334
    %367 = vmatmul.f32.gmra.mxu0 %v343
    %v368 = vpop.f32.mrf.mxu0
    %v369 = vadd.f32 %v340, %v368
    %370 = vmatmul.f32.gmra.mxu0 %v346
    %v371 = vpop.f32.mrf.mxu0
    %v372 = vadd.f32 %v340, %v371
    %373 = vmatmul.f32.gmra.mxu0 %v349
    %v374 = vpop.f32.mrf.mxu0
    %v375 = vadd.f32 %v340, %v374
    %376 = vdwg.mxu0
    %s377 = scalar_lea.vmem %s5, 128
    %v378 = vld [vmem:[%s377] sm:$0xff]
    %v379 = vld [vmem:[%s377 + $0x8] sm:$0xff]
    %v380 = vld [vmem:[%s377 + $0x10] sm:$0xff]
    %v381 = vld [vmem:[%s377 + $0x18] sm:$0xff]
    %s382 = scalar_lea.vmem %s6, 4
    %v383 = vld [vmem:[%s382] sm:$0x1]
    %v385 = vperm.slane %v383, 0
    %387 = vmatpush.msra.mxu0 0.0
    %388 = vmatpush.msra.mxu0 0.0
    %389 = vmatpush.msra.mxu0 0.0
    %390 = vmatpush.msra.mxu0 0.0
    %391 = vmatpush.msra.mxu0 0.0
    %392 = vmatpush.msra.mxu0 0.0
    %393 = vmatpush.msra.mxu0 0.0
    %394 = vmatpush.msra.mxu0 0.0
    %395 = vmatpush.msra.mxu0 0.0
    %396 = vmatpush.msra.mxu0 0.0
    %397 = vmatpush.msra.mxu0 0.0
    %398 = vmatpush.msra.mxu0 0.0
    %399 = vmatpush.msra.mxu0 %v381
    %400 = vmatpush.msra.mxu0 %v380
    %401 = vmatpush.msra.mxu0 %v379
    %402 = vmatpush.msra.mxu0 %v378
    %403 = vmatmul.f32.gmra.mxu0 %v343
    %v404 = vpop.f32.mrf.mxu0
    %v405 = vadd.f32 %v385, %v404
    %406 = vmatmul.f32.gmra.mxu0 %v346
    %v407 = vpop.f32.mrf.mxu0
    %v408 = vadd.f32 %v385, %v407
    %409 = vmatmul.f32.gmra.mxu0 %v349
    %v410 = vpop.f32.mrf.mxu0
    %v411 = vadd.f32 %v385, %v410
    %412 = vdwg.mxu0
    %s413 = scalar_lea.vmem %s5, 256
    %v414 = vld [vmem:[%s413] sm:$0xff]
    %v415 = vld [vmem:[%s413 + $0x8] sm:$0xff]
    %v416 = vld [vmem:[%s413 + $0x10] sm:$0xff]
    %v417 = vld [vmem:[%s413 + $0x18] sm:$0xff]
    %s418 = scalar_lea.vmem %s6, 8
    %v419 = vld [vmem:[%s418] sm:$0x1]
    %v421 = vperm.slane %v419, 0
    %423 = vmatpush.msra.mxu0 0.0
    %424 = vmatpush.msra.mxu0 0.0
    %425 = vmatpush.msra.mxu0 0.0
    %426 = vmatpush.msra.mxu0 0.0
    %427 = vmatpush.msra.mxu0 0.0
    %428 = vmatpush.msra.mxu0 0.0
    %429 = vmatpush.msra.mxu0 0.0
    %430 = vmatpush.msra.mxu0 0.0
    %431 = vmatpush.msra.mxu0 0.0
    %432 = vmatpush.msra.mxu0 0.0
    %433 = vmatpush.msra.mxu0 0.0
    %434 = vmatpush.msra.mxu0 0.0
    %435 = vmatpush.msra.mxu0 %v417
    %436 = vmatpush.msra.mxu0 %v416
    %437 = vmatpush.msra.mxu0 %v415
    %438 = vmatpush.msra.mxu0 %v414
    %439 = vmatmul.f32.gmra.mxu0 %v343
    %v440 = vpop.f32.mrf.mxu0
    %v441 = vadd.f32 %v421, %v440
    %442 = vmatmul.f32.gmra.mxu0 %v346
    %v443 = vpop.f32.mrf.mxu0
    %v444 = vadd.f32 %v421, %v443
    %445 = vmatmul.f32.gmra.mxu0 %v349
    %v446 = vpop.f32.mrf.mxu0
    %v447 = vadd.f32 %v421, %v446
    %448 = vdwg.mxu0
    %vm449 = vcmask 64512
    %v451 = vsel %vm449, %v369, 0
    %v454 = vsel %vm449, %v372, 0
    %v457 = vsel %vm449, %v375, 0
    %v460 = vsel %vm449, %v405, 0
    %v463 = vsel %vm449, %v408, 0
    %v466 = vsel %vm449, %v411, 0
    %468 = vmatpush.xpose.msra.mxu0 0.0
    %469 = vmatpush.xpose.msra.mxu0 0.0
    %470 = vmatpush.xpose.msra.mxu0 0.0
    %471 = vmatpush.xpose.msra.mxu0 0.0
    %472 = vmatpush.xpose.msra.mxu0 0.0
    %473 = vmatpush.xpose.msra.mxu0 0.0
    %474 = vmatpush.xpose.msra.mxu0 0.0
    %475 = vmatpush.xpose.msra.mxu0 0.0
    %476 = vmatpush.xpose.msra.mxu0 0.0
    %477 = vmatpush.xpose.msra.mxu0 0.0
    %478 = vmatpush.xpose.msra.mxu0 0.0
    %479 = vmatpush.xpose.msra.mxu0 0.0
    %480 = vmatpush.xpose.msra.mxu0 0.0
    %481 = vmatpush.xpose.msra.mxu0 %v466
    %482 = vmatpush.xpose.msra.mxu0 %v463
    %483 = vmatpush.xpose.msra.mxu0 %v460
    %484 = vmatmul.f32.gmra.mxu0 %v451
    %v485 = vpop.f32.mrf.mxu0
    %v486 = vadd.f32 0.0, %v485
    %487 = vmatmul.f32.gmra.mxu0 %v454
    %v488 = vpop.f32.mrf.mxu0
    %v489 = vadd.f32 0.0, %v488
    %490 = vmatmul.f32.gmra.mxu0 %v457
    %v491 = vpop.f32.mrf.mxu0
    %v492 = vadd.f32 0.0, %v491
    %493 = vdwg.mxu0
    %v494 = vmul.f32 %v486, 0.35355338
    %v495 = vmul.f32 %v489, 0.35355338
    %v496 = vmul.f32 %v492, 0.35355338
    %v497 = vadd.f32 %v494, %v248
    %v498 = vadd.f32 %v495, %v249
    %v499 = vadd.f32 %v496, %v250
    %vm500 = vcmask 146432
    %v501 = vsel %vm500, %v497, -inf
    %502 = vmax.xlane.f32.xlu0 %v501
    %v503 = vpop.xlane.xlu0 %502
    %v504 = vsel %vm500, %v498, -inf
    %505 = vmax.xlane.f32.xlu0 %v504
    %v506 = vpop.xlane.xlu0 %505
    %vm507 = vcmask 140288
    %v508 = vsel %vm507, %v499, -inf
    %509 = vmax.xlane.f32.xlu0 %v508
    %v510 = vpop.xlane.xlu0 %509
    %v511 = vsub.f32 %v497, %v503
    %v512 = vsub.f32 %v498, %v506
    %v513 = vsub.f32 %v499, %v510
    %v514 = vmul.f32 %v511, 1.442695
    %v515 = vpow.pop %v514
    %v516 = vmul.f32 %v512, 1.442695
    %v517 = vpow.pop %v516
    %v518 = vmul.f32 %v513, 1.442695
    %v519 = vpow.pop %v518
    %v520 = vsel %vm500, %v515, 0.0
    %521 = vadd.xlane.f32.xlu0 %v520
    %v522 = vpop.xlane.xlu0 %521
    %v523 = vsel %vm500, %v517, 0.0
    %524 = vadd.xlane.f32.xlu0 %v523
    %v525 = vpop.xlane.xlu0 %524
    %v526 = vsel %vm507, %v519, 0.0
    %527 = vadd.xlane.f32.xlu0 %v526
    %v528 = vpop.xlane.xlu0 %527
    %v529 = vrcp.pop %v522
    %v530 = vrcp.pop %v525
    %v531 = vrcp.pop %v528
    %v532 = vmul.f32 %v515, %v529
    %v533 = vmul.f32 %v517, %v530
    %v534 = vmul.f32 %v519, %v531
    %v536 = vsel %vm500, %v532, 0
    %v539 = vsel %vm500, %v533, 0
    %v542 = vsel %vm500, %v534, 0
    %vm544 = vcmask 1041408
    %v546 = vsel %vm544, %v447, 0
    %548 = vmatpush.msra.mxu0 0.0
    %549 = vmatpush.msra.mxu0 0.0
    %550 = vmatpush.msra.mxu0 0.0
    %551 = vmatpush.msra.mxu0 0.0
    %552 = vmatpush.msra.mxu0 0.0
    %553 = vmatpush.msra.mxu0 0.0
    %554 = vmatpush.msra.mxu0 0.0
    %555 = vmatpush.msra.mxu0 0.0
    %556 = vmatpush.msra.mxu0 0.0
    %557 = vmatpush.msra.mxu0 0.0
    %558 = vmatpush.msra.mxu0 0.0
    %559 = vmatpush.msra.mxu0 0.0
    %560 = vmatpush.msra.mxu0 0.0
    %561 = vmatpush.msra.mxu0 %v546
    %562 = vmatpush.msra.mxu0 %v444
    %563 = vmatpush.msra.mxu0 %v441
    %564 = vmatmul.f32.gmra.mxu0 %v536
    %v565 = vpop.f32.mrf.mxu0
    %v566 = vadd.f32 0.0, %v565
    %567 = vmatmul.f32.gmra.mxu0 %v539
    %v568 = vpop.f32.mrf.mxu0
    %v569 = vadd.f32 0.0, %v568
    %570 = vmatmul.f32.gmra.mxu0 %v542
    %v571 = vpop.f32.mrf.mxu0
    %v572 = vadd.f32 0.0, %v571
    %573 = vdwg.mxu0
    %v574 = vld [vmem:[%s7] sm:$0xff]
    %v576 = vsel %vm449, %v566, 0
    %v579 = vsel %vm449, %v569, 0
    %v582 = vsel %vm449, %v572, 0
    %584 = vmatpush.msra.mxu0 0.0
    %585 = vmatpush.msra.mxu0 0.0
    %586 = vmatpush.msra.mxu0 0.0
    %587 = vmatpush.msra.mxu0 0.0
    %588 = vmatpush.msra.mxu0 0.0
    %589 = vmatpush.msra.mxu0 0.0
    %590 = vmatpush.msra.mxu0 0.0
    %591 = vmatpush.msra.mxu0 0.0
    %592 = vmatpush.msra.mxu0 0.0
    %593 = vmatpush.msra.mxu0 0.0
    %594 = vmatpush.msra.mxu0 0.0
    %595 = vmatpush.msra.mxu0 0.0
    %596 = vmatpush.msra.mxu0 0.0
    %597 = vmatpush.msra.mxu0 0.0
    %598 = vmatpush.msra.mxu0 0.0
    %599 = vmatpush.msra.mxu0 %v574
    %600 = vmatmul.f32.gmra.mxu0 %v576
    %v601 = vpop.f32.mrf.mxu0
    %v602 = vadd.f32 0.0, %v601
    %603 = vmatmul.f32.gmra.mxu0 %v579
    %v604 = vpop.f32.mrf.mxu0
    %v605 = vadd.f32 0.0, %v604
    %606 = vmatmul.f32.gmra.mxu0 %v582
    %v607 = vpop.f32.mrf.mxu0
    %v608 = vadd.f32 0.0, %v607
    %609 = vdwg.mxu0
    %v611 = vperm.slane %v333, 0
    %v613 = vadd.f32 %v611, %v602
    %v614 = vadd.f32 %v611, %v605
    %v615 = vadd.f32 %v611, %v608
    %s616 = scalar_lea.vmem %s5, 32
    %v617 = vld [vmem:[%s616] sm:$0xff]
    %v618 = vld [vmem:[%s616 + $0x8] sm:$0xff]
    %v619 = vld [vmem:[%s616 + $0x10] sm:$0xff]
    %v620 = vld [vmem:[%s616 + $0x18] sm:$0xff]
    %s621 = scalar_lea.vmem %s6, 1
    %v622 = vld [vmem:[%s621] sm:$0x1]
    %v624 = vperm.slane %v622, 0
    %626 = vmatpush.msra.mxu0 0.0
    %627 = vmatpush.msra.mxu0 0.0
    %628 = vmatpush.msra.mxu0 0.0
    %629 = vmatpush.msra.mxu0 0.0
    %630 = vmatpush.msra.mxu0 0.0
    %631 = vmatpush.msra.mxu0 0.0
    %632 = vmatpush.msra.mxu0 0.0
    %633 = vmatpush.msra.mxu0 0.0
    %634 = vmatpush.msra.mxu0 0.0
    %635 = vmatpush.msra.mxu0 0.0
    %636 = vmatpush.msra.mxu0 0.0
    %637 = vmatpush.msra.mxu0 0.0
    %638 = vmatpush.msra.mxu0 %v620
    %639 = vmatpush.msra.mxu0 %v619
    %640 = vmatpush.msra.mxu0 %v618
    %641 = vmatpush.msra.mxu0 %v617
    %642 = vmatmul.f32.gmra.mxu0 %v343
    %v643 = vpop.f32.mrf.mxu0
    %v644 = vadd.f32 %v624, %v643
    %645 = vmatmul.f32.gmra.mxu0 %v346
    %v646 = vpop.f32.mrf.mxu0
    %v647 = vadd.f32 %v624, %v646
    %648 = vmatmul.f32.gmra.mxu0 %v349
    %v649 = vpop.f32.mrf.mxu0
    %v650 = vadd.f32 %v624, %v649
    %651 = vdwg.mxu0
    %s652 = scalar_lea.vmem %s5, 160
    %v653 = vld [vmem:[%s652] sm:$0xff]
    %v654 = vld [vmem:[%s652 + $0x8] sm:$0xff]
    %v655 = vld [vmem:[%s652 + $0x10] sm:$0xff]
    %v656 = vld [vmem:[%s652 + $0x18] sm:$0xff]
    %s657 = scalar_lea.vmem %s6, 5
    %v658 = vld [vmem:[%s657] sm:$0x1]
    %v660 = vperm.slane %v658, 0
    %662 = vmatpush.msra.mxu0 0.0
    %663 = vmatpush.msra.mxu0 0.0
    %664 = vmatpush.msra.mxu0 0.0
    %665 = vmatpush.msra.mxu0 0.0
    %666 = vmatpush.msra.mxu0 0.0
    %667 = vmatpush.msra.mxu0 0.0
    %668 = vmatpush.msra.mxu0 0.0
    %669 = vmatpush.msra.mxu0 0.0
    %670 = vmatpush.msra.mxu0 0.0
    %671 = vmatpush.msra.mxu0 0.0
    %672 = vmatpush.msra.mxu0 0.0
    %673 = vmatpush.msra.mxu0 0.0
    %674 = vmatpush.msra.mxu0 %v656
    %675 = vmatpush.msra.mxu0 %v655
    %676 = vmatpush.msra.mxu0 %v654
    %677 = vmatpush.msra.mxu0 %v653
    %678 = vmatmul.f32.gmra.mxu0 %v343
    %v679 = vpop.f32.mrf.mxu0
    %v680 = vadd.f32 %v660, %v679
    %681 = vmatmul.f32.gmra.mxu0 %v346
    %v682 = vpop.f32.mrf.mxu0
    %v683 = vadd.f32 %v660, %v682
    %684 = vmatmul.f32.gmra.mxu0 %v349
    %v685 = vpop.f32.mrf.mxu0
    %v686 = vadd.f32 %v660, %v685
    %687 = vdwg.mxu0
    %s688 = scalar_lea.vmem %s5, 288
    %v689 = vld [vmem:[%s688] sm:$0xff]
    %v690 = vld [vmem:[%s688 + $0x8] sm:$0xff]
    %v691 = vld [vmem:[%s688 + $0x10] sm:$0xff]
    %v692 = vld [vmem:[%s688 + $0x18] sm:$0xff]
    %s693 = scalar_lea.vmem %s6, 9
    %v694 = vld [vmem:[%s693] sm:$0x1]
    %v696 = vperm.slane %v694, 0
    %698 = vmatpush.msra.mxu0 0.0
    %699 = vmatpush.msra.mxu0 0.0
    %700 = vmatpush.msra.mxu0 0.0
    %701 = vmatpush.msra.mxu0 0.0
    %702 = vmatpush.msra.mxu0 0.0
    %703 = vmatpush.msra.mxu0 0.0
    %704 = vmatpush.msra.mxu0 0.0
    %705 = vmatpush.msra.mxu0 0.0
    %706 = vmatpush.msra.mxu0 0.0
    %707 = vmatpush.msra.mxu0 0.0
    %708 = vmatpush.msra.mxu0 0.0
    %709 = vmatpush.msra.mxu0 0.0
    %710 = vmatpush.msra.mxu0 %v692
    %711 = vmatpush.msra.mxu0 %v691
    %712 = vmatpush.msra.mxu0 %v690
    %713 = vmatpush.msra.mxu0 %v689
    %714 = vmatmul.f32.gmra.mxu0 %v343
    %v715 = vpop.f32.mrf.mxu0
    %v716 = vadd.f32 %v696, %v715
    %717 = vmatmul.f32.gmra.mxu0 %v346
    %v718 = vpop.f32.mrf.mxu0
    %v719 = vadd.f32 %v696, %v718
    %720 = vmatmul.f32.gmra.mxu0 %v349
    %v721 = vpop.f32.mrf.mxu0
    %v722 = vadd.f32 %v696, %v721
    %723 = vdwg.mxu0
    %v725 = vsel %vm449, %v644, 0
    %v728 = vsel %vm449, %v647, 0
    %v731 = vsel %vm449, %v650, 0
    %v734 = vsel %vm449, %v680, 0
    %v737 = vsel %vm449, %v683, 0
    %v740 = vsel %vm449, %v686, 0
    %742 = vmatpush.xpose.msra.mxu0 0.0
    %743 = vmatpush.xpose.msra.mxu0 0.0
    %744 = vmatpush.xpose.msra.mxu0 0.0
    %745 = vmatpush.xpose.msra.mxu0 0.0
    %746 = vmatpush.xpose.msra.mxu0 0.0
    %747 = vmatpush.xpose.msra.mxu0 0.0
    %748 = vmatpush.xpose.msra.mxu0 0.0
    %749 = vmatpush.xpose.msra.mxu0 0.0
    %750 = vmatpush.xpose.msra.mxu0 0.0
    %751 = vmatpush.xpose.msra.mxu0 0.0
    %752 = vmatpush.xpose.msra.mxu0 0.0
    %753 = vmatpush.xpose.msra.mxu0 0.0
    %754 = vmatpush.xpose.msra.mxu0 0.0
    %755 = vmatpush.xpose.msra.mxu0 %v740
    %756 = vmatpush.xpose.msra.mxu0 %v737
    %757 = vmatpush.xpose.msra.mxu0 %v734
    %758 = vmatmul.f32.gmra.mxu0 %v725
    %v759 = vpop.f32.mrf.mxu0
    %v760 = vadd.f32 0.0, %v759
    %761 = vmatmul.f32.gmra.mxu0 %v728
    %v762 = vpop.f32.mrf.mxu0
    %v763 = vadd.f32 0.0, %v762
    %764 = vmatmul.f32.gmra.mxu0 %v731
    %v765 = vpop.f32.mrf.mxu0
    %v766 = vadd.f32 0.0, %v765
    %767 = vdwg.mxu0
    %v768 = vmul.f32 %v760, 0.35355338
    %v769 = vmul.f32 %v763, 0.35355338
    %v770 = vmul.f32 %v766, 0.35355338
    %v771 = vadd.f32 %v768, %v248
    %v772 = vadd.f32 %v769, %v249
    %v773 = vadd.f32 %v770, %v250
    %v774 = vsel %vm500, %v771, -inf
    %775 = vmax.xlane.f32.xlu0 %v774
    %v776 = vpop.xlane.xlu0 %775
    %v777 = vsel %vm500, %v772, -inf
    %778 = vmax.xlane.f32.xlu0 %v777
    %v779 = vpop.xlane.xlu0 %778
    %v780 = vsel %vm507, %v773, -inf
    %781 = vmax.xlane.f32.xlu0 %v780
    %v782 = vpop.xlane.xlu0 %781
    %v783 = vsub.f32 %v771, %v776
    %v784 = vsub.f32 %v772, %v779
    %v785 = vsub.f32 %v773, %v782
    %v786 = vmul.f32 %v783, 1.442695
    %v787 = vpow.pop %v786
    %v788 = vmul.f32 %v784, 1.442695
    %v789 = vpow.pop %v788
    %v790 = vmul.f32 %v785, 1.442695
    %v791 = vpow.pop %v790
    %v792 = vsel %vm500, %v787, 0.0
    %793 = vadd.xlane.f32.xlu0 %v792
    %v794 = vpop.xlane.xlu0 %793
    %v795 = vsel %vm500, %v789, 0.0
    %796 = vadd.xlane.f32.xlu0 %v795
    %v797 = vpop.xlane.xlu0 %796
    %v798 = vsel %vm507, %v791, 0.0
    %799 = vadd.xlane.f32.xlu0 %v798
    %v800 = vpop.xlane.xlu0 %799
    %v801 = vrcp.pop %v794
    %v802 = vrcp.pop %v797
    %v803 = vrcp.pop %v800
    %v804 = vmul.f32 %v787, %v801
    %v805 = vmul.f32 %v789, %v802
    %v806 = vmul.f32 %v791, %v803
    %v808 = vsel %vm500, %v804, 0
    %v811 = vsel %vm500, %v805, 0
    %v814 = vsel %vm500, %v806, 0
    %v817 = vsel %vm544, %v722, 0
    %819 = vmatpush.msra.mxu0 0.0
    %820 = vmatpush.msra.mxu0 0.0
    %821 = vmatpush.msra.mxu0 0.0
    %822 = vmatpush.msra.mxu0 0.0
    %823 = vmatpush.msra.mxu0 0.0
    %824 = vmatpush.msra.mxu0 0.0
    %825 = vmatpush.msra.mxu0 0.0
    %826 = vmatpush.msra.mxu0 0.0
    %827 = vmatpush.msra.mxu0 0.0
    %828 = vmatpush.msra.mxu0 0.0
    %829 = vmatpush.msra.mxu0 0.0
    %830 = vmatpush.msra.mxu0 0.0
    %831 = vmatpush.msra.mxu0 0.0
    %832 = vmatpush.msra.mxu0 %v817
    %833 = vmatpush.msra.mxu0 %v719
    %834 = vmatpush.msra.mxu0 %v716
    %835 = vmatmul.f32.gmra.mxu0 %v808
    %v836 = vpop.f32.mrf.mxu0
    %v837 = vadd.f32 0.0, %v836
    %838 = vmatmul.f32.gmra.mxu0 %v811
    %v839 = vpop.f32.mrf.mxu0
    %v840 = vadd.f32 0.0, %v839
    %841 = vmatmul.f32.gmra.mxu0 %v814
    %v842 = vpop.f32.mrf.mxu0
    %v843 = vadd.f32 0.0, %v842
    %844 = vdwg.mxu0
    %s845 = scalar_lea.vmem %s7, 8
    %v846 = vld [vmem:[%s845] sm:$0xff]
    %v848 = vsel %vm449, %v837, 0
    %v851 = vsel %vm449, %v840, 0
    %v854 = vsel %vm449, %v843, 0
    %856 = vmatpush.msra.mxu0 0.0
    %857 = vmatpush.msra.mxu0 0.0
    %858 = vmatpush.msra.mxu0 0.0
    %859 = vmatpush.msra.mxu0 0.0
    %860 = vmatpush.msra.mxu0 0.0
    %861 = vmatpush.msra.mxu0 0.0
    %862 = vmatpush.msra.mxu0 0.0
    %863 = vmatpush.msra.mxu0 0.0
    %864 = vmatpush.msra.mxu0 0.0
    %865 = vmatpush.msra.mxu0 0.0
    %866 = vmatpush.msra.mxu0 0.0
    %867 = vmatpush.msra.mxu0 0.0
    %868 = vmatpush.msra.mxu0 0.0
    %869 = vmatpush.msra.mxu0 0.0
    %870 = vmatpush.msra.mxu0 0.0
    %871 = vmatpush.msra.mxu0 %v846
    %872 = vmatmul.f32.gmra.mxu0 %v848
    %v873 = vpop.f32.mrf.mxu0
    %v874 = vadd.f32 0.0, %v873
    %875 = vmatmul.f32.gmra.mxu0 %v851
    %v876 = vpop.f32.mrf.mxu0
    %v877 = vadd.f32 0.0, %v876
    %878 = vmatmul.f32.gmra.mxu0 %v854
    %v879 = vpop.f32.mrf.mxu0
    %v880 = vadd.f32 0.0, %v879
    %881 = vdwg.mxu0
    %v882 = vadd.f32 %v613, %v874
    %v883 = vadd.f32 %v614, %v877
    %v884 = vadd.f32 %v615, %v880
    %s885 = scalar_lea.vmem %s5, 64
    %v886 = vld [vmem:[%s885] sm:$0xff]
    %v887 = vld [vmem:[%s885 + $0x8] sm:$0xff]
    %v888 = vld [vmem:[%s885 + $0x10] sm:$0xff]
    %v889 = vld [vmem:[%s885 + $0x18] sm:$0xff]
    %s890 = scalar_lea.vmem %s6, 2
    %v891 = vld [vmem:[%s890] sm:$0x1]
    %v893 = vperm.slane %v891, 0
    %895 = vmatpush.msra.mxu0 0.0
    %896 = vmatpush.msra.mxu0 0.0
    %897 = vmatpush.msra.mxu0 0.0
    %898 = vmatpush.msra.mxu0 0.0
    %899 = vmatpush.msra.mxu0 0.0
    %900 = vmatpush.msra.mxu0 0.0
    %901 = vmatpush.msra.mxu0 0.0
    %902 = vmatpush.msra.mxu0 0.0
    %903 = vmatpush.msra.mxu0 0.0
    %904 = vmatpush.msra.mxu0 0.0
    %905 = vmatpush.msra.mxu0 0.0
    %906 = vmatpush.msra.mxu0 0.0
    %907 = vmatpush.msra.mxu0 %v889
    %908 = vmatpush.msra.mxu0 %v888
    %909 = vmatpush.msra.mxu0 %v887
    %910 = vmatpush.msra.mxu0 %v886
    %911 = vmatmul.f32.gmra.mxu0 %v343
    %v912 = vpop.f32.mrf.mxu0
    %v913 = vadd.f32 %v893, %v912
    %914 = vmatmul.f32.gmra.mxu0 %v346
    %v915 = vpop.f32.mrf.mxu0
    %v916 = vadd.f32 %v893, %v915
    %917 = vmatmul.f32.gmra.mxu0 %v349
    %v918 = vpop.f32.mrf.mxu0
    %v919 = vadd.f32 %v893, %v918
    %920 = vdwg.mxu0
    %s921 = scalar_lea.vmem %s5, 192
    %v922 = vld [vmem:[%s921] sm:$0xff]
    %v923 = vld [vmem:[%s921 + $0x8] sm:$0xff]
    %v924 = vld [vmem:[%s921 + $0x10] sm:$0xff]
    %v925 = vld [vmem:[%s921 + $0x18] sm:$0xff]
    %s926 = scalar_lea.vmem %s6, 6
    %v927 = vld [vmem:[%s926] sm:$0x1]
    %v929 = vperm.slane %v927, 0
    %931 = vmatpush.msra.mxu0 0.0
    %932 = vmatpush.msra.mxu0 0.0
    %933 = vmatpush.msra.mxu0 0.0
    %934 = vmatpush.msra.mxu0 0.0
    %935 = vmatpush.msra.mxu0 0.0
    %936 = vmatpush.msra.mxu0 0.0
    %937 = vmatpush.msra.mxu0 0.0
    %938 = vmatpush.msra.mxu0 0.0
    %939 = vmatpush.msra.mxu0 0.0
    %940 = vmatpush.msra.mxu0 0.0
    %941 = vmatpush.msra.mxu0 0.0
    %942 = vmatpush.msra.mxu0 0.0
    %943 = vmatpush.msra.mxu0 %v925
    %944 = vmatpush.msra.mxu0 %v924
    %945 = vmatpush.msra.mxu0 %v923
    %946 = vmatpush.msra.mxu0 %v922
    %947 = vmatmul.f32.gmra.mxu0 %v343
    %v948 = vpop.f32.mrf.mxu0
    %v949 = vadd.f32 %v929, %v948
    %950 = vmatmul.f32.gmra.mxu0 %v346
    %v951 = vpop.f32.mrf.mxu0
    %v952 = vadd.f32 %v929, %v951
    %953 = vmatmul.f32.gmra.mxu0 %v349
    %v954 = vpop.f32.mrf.mxu0
    %v955 = vadd.f32 %v929, %v954
    %956 = vdwg.mxu0
    %s957 = scalar_lea.vmem %s5, 320
    %v958 = vld [vmem:[%s957] sm:$0xff]
    %v959 = vld [vmem:[%s957 + $0x8] sm:$0xff]
    %v960 = vld [vmem:[%s957 + $0x10] sm:$0xff]
    %v961 = vld [vmem:[%s957 + $0x18] sm:$0xff]
    %s962 = scalar_lea.vmem %s6, 10
    %v963 = vld [vmem:[%s962] sm:$0x1]
    %v965 = vperm.slane %v963, 0
    %967 = vmatpush.msra.mxu0 0.0
    %968 = vmatpush.msra.mxu0 0.0
    %969 = vmatpush.msra.mxu0 0.0
    %970 = vmatpush.msra.mxu0 0.0
    %971 = vmatpush.msra.mxu0 0.0
    %972 = vmatpush.msra.mxu0 0.0
    %973 = vmatpush.msra.mxu0 0.0
    %974 = vmatpush.msra.mxu0 0.0
    %975 = vmatpush.msra.mxu0 0.0
    %976 = vmatpush.msra.mxu0 0.0
    %977 = vmatpush.msra.mxu0 0.0
    %978 = vmatpush.msra.mxu0 0.0
    %979 = vmatpush.msra.mxu0 %v961
    %980 = vmatpush.msra.mxu0 %v960
    %981 = vmatpush.msra.mxu0 %v959
    %982 = vmatpush.msra.mxu0 %v958
    %983 = vmatmul.f32.gmra.mxu0 %v343
    %v984 = vpop.f32.mrf.mxu0
    %v985 = vadd.f32 %v965, %v984
    %986 = vmatmul.f32.gmra.mxu0 %v346
    %v987 = vpop.f32.mrf.mxu0
    %v988 = vadd.f32 %v965, %v987
    %989 = vmatmul.f32.gmra.mxu0 %v349
    %v990 = vpop.f32.mrf.mxu0
    %v991 = vadd.f32 %v965, %v990
    %992 = vdwg.mxu0
    %v994 = vsel %vm449, %v913, 0
    %v997 = vsel %vm449, %v916, 0
    %v1000 = vsel %vm449, %v919, 0
    %v1003 = vsel %vm449, %v949, 0
    %v1006 = vsel %vm449, %v952, 0
    %v1009 = vsel %vm449, %v955, 0
    %1011 = vmatpush.xpose.msra.mxu0 0.0
    %1012 = vmatpush.xpose.msra.mxu0 0.0
    %1013 = vmatpush.xpose.msra.mxu0 0.0
    %1014 = vmatpush.xpose.msra.mxu0 0.0
    %1015 = vmatpush.xpose.msra.mxu0 0.0
    %1016 = vmatpush.xpose.msra.mxu0 0.0
    %1017 = vmatpush.xpose.msra.mxu0 0.0
    %1018 = vmatpush.xpose.msra.mxu0 0.0
    %1019 = vmatpush.xpose.msra.mxu0 0.0
    %1020 = vmatpush.xpose.msra.mxu0 0.0
    %1021 = vmatpush.xpose.msra.mxu0 0.0
    %1022 = vmatpush.xpose.msra.mxu0 0.0
    %1023 = vmatpush.xpose.msra.mxu0 0.0
    %1024 = vmatpush.xpose.msra.mxu0 %v1009
    %1025 = vmatpush.xpose.msra.mxu0 %v1006
    %1026 = vmatpush.xpose.msra.mxu0 %v1003
    %1027 = vmatmul.f32.gmra.mxu0 %v994
    %v1028 = vpop.f32.mrf.mxu0
    %v1029 = vadd.f32 0.0, %v1028
    %1030 = vmatmul.f32.gmra.mxu0 %v997
    %v1031 = vpop.f32.mrf.mxu0
    %v1032 = vadd.f32 0.0, %v1031
    %1033 = vmatmul.f32.gmra.mxu0 %v1000
    %v1034 = vpop.f32.mrf.mxu0
    %v1035 = vadd.f32 0.0, %v1034
    %1036 = vdwg.mxu0
    %v1037 = vmul.f32 %v1029, 0.35355338
    %v1038 = vmul.f32 %v1032, 0.35355338
    %v1039 = vmul.f32 %v1035, 0.35355338
    %v1040 = vadd.f32 %v1037, %v248
    %v1041 = vadd.f32 %v1038, %v249
    %v1042 = vadd.f32 %v1039, %v250
    %v1043 = vsel %vm500, %v1040, -inf
    %1044 = vmax.xlane.f32.xlu0 %v1043
    %v1045 = vpop.xlane.xlu0 %1044
    %v1046 = vsel %vm500, %v1041, -inf
    %1047 = vmax.xlane.f32.xlu0 %v1046
    %v1048 = vpop.xlane.xlu0 %1047
    %v1049 = vsel %vm507, %v1042, -inf
    %1050 = vmax.xlane.f32.xlu0 %v1049
    %v1051 = vpop.xlane.xlu0 %1050
    %v1052 = vsub.f32 %v1040, %v1045
    %v1053 = vsub.f32 %v1041, %v1048
    %v1054 = vsub.f32 %v1042, %v1051
    %v1055 = vmul.f32 %v1052, 1.442695
    %v1056 = vpow.pop %v1055
    %v1057 = vmul.f32 %v1053, 1.442695
    %v1058 = vpow.pop %v1057
    %v1059 = vmul.f32 %v1054, 1.442695
    %v1060 = vpow.pop %v1059
    %v1061 = vsel %vm500, %v1056, 0.0
    %1062 = vadd.xlane.f32.xlu0 %v1061
    %v1063 = vpop.xlane.xlu0 %1062
    %v1064 = vsel %vm500, %v1058, 0.0
    %1065 = vadd.xlane.f32.xlu0 %v1064
    %v1066 = vpop.xlane.xlu0 %1065
    %v1067 = vsel %vm507, %v1060, 0.0
    %1068 = vadd.xlane.f32.xlu0 %v1067
    %v1069 = vpop.xlane.xlu0 %1068
    %v1070 = vrcp.pop %v1063
    %v1071 = vrcp.pop %v1066
    %v1072 = vrcp.pop %v1069
    %v1073 = vmul.f32 %v1056, %v1070
    %v1074 = vmul.f32 %v1058, %v1071
    %v1075 = vmul.f32 %v1060, %v1072
    %v1077 = vsel %vm500, %v1073, 0
    %v1080 = vsel %vm500, %v1074, 0
    %v1083 = vsel %vm500, %v1075, 0
    %v1086 = vsel %vm544, %v991, 0
    %1088 = vmatpush.msra.mxu0 0.0
    %1089 = vmatpush.msra.mxu0 0.0
    %1090 = vmatpush.msra.mxu0 0.0
    %1091 = vmatpush.msra.mxu0 0.0
    %1092 = vmatpush.msra.mxu0 0.0
    %1093 = vmatpush.msra.mxu0 0.0
    %1094 = vmatpush.msra.mxu0 0.0
    %1095 = vmatpush.msra.mxu0 0.0
    %1096 = vmatpush.msra.mxu0 0.0
    %1097 = vmatpush.msra.mxu0 0.0
    %1098 = vmatpush.msra.mxu0 0.0
    %1099 = vmatpush.msra.mxu0 0.0
    %1100 = vmatpush.msra.mxu0 0.0
    %1101 = vmatpush.msra.mxu0 %v1086
    %1102 = vmatpush.msra.mxu0 %v988
    %1103 = vmatpush.msra.mxu0 %v985
    %1104 = vmatmul.f32.gmra.mxu0 %v1077
    %v1105 = vpop.f32.mrf.mxu0
    %v1106 = vadd.f32 0.0, %v1105
    %1107 = vmatmul.f32.gmra.mxu0 %v1080
    %v1108 = vpop.f32.mrf.mxu0
    %v1109 = vadd.f32 0.0, %v1108
    %1110 = vmatmul.f32.gmra.mxu0 %v1083
    %v1111 = vpop.f32.mrf.mxu0
    %v1112 = vadd.f32 0.0, %v1111
    %1113 = vdwg.mxu0
    %s1114 = scalar_lea.vmem %s7, 16
    %v1115 = vld [vmem:[%s1114] sm:$0xff]
    %v1117 = vsel %vm449, %v1106, 0
    %v1120 = vsel %vm449, %v1109, 0
    %v1123 = vsel %vm449, %v1112, 0
    %1125 = vmatpush.msra.mxu0 0.0
    %1126 = vmatpush.msra.mxu0 0.0
    %1127 = vmatpush.msra.mxu0 0.0
    %1128 = vmatpush.msra.mxu0 0.0
    %1129 = vmatpush.msra.mxu0 0.0
    %1130 = vmatpush.msra.mxu0 0.0
    %1131 = vmatpush.msra.mxu0 0.0
    %1132 = vmatpush.msra.mxu0 0.0
    %1133 = vmatpush.msra.mxu0 0.0
    %1134 = vmatpush.msra.mxu0 0.0
    %1135 = vmatpush.msra.mxu0 0.0
    %1136 = vmatpush.msra.mxu0 0.0
    %1137 = vmatpush.msra.mxu0 0.0
    %1138 = vmatpush.msra.mxu0 0.0
    %1139 = vmatpush.msra.mxu0 0.0
    %1140 = vmatpush.msra.mxu0 %v1115
    %1141 = vmatmul.f32.gmra.mxu0 %v1117
    %v1142 = vpop.f32.mrf.mxu0
    %v1143 = vadd.f32 0.0, %v1142
    %1144 = vmatmul.f32.gmra.mxu0 %v1120
    %v1145 = vpop.f32.mrf.mxu0
    %v1146 = vadd.f32 0.0, %v1145
    %1147 = vmatmul.f32.gmra.mxu0 %v1123
    %v1148 = vpop.f32.mrf.mxu0
    %v1149 = vadd.f32 0.0, %v1148
    %1150 = vdwg.mxu0
    %v1151 = vadd.f32 %v882, %v1143
    %v1152 = vadd.f32 %v883, %v1146
    %v1153 = vadd.f32 %v884, %v1149
    %s1154 = scalar_lea.vmem %s5, 96
    %v1155 = vld [vmem:[%s1154] sm:$0xff]
    %v1156 = vld [vmem:[%s1154 + $0x8] sm:$0xff]
    %v1157 = vld [vmem:[%s1154 + $0x10] sm:$0xff]
    %v1158 = vld [vmem:[%s1154 + $0x18] sm:$0xff]
    %s1159 = scalar_lea.vmem %s6, 3
    %v1160 = vld [vmem:[%s1159] sm:$0x1]
    %v1162 = vperm.slane %v1160, 0
    %1164 = vmatpush.msra.mxu0 0.0
    %1165 = vmatpush.msra.mxu0 0.0
    %1166 = vmatpush.msra.mxu0 0.0
    %1167 = vmatpush.msra.mxu0 0.0
    %1168 = vmatpush.msra.mxu0 0.0
    %1169 = vmatpush.msra.mxu0 0.0
    %1170 = vmatpush.msra.mxu0 0.0
    %1171 = vmatpush.msra.mxu0 0.0
    %1172 = vmatpush.msra.mxu0 0.0
    %1173 = vmatpush.msra.mxu0 0.0
    %1174 = vmatpush.msra.mxu0 0.0
    %1175 = vmatpush.msra.mxu0 0.0
    %1176 = vmatpush.msra.mxu0 %v1158
    %1177 = vmatpush.msra.mxu0 %v1157
    %1178 = vmatpush.msra.mxu0 %v1156
    %1179 = vmatpush.msra.mxu0 %v1155
    %1180 = vmatmul.f32.gmra.mxu0 %v343
    %v1181 = vpop.f32.mrf.mxu0
    %v1182 = vadd.f32 %v1162, %v1181
    %1183 = vmatmul.f32.gmra.mxu0 %v346
    %v1184 = vpop.f32.mrf.mxu0
    %v1185 = vadd.f32 %v1162, %v1184
    %1186 = vmatmul.f32.gmra.mxu0 %v349
    %v1187 = vpop.f32.mrf.mxu0
    %v1188 = vadd.f32 %v1162, %v1187
    %1189 = vdwg.mxu0
    %s1190 = scalar_lea.vmem %s5, 224
    %v1191 = vld [vmem:[%s1190] sm:$0xff]
    %v1192 = vld [vmem:[%s1190 + $0x8] sm:$0xff]
    %v1193 = vld [vmem:[%s1190 + $0x10] sm:$0xff]
    %v1194 = vld [vmem:[%s1190 + $0x18] sm:$0xff]
    %s1195 = scalar_lea.vmem %s6, 7
    %v1196 = vld [vmem:[%s1195] sm:$0x1]
    %v1198 = vperm.slane %v1196, 0
    %1200 = vmatpush.msra.mxu0 0.0
    %1201 = vmatpush.msra.mxu0 0.0
    %1202 = vmatpush.msra.mxu0 0.0
    %1203 = vmatpush.msra.mxu0 0.0
    %1204 = vmatpush.msra.mxu0 0.0
    %1205 = vmatpush.msra.mxu0 0.0
    %1206 = vmatpush.msra.mxu0 0.0
    %1207 = vmatpush.msra.mxu0 0.0
    %1208 = vmatpush.msra.mxu0 0.0
    %1209 = vmatpush.msra.mxu0 0.0
    %1210 = vmatpush.msra.mxu0 0.0
    %1211 = vmatpush.msra.mxu0 0.0
    %1212 = vmatpush.msra.mxu0 %v1194
    %1213 = vmatpush.msra.mxu0 %v1193
    %1214 = vmatpush.msra.mxu0 %v1192
    %1215 = vmatpush.msra.mxu0 %v1191
    %1216 = vmatmul.f32.gmra.mxu0 %v343
    %v1217 = vpop.f32.mrf.mxu0
    %v1218 = vadd.f32 %v1198, %v1217
    %1219 = vmatmul.f32.gmra.mxu0 %v346
    %v1220 = vpop.f32.mrf.mxu0
    %v1221 = vadd.f32 %v1198, %v1220
    %1222 = vmatmul.f32.gmra.mxu0 %v349
    %v1223 = vpop.f32.mrf.mxu0
    %v1224 = vadd.f32 %v1198, %v1223
    %1225 = vdwg.mxu0
    %s1226 = scalar_lea.vmem %s5, 352
    %v1227 = vld [vmem:[%s1226] sm:$0xff]
    %v1228 = vld [vmem:[%s1226 + $0x8] sm:$0xff]
    %v1229 = vld [vmem:[%s1226 + $0x10] sm:$0xff]
    %v1230 = vld [vmem:[%s1226 + $0x18] sm:$0xff]
    %s1231 = scalar_lea.vmem %s6, 11
    %v1232 = vld [vmem:[%s1231] sm:$0x1]
    %v1234 = vperm.slane %v1232, 0
    %1236 = vmatpush.msra.mxu0 0.0
    %1237 = vmatpush.msra.mxu0 0.0
    %1238 = vmatpush.msra.mxu0 0.0
    %1239 = vmatpush.msra.mxu0 0.0
    %1240 = vmatpush.msra.mxu0 0.0
    %1241 = vmatpush.msra.mxu0 0.0
    %1242 = vmatpush.msra.mxu0 0.0
    %1243 = vmatpush.msra.mxu0 0.0
    %1244 = vmatpush.msra.mxu0 0.0
    %1245 = vmatpush.msra.mxu0 0.0
    %1246 = vmatpush.msra.mxu0 0.0
    %1247 = vmatpush.msra.mxu0 0.0
    %1248 = vmatpush.msra.mxu0 %v1230
    %1249 = vmatpush.msra.mxu0 %v1229
    %1250 = vmatpush.msra.mxu0 %v1228
    %1251 = vmatpush.msra.mxu0 %v1227
    %1252 = vmatmul.f32.gmra.mxu0 %v343
    %v1253 = vpop.f32.mrf.mxu0
    %v1254 = vadd.f32 %v1234, %v1253
    %1255 = vmatmul.f32.gmra.mxu0 %v346
    %v1256 = vpop.f32.mrf.mxu0
    %v1257 = vadd.f32 %v1234, %v1256
    %1258 = vmatmul.f32.gmra.mxu0 %v349
    %v1259 = vpop.f32.mrf.mxu0
    %v1260 = vadd.f32 %v1234, %v1259
    %1261 = vdwg.mxu0
    %v1263 = vsel %vm449, %v1182, 0
    %v1266 = vsel %vm449, %v1185, 0
    %v1269 = vsel %vm449, %v1188, 0
    %v1272 = vsel %vm449, %v1218, 0
    %v1275 = vsel %vm449, %v1221, 0
    %v1278 = vsel %vm449, %v1224, 0
    %1280 = vmatpush.xpose.msra.mxu0 0.0
    %1281 = vmatpush.xpose.msra.mxu0 0.0
    %1282 = vmatpush.xpose.msra.mxu0 0.0
    %1283 = vmatpush.xpose.msra.mxu0 0.0
    %1284 = vmatpush.xpose.msra.mxu0 0.0
    %1285 = vmatpush.xpose.msra.mxu0 0.0
    %1286 = vmatpush.xpose.msra.mxu0 0.0
    %1287 = vmatpush.xpose.msra.mxu0 0.0
    %1288 = vmatpush.xpose.msra.mxu0 0.0
    %1289 = vmatpush.xpose.msra.mxu0 0.0
    %1290 = vmatpush.xpose.msra.mxu0 0.0
    %1291 = vmatpush.xpose.msra.mxu0 0.0
    %1292 = vmatpush.xpose.msra.mxu0 0.0
    %1293 = vmatpush.xpose.msra.mxu0 %v1278
    %1294 = vmatpush.xpose.msra.mxu0 %v1275
    %1295 = vmatpush.xpose.msra.mxu0 %v1272
    %1296 = vmatmul.f32.gmra.mxu0 %v1263
    %v1297 = vpop.f32.mrf.mxu0
    %v1298 = vadd.f32 0.0, %v1297
    %1299 = vmatmul.f32.gmra.mxu0 %v1266
    %v1300 = vpop.f32.mrf.mxu0
    %v1301 = vadd.f32 0.0, %v1300
    %1302 = vmatmul.f32.gmra.mxu0 %v1269
    %v1303 = vpop.f32.mrf.mxu0
    %v1304 = vadd.f32 0.0, %v1303
    %1305 = vdwg.mxu0
    %v1306 = vmul.f32 %v1298, 0.35355338
    %v1307 = vmul.f32 %v1301, 0.35355338
    %v1308 = vmul.f32 %v1304, 0.35355338
    %v1309 = vadd.f32 %v1306, %v248
    %v1310 = vadd.f32 %v1307, %v249
    %v1311 = vadd.f32 %v1308, %v250
    %v1312 = vsel %vm500, %v1309, -inf
    %1313 = vmax.xlane.f32.xlu0 %v1312
    %v1314 = vpop.xlane.xlu0 %1313
    %v1315 = vsel %vm500, %v1310, -inf
    %1316 = vmax.xlane.f32.xlu0 %v1315
    %v1317 = vpop.xlane.xlu0 %1316
    %v1318 = vsel %vm507, %v1311, -inf
    %1319 = vmax.xlane.f32.xlu0 %v1318
    %v1320 = vpop.xlane.xlu0 %1319
    %v1321 = vsub.f32 %v1309, %v1314
    %v1322 = vsub.f32 %v1310, %v1317
    %v1323 = vsub.f32 %v1311, %v1320
    %v1324 = vmul.f32 %v1321, 1.442695
    %v1325 = vpow.pop %v1324
    %v1326 = vmul.f32 %v1322, 1.442695
    %v1327 = vpow.pop %v1326
    %v1328 = vmul.f32 %v1323, 1.442695
    %v1329 = vpow.pop %v1328
    %v1330 = vsel %vm500, %v1325, 0.0
    %1331 = vadd.xlane.f32.xlu0 %v1330
    %v1332 = vpop.xlane.xlu0 %1331
    %v1333 = vsel %vm500, %v1327, 0.0
    %1334 = vadd.xlane.f32.xlu0 %v1333
    %v1335 = vpop.xlane.xlu0 %1334
    %v1336 = vsel %vm507, %v1329, 0.0
    %1337 = vadd.xlane.f32.xlu0 %v1336
    %v1338 = vpop.xlane.xlu0 %1337
    %v1339 = vrcp.pop %v1332
    %v1340 = vrcp.pop %v1335
    %v1341 = vrcp.pop %v1338
    %v1342 = vmul.f32 %v1325, %v1339
    %v1343 = vmul.f32 %v1327, %v1340
    %v1344 = vmul.f32 %v1329, %v1341
    %v1346 = vsel %vm500, %v1342, 0
    %v1349 = vsel %vm500, %v1343, 0
    %v1352 = vsel %vm500, %v1344, 0
    %v1355 = vsel %vm544, %v1260, 0
    %1357 = vmatpush.msra.mxu0 0.0
    %1358 = vmatpush.msra.mxu0 0.0
    %1359 = vmatpush.msra.mxu0 0.0
    %1360 = vmatpush.msra.mxu0 0.0
    %1361 = vmatpush.msra.mxu0 0.0
    %1362 = vmatpush.msra.mxu0 0.0
    %1363 = vmatpush.msra.mxu0 0.0
    %1364 = vmatpush.msra.mxu0 0.0
    %1365 = vmatpush.msra.mxu0 0.0
    %1366 = vmatpush.msra.mxu0 0.0
    %1367 = vmatpush.msra.mxu0 0.0
    %1368 = vmatpush.msra.mxu0 0.0
    %1369 = vmatpush.msra.mxu0 0.0
    %1370 = vmatpush.msra.mxu0 %v1355
    %1371 = vmatpush.msra.mxu0 %v1257
    %1372 = vmatpush.msra.mxu0 %v1254
    %1373 = vmatmul.f32.gmra.mxu0 %v1346
    %v1374 = vpop.f32.mrf.mxu0
    %v1375 = vadd.f32 0.0, %v1374
    %1376 = vmatmul.f32.gmra.mxu0 %v1349
    %v1377 = vpop.f32.mrf.mxu0
    %v1378 = vadd.f32 0.0, %v1377
    %1379 = vmatmul.f32.gmra.mxu0 %v1352
    %v1380 = vpop.f32.mrf.mxu0
    %v1381 = vadd.f32 0.0, %v1380
    %1382 = vdwg.mxu0
    %s1383 = scalar_lea.vmem %s7, 24
    %v1384 = vld [vmem:[%s1383] sm:$0xff]
    %v1386 = vsel %vm449, %v1375, 0
    %v1389 = vsel %vm449, %v1378, 0
    %v1392 = vsel %vm449, %v1381, 0
    %1394 = vmatpush.msra.mxu0 0.0
    %1395 = vmatpush.msra.mxu0 0.0
    %1396 = vmatpush.msra.mxu0 0.0
    %1397 = vmatpush.msra.mxu0 0.0
    %1398 = vmatpush.msra.mxu0 0.0
    %1399 = vmatpush.msra.mxu0 0.0
    %1400 = vmatpush.msra.mxu0 0.0
    %1401 = vmatpush.msra.mxu0 0.0
    %1402 = vmatpush.msra.mxu0 0.0
    %1403 = vmatpush.msra.mxu0 0.0
    %1404 = vmatpush.msra.mxu0 0.0
    %1405 = vmatpush.msra.mxu0 0.0
    %1406 = vmatpush.msra.mxu0 0.0
    %1407 = vmatpush.msra.mxu0 0.0
    %1408 = vmatpush.msra.mxu0 0.0
    %1409 = vmatpush.msra.mxu0 %v1384
    %1410 = vmatmul.f32.gmra.mxu0 %v1386
    %v1411 = vpop.f32.mrf.mxu0
    %v1412 = vadd.f32 0.0, %v1411
    %1413 = vmatmul.f32.gmra.mxu0 %v1389
    %v1414 = vpop.f32.mrf.mxu0
    %v1415 = vadd.f32 0.0, %v1414
    %1416 = vmatmul.f32.gmra.mxu0 %v1392
    %v1417 = vpop.f32.mrf.mxu0
    %v1418 = vadd.f32 0.0, %v1417
    %1419 = vdwg.mxu0
    %v1420 = vadd.f32 %v1151, %v1412
    %v1421 = vadd.f32 %v1152, %v1415
    %v1422 = vadd.f32 %v1153, %v1418
    %v1423 = vadd.f32 %v245, %v1420
    %v1424 = vadd.f32 %v246, %v1421
    %v1425 = vadd.f32 %v247, %v1422
    %v1426 = vsel %vm159, %v1423, 0.0
    %1427 = vadd.xlane.f32.xlu0 %v1426
    %v1428 = vpop.xlane.xlu0 %1427
    %v1429 = vsel %vm159, %v1424, 0.0
    %1430 = vadd.xlane.f32.xlu0 %v1429
    %v1431 = vpop.xlane.xlu0 %1430
    %v1432 = vsel %vm166, %v1425, 0.0
    %1433 = vadd.xlane.f32.xlu0 %v1432
    %v1434 = vpop.xlane.xlu0 %1433
    %v1435 = vmul.f32 %v1428, %v176
    %v1436 = vmul.f32 %v1431, %v176
    %v1437 = vmul.f32 %v1434, %v176
    %v1438 = vsub.f32 %v1423, %v1435
    %v1439 = vsub.f32 %v1424, %v1436
    %v1440 = vsub.f32 %v1425, %v1437
    %v1441 = vmul.f32 %v1438, %v1438
    %v1442 = vmul.f32 %v1439, %v1439
    %v1443 = vmul.f32 %v1440, %v1440
    %v1444 = vsel %vm159, %v1441, 0.0
    %1445 = vadd.xlane.f32.xlu0 %v1444
    %v1446 = vpop.xlane.xlu0 %1445
    %v1447 = vsel %vm159, %v1442, 0.0
    %1448 = vadd.xlane.f32.xlu0 %v1447
    %v1449 = vpop.xlane.xlu0 %1448
    %v1450 = vsel %vm166, %v1443, 0.0
    %1451 = vadd.xlane.f32.xlu0 %v1450
    %v1452 = vpop.xlane.xlu0 %1451
    %v1453 = vmul.f32 %v1446, %v176
    %v1454 = vmul.f32 %v1449, %v176
    %v1455 = vmul.f32 %v1452, %v176
    %v1456 = vadd.f32 %v1453, 1e-05
    %v1457 = vadd.f32 %v1454, 1e-05
    %v1458 = vadd.f32 %v1455, 1e-05
    %v1459 = vrsqrt.pop %v1456
    %v1460 = vmul.f32 %v1459, %v1456
    %v1461 = vmul.f32 %v1460, %v1459
    %v1462 = vmul.f32 0.5, %v1461
    %v1463 = vsub.f32 1.5, %v1462
    %v1464 = vmul.f32 %v1459, %v1463
    %vm1465 = vweird.f32 %v1456
    %vm1466 = vweird.f32 %v1459
    %vm1467 = vmor %vm1465, %vm1466
    %v1468 = vsel %vm1467, %v1459, %v1464
    %v1469 = vrsqrt.pop %v1457
    %v1470 = vmul.f32 %v1469, %v1457
    %v1471 = vmul.f32 %v1470, %v1469
    %v1472 = vmul.f32 0.5, %v1471
    %v1473 = vsub.f32 1.5, %v1472
    %v1474 = vmul.f32 %v1469, %v1473
    %vm1475 = vweird.f32 %v1457
    %vm1476 = vweird.f32 %v1469
    %vm1477 = vmor %vm1475, %vm1476
    %v1478 = vsel %vm1477, %v1469, %v1474
    %v1479 = vrsqrt.pop %v1458
    %v1480 = vmul.f32 %v1479, %v1458
    %v1481 = vmul.f32 %v1480, %v1479
    %v1482 = vmul.f32 0.5, %v1481
    %v1483 = vsub.f32 1.5, %v1482
    %v1484 = vmul.f32 %v1479, %v1483
    %vm1485 = vweird.f32 %v1458
    %vm1486 = vweird.f32 %v1479
    %vm1487 = vmor %vm1485, %vm1486
    %v1488 = vsel %vm1487, %v1479, %v1484
    %v1489 = vmul.f32 %v1438, %v1468
    %v1490 = vmul.f32 %v1439, %v1478
    %v1491 = vmul.f32 %v1440, %v1488
    %s1492 = scalar_lea.vmem %s3, 2
    %v1493 = vld [vmem:[%s1492] sm:$0x1]
    %v1495 = vperm.slane %v1493, 0
    %v1497 = vmul.f32 %v1489, %v1495
    %v1498 = vmul.f32 %v1490, %v1495
    %v1499 = vmul.f32 %v1491, %v1495
    %s1500 = scalar_lea.vmem %s4, 2
    %v1501 = vld [vmem:[%s1500] sm:$0x1]
    %v1503 = vperm.slane %v1501, 0
    %v1505 = vadd.f32 %v1497, %v1503
    %v1506 = vadd.f32 %v1498, %v1503
    %v1507 = vadd.f32 %v1499, %v1503
    %v1508 = vld [vmem:[%s9] sm:$0xff]
    %v1509 = vld [vmem:[%s9 + $0x8] sm:$0xff]
    %v1510 = vld [vmem:[%s9 + $0x10] sm:$0xff]
    %v1511 = vld [vmem:[%s9 + $0x18] sm:$0xff]
    %v1512 = vld [vmem:[%s10] sm:$0x1]
    %v1514 = vperm.slane %v1512, 0
    %v1517 = vsel %vm159, %v1505, 0
    %v1520 = vsel %vm159, %v1506, 0
    %v1523 = vsel %vm159, %v1507, 0
    %1525 = vmatpush.msra.mxu0 0.0
    %1526 = vmatpush.msra.mxu0 0.0
    %1527 = vmatpush.msra.mxu0 0.0
    %1528 = vmatpush.msra.mxu0 0.0
    %1529 = vmatpush.msra.mxu0 0.0
    %1530 = vmatpush.msra.mxu0 0.0
    %1531 = vmatpush.msra.mxu0 0.0
    %1532 = vmatpush.msra.mxu0 0.0
    %1533 = vmatpush.msra.mxu0 0.0
    %1534 = vmatpush.msra.mxu0 0.0
    %1535 = vmatpush.msra.mxu0 0.0
    %1536 = vmatpush.msra.mxu0 0.0
    %1537 = vmatpush.msra.mxu0 %v1511
    %1538 = vmatpush.msra.mxu0 %v1510
    %1539 = vmatpush.msra.mxu0 %v1509
    %1540 = vmatpush.msra.mxu0 %v1508
    %1541 = vmatmul.f32.gmra.mxu0 %v1517
    %v1542 = vpop.f32.mrf.mxu0
    %v1543 = vadd.f32 %v1514, %v1542
    %1544 = vmatmul.f32.gmra.mxu0 %v1520
    %v1545 = vpop.f32.mrf.mxu0
    %v1546 = vadd.f32 %v1514, %v1545
    %1547 = vmatmul.f32.gmra.mxu0 %v1523
    %v1548 = vpop.f32.mrf.mxu0
    %v1549 = vadd.f32 %v1514, %v1548
    %1550 = vdwg.mxu0
    %v1551 = vmul.f32 %v1543, -1.702
    %v1552 = vmul.f32 %v1546, -1.702
    %v1553 = vmul.f32 %v1549, -1.702
    %v1554 = vmul.f32 %v1551, 1.442695
    %v1555 = vpow.pop %v1554
    %v1556 = vmul.f32 %v1552, 1.442695
    %v1557 = vpow.pop %v1556
    %v1558 = vmul.f32 %v1553, 1.442695
    %v1559 = vpow.pop %v1558
    %v1560 = vadd.f32 %v1555, 1.0
    %v1561 = vadd.f32 %v1557, 1.0
    %v1562 = vadd.f32 %v1559, 1.0
    %v1563 = vrcp.pop %v1560
    %v1564 = vmul.f32 %v1560, %v1563
    %v1565 = vsub.f32 1.0, %v1564
    %v1566 = vmul.f32 %v1563, %v1565
    %v1567 = vadd.f32 %v1563, %v1566
    %vm1568 = vweird.f32 %v1560
    %vm1569 = vweird.f32 %v1563
    %vm1570 = vmor %vm1568, %vm1569
    %v1571 = vsel %vm1570, %v1563, %v1567
    %v1572 = vand.u32 2147483647, %v1560
    %vm1573 = vcmp.eq.f32.partialorder %v1572, 8.507059e+37
    %v1574 = vand.u32 %v1560, 2147483648
    %v1575 = vor.u32 1.1754944e-38, %v1574
    %v1576 = vsel %vm1573, %v1575, %v1571
    %v1577 = vmul.f32 1.0, %v1576
    %v1578 = vrcp.pop %v1561
    %v1579 = vmul.f32 %v1561, %v1578
    %v1580 = vsub.f32 1.0, %v1579
    %v1581 = vmul.f32 %v1578, %v1580
    %v1582 = vadd.f32 %v1578, %v1581
    %vm1583 = vweird.f32 %v1561
    %vm1584 = vweird.f32 %v1578
    %vm1585 = vmor %vm1583, %vm1584
    %v1586 = vsel %vm1585, %v1578, %v1582
    %v1587 = vand.u32 2147483647, %v1561
    %vm1588 = vcmp.eq.f32.partialorder %v1587, 8.507059e+37
    %v1589 = vand.u32 %v1561, 2147483648
    %v1590 = vor.u32 1.1754944e-38, %v1589
    %v1591 = vsel %vm1588, %v1590, %v1586
    %v1592 = vmul.f32 1.0, %v1591
    %v1593 = vrcp.pop %v1562
    %v1594 = vmul.f32 %v1562, %v1593
    %v1595 = vsub.f32 1.0, %v1594
    %v1596 = vmul.f32 %v1593, %v1595
    %v1597 = vadd.f32 %v1593, %v1596
    %vm1598 = vweird.f32 %v1562
    %vm1599 = vweird.f32 %v1593
    %vm1600 = vmor %vm1598, %vm1599
    %v1601 = vsel %vm1600, %v1593, %v1597
    %v1602 = vand.u32 2147483647, %v1562
    %vm1603 = vcmp.eq.f32.partialorder %v1602, 8.507059e+37
    %v1604 = vand.u32 %v1562, 2147483648
    %v1605 = vor.u32 1.1754944e-38, %v1604
    %v1606 = vsel %vm1603, %v1605, %v1601
    %v1607 = vmul.f32 1.0, %v1606
    %v1608 = vmul.f32 %v1543, %v1577
    %v1609 = vmul.f32 %v1546, %v1592
    %v1610 = vmul.f32 %v1549, %v1607
    %v1611 = vld [vmem:[%s11] sm:$0xff]
    %v1612 = vld [vmem:[%s11 + $0x8] sm:$0xff]
    %v1613 = vld [vmem:[%s11 + $0x10] sm:$0xff]
    %v1614 = vld [vmem:[%s11 + $0x18] sm:$0xff]
    %v1615 = vld [vmem:[%s11 + $0x20] sm:$0xff]
    %v1616 = vld [vmem:[%s11 + $0x28] sm:$0xff]
    %v1617 = vld [vmem:[%s11 + $0x30] sm:$0xff]
    %v1618 = vld [vmem:[%s11 + $0x38] sm:$0xff]
    %v1619 = vld [vmem:[%s11 + $0x40] sm:$0xff]
    %v1620 = vld [vmem:[%s11 + $0x48] sm:$0xff]
    %v1621 = vld [vmem:[%s11 + $0x50] sm:$0xff]
    %v1622 = vld [vmem:[%s11 + $0x58] sm:$0xff]
    %v1623 = vld [vmem:[%s11 + $0x60] sm:$0xff]
    %v1624 = vld [vmem:[%s11 + $0x68] sm:$0xff]
    %v1625 = vld [vmem:[%s11 + $0x70] sm:$0xff]
    %v1626 = vld [vmem:[%s11 + $0x78] sm:$0xff]
    %1627 = vmatpush.msra.mxu0 %v1626
    %1628 = vmatpush.msra.mxu0 %v1625
    %1629 = vmatpush.msra.mxu0 %v1624
    %1630 = vmatpush.msra.mxu0 %v1623
    %1631 = vmatpush.msra.mxu0 %v1622
    %1632 = vmatpush.msra.mxu0 %v1621
    %1633 = vmatpush.msra.mxu0 %v1620
    %1634 = vmatpush.msra.mxu0 %v1619
    %1635 = vmatpush.msra.mxu0 %v1618
    %1636 = vmatpush.msra.mxu0 %v1617
    %1637 = vmatpush.msra.mxu0 %v1616
    %1638 = vmatpush.msra.mxu0 %v1615
    %1639 = vmatpush.msra.mxu0 %v1614
    %1640 = vmatpush.msra.mxu0 %v1613
    %1641 = vmatpush.msra.mxu0 %v1612
    %1642 = vmatpush.msra.mxu0 %v1611
    %1643 = vmatmul.f32.gmra.mxu0 %v1608
    %v1644 = vpop.f32.mrf.mxu0
    %v1645 = vadd.f32 0.0, %v1644
    %1646 = vmatmul.f32.gmra.mxu0 %v1609
    %v1647 = vpop.f32.mrf.mxu0
    %v1648 = vadd.f32 0.0, %v1647
    %1649 = vmatmul.f32.gmra.mxu0 %v1610
    %v1650 = vpop.f32.mrf.mxu0
    %v1651 = vadd.f32 0.0, %v1650
    %1652 = vdwg.mxu0
    %v1653 = vadd.f32 %v1423, %v1645
    %v1654 = vadd.f32 %v1424, %v1648
    %v1655 = vadd.f32 %v1425, %v1651
    %v1656 = vld [vmem:[%s12] sm:$0x1]
    %v1658 = vperm.slane %v1656, 0
    %v1660 = vadd.f32 %v1653, %v1658
    %v1661 = vadd.f32 %v1654, %v1658
    %v1662 = vadd.f32 %v1655, %v1658
    %v1663 = vsel %vm159, %v1660, 0.0
    %1664 = vadd.xlane.f32.xlu0 %v1663
    %v1665 = vpop.xlane.xlu0 %1664
    %v1666 = vsel %vm159, %v1661, 0.0
    %1667 = vadd.xlane.f32.xlu0 %v1666
    %v1668 = vpop.xlane.xlu0 %1667
    %v1669 = vsel %vm166, %v1662, 0.0
    %1670 = vadd.xlane.f32.xlu0 %v1669
    %v1671 = vpop.xlane.xlu0 %1670
    %v1672 = vmul.f32 %v1665, %v176
    %v1673 = vmul.f32 %v1668, %v176
    %v1674 = vmul.f32 %v1671, %v176
    %v1675 = vsub.f32 %v1660, %v1672
    %v1676 = vsub.f32 %v1661, %v1673
    %v1677 = vsub.f32 %v1662, %v1674
    %v1678 = vmul.f32 %v1675, %v1675
    %v1679 = vmul.f32 %v1676, %v1676
    %v1680 = vmul.f32 %v1677, %v1677
    %v1681 = vsel %vm159, %v1678, 0.0
    %1682 = vadd.xlane.f32.xlu0 %v1681
    %v1683 = vpop.xlane.xlu0 %1682
    %v1684 = vsel %vm159, %v1679, 0.0
    %1685 = vadd.xlane.f32.xlu0 %v1684
    %v1686 = vpop.xlane.xlu0 %1685
    %v1687 = vsel %vm166, %v1680, 0.0
    %1688 = vadd.xlane.f32.xlu0 %v1687
    %v1689 = vpop.xlane.xlu0 %1688
    %v1690 = vmul.f32 %v1683, %v176
    %v1691 = vmul.f32 %v1686, %v176
    %v1692 = vmul.f32 %v1689, %v176
    %v1693 = vadd.f32 %v1690, 1e-05
    %v1694 = vadd.f32 %v1691, 1e-05
    %v1695 = vadd.f32 %v1692, 1e-05
    %v1696 = vrsqrt.pop %v1693
    %v1697 = vmul.f32 %v1696, %v1693
    %v1698 = vmul.f32 %v1697, %v1696
    %v1699 = vmul.f32 0.5, %v1698
    %v1700 = vsub.f32 1.5, %v1699
    %v1701 = vmul.f32 %v1696, %v1700
    %vm1702 = vweird.f32 %v1693
    %vm1703 = vweird.f32 %v1696
    %vm1704 = vmor %vm1702, %vm1703
    %v1705 = vsel %vm1704, %v1696, %v1701
    %v1706 = vrsqrt.pop %v1694
    %v1707 = vmul.f32 %v1706, %v1694
    %v1708 = vmul.f32 %v1707, %v1706
    %v1709 = vmul.f32 0.5, %v1708
    %v1710 = vsub.f32 1.5, %v1709
    %v1711 = vmul.f32 %v1706, %v1710
    %vm1712 = vweird.f32 %v1694
    %vm1713 = vweird.f32 %v1706
    %vm1714 = vmor %vm1712, %vm1713
    %v1715 = vsel %vm1714, %v1706, %v1711
    %v1716 = vrsqrt.pop %v1695
    %v1717 = vmul.f32 %v1716, %v1695
    %v1718 = vmul.f32 %v1717, %v1716
    %v1719 = vmul.f32 0.5, %v1718
    %v1720 = vsub.f32 1.5, %v1719
    %v1721 = vmul.f32 %v1716, %v1720
    %vm1722 = vweird.f32 %v1695
    %vm1723 = vweird.f32 %v1716
    %vm1724 = vmor %vm1722, %vm1723
    %v1725 = vsel %vm1724, %v1716, %v1721
    %v1726 = vmul.f32 %v1675, %v1705
    %v1727 = vmul.f32 %v1676, %v1715
    %v1728 = vmul.f32 %v1677, %v1725
    %s1729 = scalar_lea.vmem %s3, 3
    %v1730 = vld [vmem:[%s1729] sm:$0x1]
    %v1732 = vperm.slane %v1730, 0
    %v1734 = vmul.f32 %v1726, %v1732
    %v1735 = vmul.f32 %v1727, %v1732
    %v1736 = vmul.f32 %v1728, %v1732
    %s1737 = scalar_lea.vmem %s4, 3
    %v1738 = vld [vmem:[%s1737] sm:$0x1]
    %v1740 = vperm.slane %v1738, 0
    %v1742 = vadd.f32 %v1734, %v1740
    %v1743 = vadd.f32 %v1735, %v1740
    %v1744 = vadd.f32 %v1736, %v1740
    %s1745 = scalar_lea.vmem %s8, 1
    %v1746 = vld [vmem:[%s1745] sm:$0x1]
    %s1747 = scalar_lea.vmem %s5, 384
    %v1748 = vld [vmem:[%s1747] sm:$0xff]
    %v1749 = vld [vmem:[%s1747 + $0x8] sm:$0xff]
    %v1750 = vld [vmem:[%s1747 + $0x10] sm:$0xff]
    %v1751 = vld [vmem:[%s1747 + $0x18] sm:$0xff]
    %s1752 = scalar_lea.vmem %s6, 12
    %v1753 = vld [vmem:[%s1752] sm:$0x1]
    %v1755 = vperm.slane %v1753, 0
    %v1758 = vsel %vm159, %v1742, 0
    %v1761 = vsel %vm159, %v1743, 0
    %v1764 = vsel %vm159, %v1744, 0
    %1766 = vmatpush.msra.mxu0 0.0
    %1767 = vmatpush.msra.mxu0 0.0
    %1768 = vmatpush.msra.mxu0 0.0
    %1769 = vmatpush.msra.mxu0 0.0
    %1770 = vmatpush.msra.mxu0 0.0
    %1771 = vmatpush.msra.mxu0 0.0
    %1772 = vmatpush.msra.mxu0 0.0
    %1773 = vmatpush.msra.mxu0 0.0
    %1774 = vmatpush.msra.mxu0 0.0
    %1775 = vmatpush.msra.mxu0 0.0
    %1776 = vmatpush.msra.mxu0 0.0
    %1777 = vmatpush.msra.mxu0 0.0
    %1778 = vmatpush.msra.mxu0 %v1751
    %1779 = vmatpush.msra.mxu0 %v1750
    %1780 = vmatpush.msra.mxu0 %v1749
    %1781 = vmatpush.msra.mxu0 %v1748
    %1782 = vmatmul.f32.gmra.mxu0 %v1758
    %v1783 = vpop.f32.mrf.mxu0
    %v1784 = vadd.f32 %v1755, %v1783
    %1785 = vmatmul.f32.gmra.mxu0 %v1761
    %v1786 = vpop.f32.mrf.mxu0
    %v1787 = vadd.f32 %v1755, %v1786
    %1788 = vmatmul.f32.gmra.mxu0 %v1764
    %v1789 = vpop.f32.mrf.mxu0
    %v1790 = vadd.f32 %v1755, %v1789
    %1791 = vdwg.mxu0
    %s1792 = scalar_lea.vmem %s5, 512
    %v1793 = vld [vmem:[%s1792] sm:$0xff]
    %v1794 = vld [vmem:[%s1792 + $0x8] sm:$0xff]
    %v1795 = vld [vmem:[%s1792 + $0x10] sm:$0xff]
    %v1796 = vld [vmem:[%s1792 + $0x18] sm:$0xff]
    %s1797 = scalar_lea.vmem %s6, 16
    %v1798 = vld [vmem:[%s1797] sm:$0x1]
    %v1800 = vperm.slane %v1798, 0
    %1802 = vmatpush.msra.mxu0 0.0
    %1803 = vmatpush.msra.mxu0 0.0
    %1804 = vmatpush.msra.mxu0 0.0
    %1805 = vmatpush.msra.mxu0 0.0
    %1806 = vmatpush.msra.mxu0 0.0
    %1807 = vmatpush.msra.mxu0 0.0
    %1808 = vmatpush.msra.mxu0 0.0
    %1809 = vmatpush.msra.mxu0 0.0
    %1810 = vmatpush.msra.mxu0 0.0
    %1811 = vmatpush.msra.mxu0 0.0
    %1812 = vmatpush.msra.mxu0 0.0
    %1813 = vmatpush.msra.mxu0 0.0
    %1814 = vmatpush.msra.mxu0 %v1796
    %1815 = vmatpush.msra.mxu0 %v1795
    %1816 = vmatpush.msra.mxu0 %v1794
    %1817 = vmatpush.msra.mxu0 %v1793
    %1818 = vmatmul.f32.gmra.mxu0 %v1758
    %v1819 = vpop.f32.mrf.mxu0
    %v1820 = vadd.f32 %v1800, %v1819
    %1821 = vmatmul.f32.gmra.mxu0 %v1761
    %v1822 = vpop.f32.mrf.mxu0
    %v1823 = vadd.f32 %v1800, %v1822
    %1824 = vmatmul.f32.gmra.mxu0 %v1764
    %v1825 = vpop.f32.mrf.mxu0
    %v1826 = vadd.f32 %v1800, %v1825
    %1827 = vdwg.mxu0
    %s1828 = scalar_lea.vmem %s5, 640
    %v1829 = vld [vmem:[%s1828] sm:$0xff]
    %v1830 = vld [vmem:[%s1828 + $0x8] sm:$0xff]
    %v1831 = vld [vmem:[%s1828 + $0x10] sm:$0xff]
    %v1832 = vld [vmem:[%s1828 + $0x18] sm:$0xff]
    %s1833 = scalar_lea.vmem %s6, 20
    %v1834 = vld [vmem:[%s1833] sm:$0x1]
    %v1836 = vperm.slane %v1834, 0
    %1838 = vmatpush.msra.mxu0 0.0
    %1839 = vmatpush.msra.mxu0 0.0
    %1840 = vmatpush.msra.mxu0 0.0
    %1841 = vmatpush.msra.mxu0 0.0
    %1842 = vmatpush.msra.mxu0 0.0
    %1843 = vmatpush.msra.mxu0 0.0
    %1844 = vmatpush.msra.mxu0 0.0
    %1845 = vmatpush.msra.mxu0 0.0
    %1846 = vmatpush.msra.mxu0 0.0
    %1847 = vmatpush.msra.mxu0 0.0
    %1848 = vmatpush.msra.mxu0 0.0
    %1849 = vmatpush.msra.mxu0 0.0
    %1850 = vmatpush.msra.mxu0 %v1832
    %1851 = vmatpush.msra.mxu0 %v1831
    %1852 = vmatpush.msra.mxu0 %v1830
    %1853 = vmatpush.msra.mxu0 %v1829
    %1854 = vmatmul.f32.gmra.mxu0 %v1758
    %v1855 = vpop.f32.mrf.mxu0
    %v1856 = vadd.f32 %v1836, %v1855
    %1857 = vmatmul.f32.gmra.mxu0 %v1761
    %v1858 = vpop.f32.mrf.mxu0
    %v1859 = vadd.f32 %v1836, %v1858
    %1860 = vmatmul.f32.gmra.mxu0 %v1764
    %v1861 = vpop.f32.mrf.mxu0
    %v1862 = vadd.f32 %v1836, %v1861
    %1863 = vdwg.mxu0
    %v1865 = vsel %vm449, %v1784, 0
    %v1868 = vsel %vm449, %v1787, 0
    %v1871 = vsel %vm449, %v1790, 0
    %v1874 = vsel %vm449, %v1820, 0
    %v1877 = vsel %vm449, %v1823, 0
    %v1880 = vsel %vm449, %v1826, 0
    %1882 = vmatpush.xpose.msra.mxu0 0.0
    %1883 = vmatpush.xpose.msra.mxu0 0.0
    %1884 = vmatpush.xpose.msra.mxu0 0.0
    %1885 = vmatpush.xpose.msra.mxu0 0.0
    %1886 = vmatpush.xpose.msra.mxu0 0.0
    %1887 = vmatpush.xpose.msra.mxu0 0.0
    %1888 = vmatpush.xpose.msra.mxu0 0.0
    %1889 = vmatpush.xpose.msra.mxu0 0.0
    %1890 = vmatpush.xpose.msra.mxu0 0.0
    %1891 = vmatpush.xpose.msra.mxu0 0.0
    %1892 = vmatpush.xpose.msra.mxu0 0.0
    %1893 = vmatpush.xpose.msra.mxu0 0.0
    %1894 = vmatpush.xpose.msra.mxu0 0.0
    %1895 = vmatpush.xpose.msra.mxu0 %v1880
    %1896 = vmatpush.xpose.msra.mxu0 %v1877
    %1897 = vmatpush.xpose.msra.mxu0 %v1874
    %1898 = vmatmul.f32.gmra.mxu0 %v1865
    %v1899 = vpop.f32.mrf.mxu0
    %v1900 = vadd.f32 0.0, %v1899
    %1901 = vmatmul.f32.gmra.mxu0 %v1868
    %v1902 = vpop.f32.mrf.mxu0
    %v1903 = vadd.f32 0.0, %v1902
    %1904 = vmatmul.f32.gmra.mxu0 %v1871
    %v1905 = vpop.f32.mrf.mxu0
    %v1906 = vadd.f32 0.0, %v1905
    %1907 = vdwg.mxu0
    %v1908 = vmul.f32 %v1900, 0.35355338
    %v1909 = vmul.f32 %v1903, 0.35355338
    %v1910 = vmul.f32 %v1906, 0.35355338
    %v1911 = vadd.f32 %v1908, %v248
    %v1912 = vadd.f32 %v1909, %v249
    %v1913 = vadd.f32 %v1910, %v250
    %v1914 = vsel %vm500, %v1911, -inf
    %1915 = vmax.xlane.f32.xlu0 %v1914
    %v1916 = vpop.xlane.xlu0 %1915
    %v1917 = vsel %vm500, %v1912, -inf
    %1918 = vmax.xlane.f32.xlu0 %v1917
    %v1919 = vpop.xlane.xlu0 %1918
    %v1920 = vsel %vm507, %v1913, -inf
    %1921 = vmax.xlane.f32.xlu0 %v1920
    %v1922 = vpop.xlane.xlu0 %1921
    %v1923 = vsub.f32 %v1911, %v1916
    %v1924 = vsub.f32 %v1912, %v1919
    %v1925 = vsub.f32 %v1913, %v1922
    %v1926 = vmul.f32 %v1923, 1.442695
    %v1927 = vpow.pop %v1926
    %v1928 = vmul.f32 %v1924, 1.442695
    %v1929 = vpow.pop %v1928
    %v1930 = vmul.f32 %v1925, 1.442695
    %v1931 = vpow.pop %v1930
    %v1932 = vsel %vm500, %v1927, 0.0
    %1933 = vadd.xlane.f32.xlu0 %v1932
    %v1934 = vpop.xlane.xlu0 %1933
    %v1935 = vsel %vm500, %v1929, 0.0
    %1936 = vadd.xlane.f32.xlu0 %v1935
    %v1937 = vpop.xlane.xlu0 %1936
    %v1938 = vsel %vm507, %v1931, 0.0
    %1939 = vadd.xlane.f32.xlu0 %v1938
    %v1940 = vpop.xlane.xlu0 %1939
    %v1941 = vrcp.pop %v1934
    %v1942 = vrcp.pop %v1937
    %v1943 = vrcp.pop %v1940
    %v1944 = vmul.f32 %v1927, %v1941
    %v1945 = vmul.f32 %v1929, %v1942
    %v1946 = vmul.f32 %v1931, %v1943
    %v1948 = vsel %vm500, %v1944, 0
    %v1951 = vsel %vm500, %v1945, 0
    %v1954 = vsel %vm500, %v1946, 0
    %v1957 = vsel %vm544, %v1862, 0
    %1959 = vmatpush.msra.mxu0 0.0
    %1960 = vmatpush.msra.mxu0 0.0
    %1961 = vmatpush.msra.mxu0 0.0
    %1962 = vmatpush.msra.mxu0 0.0
    %1963 = vmatpush.msra.mxu0 0.0
    %1964 = vmatpush.msra.mxu0 0.0
    %1965 = vmatpush.msra.mxu0 0.0
    %1966 = vmatpush.msra.mxu0 0.0
    %1967 = vmatpush.msra.mxu0 0.0
    %1968 = vmatpush.msra.mxu0 0.0
    %1969 = vmatpush.msra.mxu0 0.0
    %1970 = vmatpush.msra.mxu0 0.0
    %1971 = vmatpush.msra.mxu0 0.0
    %1972 = vmatpush.msra.mxu0 %v1957
    %1973 = vmatpush.msra.mxu0 %v1859
    %1974 = vmatpush.msra.mxu0 %v1856
    %1975 = vmatmul.f32.gmra.mxu0 %v1948
    %v1976 = vpop.f32.mrf.mxu0
    %v1977 = vadd.f32 0.0, %v1976
    %1978 = vmatmul.f32.gmra.mxu0 %v1951
    %v1979 = vpop.f32.mrf.mxu0
    %v1980 = vadd.f32 0.0, %v1979
    %1981 = vmatmul.f32.gmra.mxu0 %v1954
    %v1982 = vpop.f32.mrf.mxu0
    %v1983 = vadd.f32 0.0, %v1982
    %1984 = vdwg.mxu0
    %s1985 = scalar_lea.vmem %s7, 32
    %v1986 = vld [vmem:[%s1985] sm:$0xff]
    %v1988 = vsel %vm449, %v1977, 0
    %v1991 = vsel %vm449, %v1980, 0
    %v1994 = vsel %vm449, %v1983, 0
    %1996 = vmatpush.msra.mxu0 0.0
    %1997 = vmatpush.msra.mxu0 0.0
    %1998 = vmatpush.msra.mxu0 0.0
    %1999 = vmatpush.msra.mxu0 0.0
    %2000 = vmatpush.msra.mxu0 0.0
    %2001 = vmatpush.msra.mxu0 0.0
    %2002 = vmatpush.msra.mxu0 0.0
    %2003 = vmatpush.msra.mxu0 0.0
    %2004 = vmatpush.msra.mxu0 0.0
    %2005 = vmatpush.msra.mxu0 0.0
    %2006 = vmatpush.msra.mxu0 0.0
    %2007 = vmatpush.msra.mxu0 0.0
    %2008 = vmatpush.msra.mxu0 0.0
    %2009 = vmatpush.msra.mxu0 0.0
    %2010 = vmatpush.msra.mxu0 0.0
    %2011 = vmatpush.msra.mxu0 %v1986
    %2012 = vmatmul.f32.gmra.mxu0 %v1988
    %v2013 = vpop.f32.mrf.mxu0
    %v2014 = vadd.f32 0.0, %v2013
    %2015 = vmatmul.f32.gmra.mxu0 %v1991
    %v2016 = vpop.f32.mrf.mxu0
    %v2017 = vadd.f32 0.0, %v2016
    %2018 = vmatmul.f32.gmra.mxu0 %v1994
    %v2019 = vpop.f32.mrf.mxu0
    %v2020 = vadd.f32 0.0, %v2019
    %2021 = vdwg.mxu0
    %v2023 = vperm.slane %v1746, 0
    %v2025 = vadd.f32 %v2023, %v2014
    %v2026 = vadd.f32 %v2023, %v2017
    %v2027 = vadd.f32 %v2023, %v2020
    %s2028 = scalar_lea.vmem %s5, 416
    %v2029 = vld [vmem:[%s2028] sm:$0xff]
    %v2030 = vld [vmem:[%s2028 + $0x8] sm:$0xff]
    %v2031 = vld [vmem:[%s2028 + $0x10] sm:$0xff]
    %v2032 = vld [vmem:[%s2028 + $0x18] sm:$0xff]
    %s2033 = scalar_lea.vmem %s6, 13
    %v2034 = vld [vmem:[%s2033] sm:$0x1]
    %v2036 = vperm.slane %v2034, 0
    %2038 = vmatpush.msra.mxu0 0.0
    %2039 = vmatpush.msra.mxu0 0.0
    %2040 = vmatpush.msra.mxu0 0.0
    %2041 = vmatpush.msra.mxu0 0.0
    %2042 = vmatpush.msra.mxu0 0.0
    %2043 = vmatpush.msra.mxu0 0.0
    %2044 = vmatpush.msra.mxu0 0.0
    %2045 = vmatpush.msra.mxu0 0.0
    %2046 = vmatpush.msra.mxu0 0.0
    %2047 = vmatpush.msra.mxu0 0.0
    %2048 = vmatpush.msra.mxu0 0.0
    %2049 = vmatpush.msra.mxu0 0.0
    %2050 = vmatpush.msra.mxu0 %v2032
    %2051 = vmatpush.msra.mxu0 %v2031
    %2052 = vmatpush.msra.mxu0 %v2030
    %2053 = vmatpush.msra.mxu0 %v2029
    %2054 = vmatmul.f32.gmra.mxu0 %v1758
    %v2055 = vpop.f32.mrf.mxu0
    %v2056 = vadd.f32 %v2036, %v2055
    %2057 = vmatmul.f32.gmra.mxu0 %v1761
    %v2058 = vpop.f32.mrf.mxu0
    %v2059 = vadd.f32 %v2036, %v2058
    %2060 = vmatmul.f32.gmra.mxu0 %v1764
    %v2061 = vpop.f32.mrf.mxu0
    %v2062 = vadd.f32 %v2036, %v2061
    %2063 = vdwg.mxu0
    %s2064 = scalar_lea.vmem %s5, 544
    %v2065 = vld [vmem:[%s2064] sm:$0xff]
    %v2066 = vld [vmem:[%s2064 + $0x8] sm:$0xff]
    %v2067 = vld [vmem:[%s2064 + $0x10] sm:$0xff]
    %v2068 = vld [vmem:[%s2064 + $0x18] sm:$0xff]
    %s2069 = scalar_lea.vmem %s6, 17
    %v2070 = vld [vmem:[%s2069] sm:$0x1]
    %v2072 = vperm.slane %v2070, 0
    %2074 = vmatpush.msra.mxu0 0.0
    %2075 = vmatpush.msra.mxu0 0.0
    %2076 = vmatpush.msra.mxu0 0.0
    %2077 = vmatpush.msra.mxu0 0.0
    %2078 = vmatpush.msra.mxu0 0.0
    %2079 = vmatpush.msra.mxu0 0.0
    %2080 = vmatpush.msra.mxu0 0.0
    %2081 = vmatpush.msra.mxu0 0.0
    %2082 = vmatpush.msra.mxu0 0.0
    %2083 = vmatpush.msra.mxu0 0.0
    %2084 = vmatpush.msra.mxu0 0.0
    %2085 = vmatpush.msra.mxu0 0.0
    %2086 = vmatpush.msra.mxu0 %v2068
    %2087 = vmatpush.msra.mxu0 %v2067
    %2088 = vmatpush.msra.mxu0 %v2066
    %2089 = vmatpush.msra.mxu0 %v2065
    %2090 = vmatmul.f32.gmra.mxu0 %v1758
    %v2091 = vpop.f32.mrf.mxu0
    %v2092 = vadd.f32 %v2072, %v2091
    %2093 = vmatmul.f32.gmra.mxu0 %v1761
    %v2094 = vpop.f32.mrf.mxu0
    %v2095 = vadd.f32 %v2072, %v2094
    %2096 = vmatmul.f32.gmra.mxu0 %v1764
    %v2097 = vpop.f32.mrf.mxu0
    %v2098 = vadd.f32 %v2072, %v2097
    %2099 = vdwg.mxu0
    %s2100 = scalar_lea.vmem %s5, 672
    %v2101 = vld [vmem:[%s2100] sm:$0xff]
    %v2102 = vld [vmem:[%s2100 + $0x8] sm:$0xff]
    %v2103 = vld [vmem:[%s2100 + $0x10] sm:$0xff]
    %v2104 = vld [vmem:[%s2100 + $0x18] sm:$0xff]
    %s2105 = scalar_lea.vmem %s6, 21
    %v2106 = vld [vmem:[%s2105] sm:$0x1]
    %v2108 = vperm.slane %v2106, 0
    %2110 = vmatpush.msra.mxu0 0.0
    %2111 = vmatpush.msra.mxu0 0.0
    %2112 = vmatpush.msra.mxu0 0.0
    %2113 = vmatpush.msra.mxu0 0.0
    %2114 = vmatpush.msra.mxu0 0.0
    %2115 = vmatpush.msra.mxu0 0.0
    %2116 = vmatpush.msra.mxu0 0.0
    %2117 = vmatpush.msra.mxu0 0.0
    %2118 = vmatpush.msra.mxu0 0.0
    %2119 = vmatpush.msra.mxu0 0.0
    %2120 = vmatpush.msra.mxu0 0.0
    %2121 = vmatpush.msra.mxu0 0.0
    %2122 = vmatpush.msra.mxu0 %v2104
    %2123 = vmatpush.msra.mxu0 %v2103
    %2124 = vmatpush.msra.mxu0 %v2102
    %2125 = vmatpush.msra.mxu0 %v2101
    %2126 = vmatmul.f32.gmra.mxu0 %v1758
    %v2127 = vpop.f32.mrf.mxu0
    %v2128 = vadd.f32 %v2108, %v2127
    %2129 = vmatmul.f32.gmra.mxu0 %v1761
    %v2130 = vpop.f32.mrf.mxu0
    %v2131 = vadd.f32 %v2108, %v2130
    %2132 = vmatmul.f32.gmra.mxu0 %v1764
    %v2133 = vpop.f32.mrf.mxu0
    %v2134 = vadd.f32 %v2108, %v2133
    %2135 = vdwg.mxu0
    %v2137 = vsel %vm449, %v2056, 0
    %v2140 = vsel %vm449, %v2059, 0
    %v2143 = vsel %vm449, %v2062, 0
    %v2146 = vsel %vm449, %v2092, 0
    %v2149 = vsel %vm449, %v2095, 0
    %v2152 = vsel %vm449, %v2098, 0
    %2154 = vmatpush.xpose.msra.mxu0 0.0
    %2155 = vmatpush.xpose.msra.mxu0 0.0
    %2156 = vmatpush.xpose.msra.mxu0 0.0
    %2157 = vmatpush.xpose.msra.mxu0 0.0
    %2158 = vmatpush.xpose.msra.mxu0 0.0
    %2159 = vmatpush.xpose.msra.mxu0 0.0
    %2160 = vmatpush.xpose.msra.mxu0 0.0
    %2161 = vmatpush.xpose.msra.mxu0 0.0
    %2162 = vmatpush.xpose.msra.mxu0 0.0
    %2163 = vmatpush.xpose.msra.mxu0 0.0
    %2164 = vmatpush.xpose.msra.mxu0 0.0
    %2165 = vmatpush.xpose.msra.mxu0 0.0
    %2166 = vmatpush.xpose.msra.mxu0 0.0
    %2167 = vmatpush.xpose.msra.mxu0 %v2152
    %2168 = vmatpush.xpose.msra.mxu0 %v2149
    %2169 = vmatpush.xpose.msra.mxu0 %v2146
    %2170 = vmatmul.f32.gmra.mxu0 %v2137
    %v2171 = vpop.f32.mrf.mxu0
    %v2172 = vadd.f32 0.0, %v2171
    %2173 = vmatmul.f32.gmra.mxu0 %v2140
    %v2174 = vpop.f32.mrf.mxu0
    %v2175 = vadd.f32 0.0, %v2174
    %2176 = vmatmul.f32.gmra.mxu0 %v2143
    %v2177 = vpop.f32.mrf.mxu0
    %v2178 = vadd.f32 0.0, %v2177
    %2179 = vdwg.mxu0
    %v2180 = vmul.f32 %v2172, 0.35355338
    %v2181 = vmul.f32 %v2175, 0.35355338
    %v2182 = vmul.f32 %v2178, 0.35355338
    %v2183 = vadd.f32 %v2180, %v248
    %v2184 = vadd.f32 %v2181, %v249
    %v2185 = vadd.f32 %v2182, %v250
    %v2186 = vsel %vm500, %v2183, -inf
    %2187 = vmax.xlane.f32.xlu0 %v2186
    %v2188 = vpop.xlane.xlu0 %2187
    %v2189 = vsel %vm500, %v2184, -inf
    %2190 = vmax.xlane.f32.xlu0 %v2189
    %v2191 = vpop.xlane.xlu0 %2190
    %v2192 = vsel %vm507, %v2185, -inf
    %2193 = vmax.xlane.f32.xlu0 %v2192
    %v2194 = vpop.xlane.xlu0 %2193
    %v2195 = vsub.f32 %v2183, %v2188
    %v2196 = vsub.f32 %v2184, %v2191
    %v2197 = vsub.f32 %v2185, %v2194
    %v2198 = vmul.f32 %v2195, 1.442695
    %v2199 = vpow.pop %v2198
    %v2200 = vmul.f32 %v2196, 1.442695
    %v2201 = vpow.pop %v2200
    %v2202 = vmul.f32 %v2197, 1.442695
    %v2203 = vpow.pop %v2202
    %v2204 = vsel %vm500, %v2199, 0.0
    %2205 = vadd.xlane.f32.xlu0 %v2204
    %v2206 = vpop.xlane.xlu0 %2205
    %v2207 = vsel %vm500, %v2201, 0.0
    %2208 = vadd.xlane.f32.xlu0 %v2207
    %v2209 = vpop.xlane.xlu0 %2208
    %v2210 = vsel %vm507, %v2203, 0.0
    %2211 = vadd.xlane.f32.xlu0 %v2210
    %v2212 = vpop.xlane.xlu0 %2211
    %v2213 = vrcp.pop %v2206
    %v2214 = vrcp.pop %v2209
    %v2215 = vrcp.pop %v2212
    %v2216 = vmul.f32 %v2199, %v2213
    %v2217 = vmul.f32 %v2201, %v2214
    %v2218 = vmul.f32 %v2203, %v2215
    %v2220 = vsel %vm500, %v2216, 0
    %v2223 = vsel %vm500, %v2217, 0
    %v2226 = vsel %vm500, %v2218, 0
    %v2229 = vsel %vm544, %v2134, 0
    %2231 = vmatpush.msra.mxu0 0.0
    %2232 = vmatpush.msra.mxu0 0.0
    %2233 = vmatpush.msra.mxu0 0.0
    %2234 = vmatpush.msra.mxu0 0.0
    %2235 = vmatpush.msra.mxu0 0.0
    %2236 = vmatpush.msra.mxu0 0.0
    %2237 = vmatpush.msra.mxu0 0.0
    %2238 = vmatpush.msra.mxu0 0.0
    %2239 = vmatpush.msra.mxu0 0.0
    %2240 = vmatpush.msra.mxu0 0.0
    %2241 = vmatpush.msra.mxu0 0.0
    %2242 = vmatpush.msra.mxu0 0.0
    %2243 = vmatpush.msra.mxu0 0.0
    %2244 = vmatpush.msra.mxu0 %v2229
    %2245 = vmatpush.msra.mxu0 %v2131
    %2246 = vmatpush.msra.mxu0 %v2128
    %2247 = vmatmul.f32.gmra.mxu0 %v2220
    %v2248 = vpop.f32.mrf.mxu0
    %v2249 = vadd.f32 0.0, %v2248
    %2250 = vmatmul.f32.gmra.mxu0 %v2223
    %v2251 = vpop.f32.mrf.mxu0
    %v2252 = vadd.f32 0.0, %v2251
    %2253 = vmatmul.f32.gmra.mxu0 %v2226
    %v2254 = vpop.f32.mrf.mxu0
    %v2255 = vadd.f32 0.0, %v2254
    %2256 = vdwg.mxu0
    %s2257 = scalar_lea.vmem %s7, 40
    %v2258 = vld [vmem:[%s2257] sm:$0xff]
    %v2260 = vsel %vm449, %v2249, 0
    %v2263 = vsel %vm449, %v2252, 0
    %v2266 = vsel %vm449, %v2255, 0
    %2268 = vmatpush.msra.mxu0 0.0
    %2269 = vmatpush.msra.mxu0 0.0
    %2270 = vmatpush.msra.mxu0 0.0
    %2271 = vmatpush.msra.mxu0 0.0
    %2272 = vmatpush.msra.mxu0 0.0
    %2273 = vmatpush.msra.mxu0 0.0
    %2274 = vmatpush.msra.mxu0 0.0
    %2275 = vmatpush.msra.mxu0 0.0
    %2276 = vmatpush.msra.mxu0 0.0
    %2277 = vmatpush.msra.mxu0 0.0
    %2278 = vmatpush.msra.mxu0 0.0
    %2279 = vmatpush.msra.mxu0 0.0
    %2280 = vmatpush.msra.mxu0 0.0
    %2281 = vmatpush.msra.mxu0 0.0
    %2282 = vmatpush.msra.mxu0 0.0
    %2283 = vmatpush.msra.mxu0 %v2258
    %2284 = vmatmul.f32.gmra.mxu0 %v2260
    %v2285 = vpop.f32.mrf.mxu0
    %v2286 = vadd.f32 0.0, %v2285
    %2287 = vmatmul.f32.gmra.mxu0 %v2263
    %v2288 = vpop.f32.mrf.mxu0
    %v2289 = vadd.f32 0.0, %v2288
    %2290 = vmatmul.f32.gmra.mxu0 %v2266
    %v2291 = vpop.f32.mrf.mxu0
    %v2292 = vadd.f32 0.0, %v2291
    %2293 = vdwg.mxu0
    %v2294 = vadd.f32 %v2025, %v2286
    %v2295 = vadd.f32 %v2026, %v2289
    %v2296 = vadd.f32 %v2027, %v2292
    %s2297 = scalar_lea.vmem %s5, 448
    %v2298 = vld [vmem:[%s2297] sm:$0xff]
    %v2299 = vld [vmem:[%s2297 + $0x8] sm:$0xff]
    %v2300 = vld [vmem:[%s2297 + $0x10] sm:$0xff]
    %v2301 = vld [vmem:[%s2297 + $0x18] sm:$0xff]
    %s2302 = scalar_lea.vmem %s6, 14
    %v2303 = vld [vmem:[%s2302] sm:$0x1]
    %v2305 = vperm.slane %v2303, 0
    %2307 = vmatpush.msra.mxu0 0.0
    %2308 = vmatpush.msra.mxu0 0.0
    %2309 = vmatpush.msra.mxu0 0.0
    %2310 = vmatpush.msra.mxu0 0.0
    %2311 = vmatpush.msra.mxu0 0.0
    %2312 = vmatpush.msra.mxu0 0.0
    %2313 = vmatpush.msra.mxu0 0.0
    %2314 = vmatpush.msra.mxu0 0.0
    %2315 = vmatpush.msra.mxu0 0.0
    %2316 = vmatpush.msra.mxu0 0.0
    %2317 = vmatpush.msra.mxu0 0.0
    %2318 = vmatpush.msra.mxu0 0.0
    %2319 = vmatpush.msra.mxu0 %v2301
    %2320 = vmatpush.msra.mxu0 %v2300
    %2321 = vmatpush.msra.mxu0 %v2299
    %2322 = vmatpush.msra.mxu0 %v2298
    %2323 = vmatmul.f32.gmra.mxu0 %v1758
    %v2324 = vpop.f32.mrf.mxu0
    %v2325 = vadd.f32 %v2305, %v2324
    %2326 = vmatmul.f32.gmra.mxu0 %v1761
    %v2327 = vpop.f32.mrf.mxu0
    %v2328 = vadd.f32 %v2305, %v2327
    %2329 = vmatmul.f32.gmra.mxu0 %v1764
    %v2330 = vpop.f32.mrf.mxu0
    %v2331 = vadd.f32 %v2305, %v2330
    %2332 = vdwg.mxu0
    %s2333 = scalar_lea.vmem %s5, 576
    %v2334 = vld [vmem:[%s2333] sm:$0xff]
    %v2335 = vld [vmem:[%s2333 + $0x8] sm:$0xff]
    %v2336 = vld [vmem:[%s2333 + $0x10] sm:$0xff]
    %v2337 = vld [vmem:[%s2333 + $0x18] sm:$0xff]
    %s2338 = scalar_lea.vmem %s6, 18
    %v2339 = vld [vmem:[%s2338] sm:$0x1]
    %v2341 = vperm.slane %v2339, 0
    %2343 = vmatpush.msra.mxu0 0.0
    %2344 = vmatpush.msra.mxu0 0.0
    %2345 = vmatpush.msra.mxu0 0.0
    %2346 = vmatpush.msra.mxu0 0.0
    %2347 = vmatpush.msra.mxu0 0.0
    %2348 = vmatpush.msra.mxu0 0.0
    %2349 = vmatpush.msra.mxu0 0.0
    %2350 = vmatpush.msra.mxu0 0.0
    %2351 = vmatpush.msra.mxu0 0.0
    %2352 = vmatpush.msra.mxu0 0.0
    %2353 = vmatpush.msra.mxu0 0.0
    %2354 = vmatpush.msra.mxu0 0.0
    %2355 = vmatpush.msra.mxu0 %v2337
    %2356 = vmatpush.msra.mxu0 %v2336
    %2357 = vmatpush.msra.mxu0 %v2335
    %2358 = vmatpush.msra.mxu0 %v2334
    %2359 = vmatmul.f32.gmra.mxu0 %v1758
    %v2360 = vpop.f32.mrf.mxu0
    %v2361 = vadd.f32 %v2341, %v2360
    %2362 = vmatmul.f32.gmra.mxu0 %v1761
    %v2363 = vpop.f32.mrf.mxu0
    %v2364 = vadd.f32 %v2341, %v2363
    %2365 = vmatmul.f32.gmra.mxu0 %v1764
    %v2366 = vpop.f32.mrf.mxu0
    %v2367 = vadd.f32 %v2341, %v2366
    %2368 = vdwg.mxu0
    %s2369 = scalar_lea.vmem %s5, 704
    %v2370 = vld [vmem:[%s2369] sm:$0xff]
    %v2371 = vld [vmem:[%s2369 + $0x8] sm:$0xff]
    %v2372 = vld [vmem:[%s2369 + $0x10] sm:$0xff]
    %v2373 = vld [vmem:[%s2369 + $0x18] sm:$0xff]
    %s2374 = scalar_lea.vmem %s6, 22
    %v2375 = vld [vmem:[%s2374] sm:$0x1]
    %v2377 = vperm.slane %v2375, 0
    %2379 = vmatpush.msra.mxu0 0.0
    %2380 = vmatpush.msra.mxu0 0.0
    %2381 = vmatpush.msra.mxu0 0.0
    %2382 = vmatpush.msra.mxu0 0.0
    %2383 = vmatpush.msra.mxu0 0.0
    %2384 = vmatpush.msra.mxu0 0.0
    %2385 = vmatpush.msra.mxu0 0.0
    %2386 = vmatpush.msra.mxu0 0.0
    %2387 = vmatpush.msra.mxu0 0.0
    %2388 = vmatpush.msra.mxu0 0.0
    %2389 = vmatpush.msra.mxu0 0.0
    %2390 = vmatpush.msra.mxu0 0.0
    %2391 = vmatpush.msra.mxu0 %v2373
    %2392 = vmatpush.msra.mxu0 %v2372
    %2393 = vmatpush.msra.mxu0 %v2371
    %2394 = vmatpush.msra.mxu0 %v2370
    %2395 = vmatmul.f32.gmra.mxu0 %v1758
    %v2396 = vpop.f32.mrf.mxu0
    %v2397 = vadd.f32 %v2377, %v2396
    %2398 = vmatmul.f32.gmra.mxu0 %v1761
    %v2399 = vpop.f32.mrf.mxu0
    %v2400 = vadd.f32 %v2377, %v2399
    %2401 = vmatmul.f32.gmra.mxu0 %v1764
    %v2402 = vpop.f32.mrf.mxu0
    %v2403 = vadd.f32 %v2377, %v2402
    %2404 = vdwg.mxu0
    %v2406 = vsel %vm449, %v2325, 0
    %v2409 = vsel %vm449, %v2328, 0
    %v2412 = vsel %vm449, %v2331, 0
    %v2415 = vsel %vm449, %v2361, 0
    %v2418 = vsel %vm449, %v2364, 0
    %v2421 = vsel %vm449, %v2367, 0
    %2423 = vmatpush.xpose.msra.mxu0 0.0
    %2424 = vmatpush.xpose.msra.mxu0 0.0
    %2425 = vmatpush.xpose.msra.mxu0 0.0
    %2426 = vmatpush.xpose.msra.mxu0 0.0
    %2427 = vmatpush.xpose.msra.mxu0 0.0
    %2428 = vmatpush.xpose.msra.mxu0 0.0
    %2429 = vmatpush.xpose.msra.mxu0 0.0
    %2430 = vmatpush.xpose.msra.mxu0 0.0
    %2431 = vmatpush.xpose.msra.mxu0 0.0
    %2432 = vmatpush.xpose.msra.mxu0 0.0
    %2433 = vmatpush.xpose.msra.mxu0 0.0
    %2434 = vmatpush.xpose.msra.mxu0 0.0
    %2435 = vmatpush.xpose.msra.mxu0 0.0
    %2436 = vmatpush.xpose.msra.mxu0 %v2421
    %2437 = vmatpush.xpose.msra.mxu0 %v2418
    %2438 = vmatpush.xpose.msra.mxu0 %v2415
    %2439 = vmatmul.f32.gmra.mxu0 %v2406
    %v2440 = vpop.f32.mrf.mxu0
    %v2441 = vadd.f32 0.0, %v2440
    %2442 = vmatmul.f32.gmra.mxu0 %v2409
    %v2443 = vpop.f32.mrf.mxu0
    %v2444 = vadd.f32 0.0, %v2443
    %2445 = vmatmul.f32.gmra.mxu0 %v2412
    %v2446 = vpop.f32.mrf.mxu0
    %v2447 = vadd.f32 0.0, %v2446
    %2448 = vdwg.mxu0
    %v2449 = vmul.f32 %v2441, 0.35355338
    %v2450 = vmul.f32 %v2444, 0.35355338
    %v2451 = vmul.f32 %v2447, 0.35355338
    %v2452 = vadd.f32 %v2449, %v248
    %v2453 = vadd.f32 %v2450, %v249
    %v2454 = vadd.f32 %v2451, %v250
    %v2455 = vsel %vm500, %v2452, -inf
    %2456 = vmax.xlane.f32.xlu0 %v2455
    %v2457 = vpop.xlane.xlu0 %2456
    %v2458 = vsel %vm500, %v2453, -inf
    %2459 = vmax.xlane.f32.xlu0 %v2458
    %v2460 = vpop.xlane.xlu0 %2459
    %v2461 = vsel %vm507, %v2454, -inf
    %2462 = vmax.xlane.f32.xlu0 %v2461
    %v2463 = vpop.xlane.xlu0 %2462
    %v2464 = vsub.f32 %v2452, %v2457
    %v2465 = vsub.f32 %v2453, %v2460
    %v2466 = vsub.f32 %v2454, %v2463
    %v2467 = vmul.f32 %v2464, 1.442695
    %v2468 = vpow.pop %v2467
    %v2469 = vmul.f32 %v2465, 1.442695
    %v2470 = vpow.pop %v2469
    %v2471 = vmul.f32 %v2466, 1.442695
    %v2472 = vpow.pop %v2471
    %v2473 = vsel %vm500, %v2468, 0.0
    %2474 = vadd.xlane.f32.xlu0 %v2473
    %v2475 = vpop.xlane.xlu0 %2474
    %v2476 = vsel %vm500, %v2470, 0.0
    %2477 = vadd.xlane.f32.xlu0 %v2476
    %v2478 = vpop.xlane.xlu0 %2477
    %v2479 = vsel %vm507, %v2472, 0.0
    %2480 = vadd.xlane.f32.xlu0 %v2479
    %v2481 = vpop.xlane.xlu0 %2480
    %v2482 = vrcp.pop %v2475
    %v2483 = vrcp.pop %v2478
    %v2484 = vrcp.pop %v2481
    %v2485 = vmul.f32 %v2468, %v2482
    %v2486 = vmul.f32 %v2470, %v2483
    %v2487 = vmul.f32 %v2472, %v2484
    %v2489 = vsel %vm500, %v2485, 0
    %v2492 = vsel %vm500, %v2486, 0
    %v2495 = vsel %vm500, %v2487, 0
    %v2498 = vsel %vm544, %v2403, 0
    %2500 = vmatpush.msra.mxu0 0.0
    %2501 = vmatpush.msra.mxu0 0.0
    %2502 = vmatpush.msra.mxu0 0.0
    %2503 = vmatpush.msra.mxu0 0.0
    %2504 = vmatpush.msra.mxu0 0.0
    %2505 = vmatpush.msra.mxu0 0.0
    %2506 = vmatpush.msra.mxu0 0.0
    %2507 = vmatpush.msra.mxu0 0.0
    %2508 = vmatpush.msra.mxu0 0.0
    %2509 = vmatpush.msra.mxu0 0.0
    %2510 = vmatpush.msra.mxu0 0.0
    %2511 = vmatpush.msra.mxu0 0.0
    %2512 = vmatpush.msra.mxu0 0.0
    %2513 = vmatpush.msra.mxu0 %v2498
    %2514 = vmatpush.msra.mxu0 %v2400
    %2515 = vmatpush.msra.mxu0 %v2397
    %2516 = vmatmul.f32.gmra.mxu0 %v2489
    %v2517 = vpop.f32.mrf.mxu0
    %v2518 = vadd.f32 0.0, %v2517
    %2519 = vmatmul.f32.gmra.mxu0 %v2492
    %v2520 = vpop.f32.mrf.mxu0
    %v2521 = vadd.f32 0.0, %v2520
    %2522 = vmatmul.f32.gmra.mxu0 %v2495
    %v2523 = vpop.f32.mrf.mxu0
    %v2524 = vadd.f32 0.0, %v2523
    %2525 = vdwg.mxu0
    %s2526 = scalar_lea.vmem %s7, 48
    %v2527 = vld [vmem:[%s2526] sm:$0xff]
    %v2529 = vsel %vm449, %v2518, 0
    %v2532 = vsel %vm449, %v2521, 0
    %v2535 = vsel %vm449, %v2524, 0
    %2537 = vmatpush.msra.mxu0 0.0
    %2538 = vmatpush.msra.mxu0 0.0
    %2539 = vmatpush.msra.mxu0 0.0
    %2540 = vmatpush.msra.mxu0 0.0
    %2541 = vmatpush.msra.mxu0 0.0
    %2542 = vmatpush.msra.mxu0 0.0
    %2543 = vmatpush.msra.mxu0 0.0
    %2544 = vmatpush.msra.mxu0 0.0
    %2545 = vmatpush.msra.mxu0 0.0
    %2546 = vmatpush.msra.mxu0 0.0
    %2547 = vmatpush.msra.mxu0 0.0
    %2548 = vmatpush.msra.mxu0 0.0
    %2549 = vmatpush.msra.mxu0 0.0
    %2550 = vmatpush.msra.mxu0 0.0
    %2551 = vmatpush.msra.mxu0 0.0
    %2552 = vmatpush.msra.mxu0 %v2527
    %2553 = vmatmul.f32.gmra.mxu0 %v2529
    %v2554 = vpop.f32.mrf.mxu0
    %v2555 = vadd.f32 0.0, %v2554
    %2556 = vmatmul.f32.gmra.mxu0 %v2532
    %v2557 = vpop.f32.mrf.mxu0
    %v2558 = vadd.f32 0.0, %v2557
    %2559 = vmatmul.f32.gmra.mxu0 %v2535
    %v2560 = vpop.f32.mrf.mxu0
    %v2561 = vadd.f32 0.0, %v2560
    %2562 = vdwg.mxu0
    %v2563 = vadd.f32 %v2294, %v2555
    %v2564 = vadd.f32 %v2295, %v2558
    %v2565 = vadd.f32 %v2296, %v2561
    %s2566 = scalar_lea.vmem %s5, 480
    %v2567 = vld [vmem:[%s2566] sm:$0xff]
    %v2568 = vld [vmem:[%s2566 + $0x8] sm:$0xff]
    %v2569 = vld [vmem:[%s2566 + $0x10] sm:$0xff]
    %v2570 = vld [vmem:[%s2566 + $0x18] sm:$0xff]
    %s2571 = scalar_lea.vmem %s6, 15
    %v2572 = vld [vmem:[%s2571] sm:$0x1]
    %v2574 = vperm.slane %v2572, 0
    %2576 = vmatpush.msra.mxu0 0.0
    %2577 = vmatpush.msra.mxu0 0.0
    %2578 = vmatpush.msra.mxu0 0.0
    %2579 = vmatpush.msra.mxu0 0.0
    %2580 = vmatpush.msra.mxu0 0.0
    %2581 = vmatpush.msra.mxu0 0.0
    %2582 = vmatpush.msra.mxu0 0.0
    %2583 = vmatpush.msra.mxu0 0.0
    %2584 = vmatpush.msra.mxu0 0.0
    %2585 = vmatpush.msra.mxu0 0.0
    %2586 = vmatpush.msra.mxu0 0.0
    %2587 = vmatpush.msra.mxu0 0.0
    %2588 = vmatpush.msra.mxu0 %v2570
    %2589 = vmatpush.msra.mxu0 %v2569
    %2590 = vmatpush.msra.mxu0 %v2568
    %2591 = vmatpush.msra.mxu0 %v2567
    %2592 = vmatmul.f32.gmra.mxu0 %v1758
    %v2593 = vpop.f32.mrf.mxu0
    %v2594 = vadd.f32 %v2574, %v2593
    %2595 = vmatmul.f32.gmra.mxu0 %v1761
    %v2596 = vpop.f32.mrf.mxu0
    %v2597 = vadd.f32 %v2574, %v2596
    %2598 = vmatmul.f32.gmra.mxu0 %v1764
    %v2599 = vpop.f32.mrf.mxu0
    %v2600 = vadd.f32 %v2574, %v2599
    %2601 = vdwg.mxu0
    %s2602 = scalar_lea.vmem %s5, 608
    %v2603 = vld [vmem:[%s2602] sm:$0xff]
    %v2604 = vld [vmem:[%s2602 + $0x8] sm:$0xff]
    %v2605 = vld [vmem:[%s2602 + $0x10] sm:$0xff]
    %v2606 = vld [vmem:[%s2602 + $0x18] sm:$0xff]
    %s2607 = scalar_lea.vmem %s6, 19
    %v2608 = vld [vmem:[%s2607] sm:$0x1]
    %v2610 = vperm.slane %v2608, 0
    %2612 = vmatpush.msra.mxu0 0.0
    %2613 = vmatpush.msra.mxu0 0.0
    %2614 = vmatpush.msra.mxu0 0.0
    %2615 = vmatpush.msra.mxu0 0.0
    %2616 = vmatpush.msra.mxu0 0.0
    %2617 = vmatpush.msra.mxu0 0.0
    %2618 = vmatpush.msra.mxu0 0.0
    %2619 = vmatpush.msra.mxu0 0.0
    %2620 = vmatpush.msra.mxu0 0.0
    %2621 = vmatpush.msra.mxu0 0.0
    %2622 = vmatpush.msra.mxu0 0.0
    %2623 = vmatpush.msra.mxu0 0.0
    %2624 = vmatpush.msra.mxu0 %v2606
    %2625 = vmatpush.msra.mxu0 %v2605
    %2626 = vmatpush.msra.mxu0 %v2604
    %2627 = vmatpush.msra.mxu0 %v2603
    %2628 = vmatmul.f32.gmra.mxu0 %v1758
    %v2629 = vpop.f32.mrf.mxu0
    %v2630 = vadd.f32 %v2610, %v2629
    %2631 = vmatmul.f32.gmra.mxu0 %v1761
    %v2632 = vpop.f32.mrf.mxu0
    %v2633 = vadd.f32 %v2610, %v2632
    %2634 = vmatmul.f32.gmra.mxu0 %v1764
    %v2635 = vpop.f32.mrf.mxu0
    %v2636 = vadd.f32 %v2610, %v2635
    %2637 = vdwg.mxu0
    %s2638 = scalar_lea.vmem %s5, 736
    %v2639 = vld [vmem:[%s2638] sm:$0xff]
    %v2640 = vld [vmem:[%s2638 + $0x8] sm:$0xff]
    %v2641 = vld [vmem:[%s2638 + $0x10] sm:$0xff]
    %v2642 = vld [vmem:[%s2638 + $0x18] sm:$0xff]
    %s2643 = scalar_lea.vmem %s6, 23
    %v2644 = vld [vmem:[%s2643] sm:$0x1]
    %v2646 = vperm.slane %v2644, 0
    %2648 = vmatpush.msra.mxu0 0.0
    %2649 = vmatpush.msra.mxu0 0.0
    %2650 = vmatpush.msra.mxu0 0.0
    %2651 = vmatpush.msra.mxu0 0.0
    %2652 = vmatpush.msra.mxu0 0.0
    %2653 = vmatpush.msra.mxu0 0.0
    %2654 = vmatpush.msra.mxu0 0.0
    %2655 = vmatpush.msra.mxu0 0.0
    %2656 = vmatpush.msra.mxu0 0.0
    %2657 = vmatpush.msra.mxu0 0.0
    %2658 = vmatpush.msra.mxu0 0.0
    %2659 = vmatpush.msra.mxu0 0.0
    %2660 = vmatpush.msra.mxu0 %v2642
    %2661 = vmatpush.msra.mxu0 %v2641
    %2662 = vmatpush.msra.mxu0 %v2640
    %2663 = vmatpush.msra.mxu0 %v2639
    %2664 = vmatmul.f32.gmra.mxu0 %v1758
    %v2665 = vpop.f32.mrf.mxu0
    %v2666 = vadd.f32 %v2646, %v2665
    %2667 = vmatmul.f32.gmra.mxu0 %v1761
    %v2668 = vpop.f32.mrf.mxu0
    %v2669 = vadd.f32 %v2646, %v2668
    %2670 = vmatmul.f32.gmra.mxu0 %v1764
    %v2671 = vpop.f32.mrf.mxu0
    %v2672 = vadd.f32 %v2646, %v2671
    %2673 = vdwg.mxu0
    %v2675 = vsel %vm449, %v2594, 0
    %v2678 = vsel %vm449, %v2597, 0
    %v2681 = vsel %vm449, %v2600, 0
    %v2684 = vsel %vm449, %v2630, 0
    %v2687 = vsel %vm449, %v2633, 0
    %v2690 = vsel %vm449, %v2636, 0
    %2692 = vmatpush.xpose.msra.mxu0 0.0
    %2693 = vmatpush.xpose.msra.mxu0 0.0
    %2694 = vmatpush.xpose.msra.mxu0 0.0
    %2695 = vmatpush.xpose.msra.mxu0 0.0
    %2696 = vmatpush.xpose.msra.mxu0 0.0
    %2697 = vmatpush.xpose.msra.mxu0 0.0
    %2698 = vmatpush.xpose.msra.mxu0 0.0
    %2699 = vmatpush.xpose.msra.mxu0 0.0
    %2700 = vmatpush.xpose.msra.mxu0 0.0
    %2701 = vmatpush.xpose.msra.mxu0 0.0
    %2702 = vmatpush.xpose.msra.mxu0 0.0
    %2703 = vmatpush.xpose.msra.mxu0 0.0
    %2704 = vmatpush.xpose.msra.mxu0 0.0
    %2705 = vmatpush.xpose.msra.mxu0 %v2690
    %2706 = vmatpush.xpose.msra.mxu0 %v2687
    %2707 = vmatpush.xpose.msra.mxu0 %v2684
    %2708 = vmatmul.f32.gmra.mxu0 %v2675
    %v2709 = vpop.f32.mrf.mxu0
    %v2710 = vadd.f32 0.0, %v2709
    %2711 = vmatmul.f32.gmra.mxu0 %v2678
    %v2712 = vpop.f32.mrf.mxu0
    %v2713 = vadd.f32 0.0, %v2712
    %2714 = vmatmul.f32.gmra.mxu0 %v2681
    %v2715 = vpop.f32.mrf.mxu0
    %v2716 = vadd.f32 0.0, %v2715
    %2717 = vdwg.mxu0
    %v2718 = vmul.f32 %v2710, 0.35355338
    %v2719 = vmul.f32 %v2713, 0.35355338
    %v2720 = vmul.f32 %v2716, 0.35355338
    %v2721 = vadd.f32 %v2718, %v248
    %v2722 = vadd.f32 %v2719, %v249
    %v2723 = vadd.f32 %v2720, %v250
    %v2724 = vsel %vm500, %v2721, -inf
    %2725 = vmax.xlane.f32.xlu0 %v2724
    %v2726 = vpop.xlane.xlu0 %2725
    %v2727 = vsel %vm500, %v2722, -inf
    %2728 = vmax.xlane.f32.xlu0 %v2727
    %v2729 = vpop.xlane.xlu0 %2728
    %v2730 = vsel %vm507, %v2723, -inf
    %2731 = vmax.xlane.f32.xlu0 %v2730
    %v2732 = vpop.xlane.xlu0 %2731
    %v2733 = vsub.f32 %v2721, %v2726
    %v2734 = vsub.f32 %v2722, %v2729
    %v2735 = vsub.f32 %v2723, %v2732
    %v2736 = vmul.f32 %v2733, 1.442695
    %v2737 = vpow.pop %v2736
    %v2738 = vmul.f32 %v2734, 1.442695
    %v2739 = vpow.pop %v2738
    %v2740 = vmul.f32 %v2735, 1.442695
    %v2741 = vpow.pop %v2740
    %v2742 = vsel %vm500, %v2737, 0.0
    %2743 = vadd.xlane.f32.xlu0 %v2742
    %v2744 = vpop.xlane.xlu0 %2743
    %v2745 = vsel %vm500, %v2739, 0.0
    %2746 = vadd.xlane.f32.xlu0 %v2745
    %v2747 = vpop.xlane.xlu0 %2746
    %v2748 = vsel %vm507, %v2741, 0.0
    %2749 = vadd.xlane.f32.xlu0 %v2748
    %v2750 = vpop.xlane.xlu0 %2749
    %v2751 = vrcp.pop %v2744
    %v2752 = vrcp.pop %v2747
    %v2753 = vrcp.pop %v2750
    %v2754 = vmul.f32 %v2737, %v2751
    %v2755 = vmul.f32 %v2739, %v2752
    %v2756 = vmul.f32 %v2741, %v2753
    %v2758 = vsel %vm500, %v2754, 0
    %v2761 = vsel %vm500, %v2755, 0
    %v2764 = vsel %vm500, %v2756, 0
    %v2767 = vsel %vm544, %v2672, 0
    %2769 = vmatpush.msra.mxu0 0.0
    %2770 = vmatpush.msra.mxu0 0.0
    %2771 = vmatpush.msra.mxu0 0.0
    %2772 = vmatpush.msra.mxu0 0.0
    %2773 = vmatpush.msra.mxu0 0.0
    %2774 = vmatpush.msra.mxu0 0.0
    %2775 = vmatpush.msra.mxu0 0.0
    %2776 = vmatpush.msra.mxu0 0.0
    %2777 = vmatpush.msra.mxu0 0.0
    %2778 = vmatpush.msra.mxu0 0.0
    %2779 = vmatpush.msra.mxu0 0.0
    %2780 = vmatpush.msra.mxu0 0.0
    %2781 = vmatpush.msra.mxu0 0.0
    %2782 = vmatpush.msra.mxu0 %v2767
    %2783 = vmatpush.msra.mxu0 %v2669
    %2784 = vmatpush.msra.mxu0 %v2666
    %2785 = vmatmul.f32.gmra.mxu0 %v2758
    %v2786 = vpop.f32.mrf.mxu0
    %v2787 = vadd.f32 0.0, %v2786
    %2788 = vmatmul.f32.gmra.mxu0 %v2761
    %v2789 = vpop.f32.mrf.mxu0
    %v2790 = vadd.f32 0.0, %v2789
    %2791 = vmatmul.f32.gmra.mxu0 %v2764
    %v2792 = vpop.f32.mrf.mxu0
    %v2793 = vadd.f32 0.0, %v2792
    %2794 = vdwg.mxu0
    %s2795 = scalar_lea.vmem %s7, 56
    %v2796 = vld [vmem:[%s2795] sm:$0xff]
    %v2798 = vsel %vm449, %v2787, 0
    %v2801 = vsel %vm449, %v2790, 0
    %v2804 = vsel %vm449, %v2793, 0
    %2806 = vmatpush.msra.mxu0 0.0
    %2807 = vmatpush.msra.mxu0 0.0
    %2808 = vmatpush.msra.mxu0 0.0
    %2809 = vmatpush.msra.mxu0 0.0
    %2810 = vmatpush.msra.mxu0 0.0
    %2811 = vmatpush.msra.mxu0 0.0
    %2812 = vmatpush.msra.mxu0 0.0
    %2813 = vmatpush.msra.mxu0 0.0
    %2814 = vmatpush.msra.mxu0 0.0
    %2815 = vmatpush.msra.mxu0 0.0
    %2816 = vmatpush.msra.mxu0 0.0
    %2817 = vmatpush.msra.mxu0 0.0
    %2818 = vmatpush.msra.mxu0 0.0
    %2819 = vmatpush.msra.mxu0 0.0
    %2820 = vmatpush.msra.mxu0 0.0
    %2821 = vmatpush.msra.mxu0 %v2796
    %2822 = vmatmul.f32.gmra.mxu0 %v2798
    %v2823 = vpop.f32.mrf.mxu0
    %v2824 = vadd.f32 0.0, %v2823
    %2825 = vmatmul.f32.gmra.mxu0 %v2801
    %v2826 = vpop.f32.mrf.mxu0
    %v2827 = vadd.f32 0.0, %v2826
    %2828 = vmatmul.f32.gmra.mxu0 %v2804
    %v2829 = vpop.f32.mrf.mxu0
    %v2830 = vadd.f32 0.0, %v2829
    %2831 = vdwg.mxu0
    %v2832 = vadd.f32 %v2563, %v2824
    %v2833 = vadd.f32 %v2564, %v2827
    %v2834 = vadd.f32 %v2565, %v2830
    %v2835 = vadd.f32 %v1660, %v2832
    %v2836 = vadd.f32 %v1661, %v2833
    %v2837 = vadd.f32 %v1662, %v2834
    %v2838 = vsel %vm159, %v2835, 0.0
    %2839 = vadd.xlane.f32.xlu0 %v2838
    %v2840 = vpop.xlane.xlu0 %2839
    %v2841 = vsel %vm159, %v2836, 0.0
    %2842 = vadd.xlane.f32.xlu0 %v2841
    %v2843 = vpop.xlane.xlu0 %2842
    %v2844 = vsel %vm166, %v2837, 0.0
    %2845 = vadd.xlane.f32.xlu0 %v2844
    %v2846 = vpop.xlane.xlu0 %2845
    %v2847 = vmul.f32 %v2840, %v176
    %v2848 = vmul.f32 %v2843, %v176
    %v2849 = vmul.f32 %v2846, %v176
    %v2850 = vsub.f32 %v2835, %v2847
    %v2851 = vsub.f32 %v2836, %v2848
    %v2852 = vsub.f32 %v2837, %v2849
    %v2853 = vmul.f32 %v2850, %v2850
    %v2854 = vmul.f32 %v2851, %v2851
    %v2855 = vmul.f32 %v2852, %v2852
    %v2856 = vsel %vm159, %v2853, 0.0
    %2857 = vadd.xlane.f32.xlu0 %v2856
    %v2858 = vpop.xlane.xlu0 %2857
    %v2859 = vsel %vm159, %v2854, 0.0
    %2860 = vadd.xlane.f32.xlu0 %v2859
    %v2861 = vpop.xlane.xlu0 %2860
    %v2862 = vsel %vm166, %v2855, 0.0
    %2863 = vadd.xlane.f32.xlu0 %v2862
    %v2864 = vpop.xlane.xlu0 %2863
    %v2865 = vmul.f32 %v2858, %v176
    %v2866 = vmul.f32 %v2861, %v176
    %v2867 = vmul.f32 %v2864, %v176
    %v2868 = vadd.f32 %v2865, 1e-05
    %v2869 = vadd.f32 %v2866, 1e-05
    %v2870 = vadd.f32 %v2867, 1e-05
    %v2871 = vrsqrt.pop %v2868
    %v2872 = vmul.f32 %v2871, %v2868
    %v2873 = vmul.f32 %v2872, %v2871
    %v2874 = vmul.f32 0.5, %v2873
    %v2875 = vsub.f32 1.5, %v2874
    %v2876 = vmul.f32 %v2871, %v2875
    %vm2877 = vweird.f32 %v2868
    %vm2878 = vweird.f32 %v2871
    %vm2879 = vmor %vm2877, %vm2878
    %v2880 = vsel %vm2879, %v2871, %v2876
    %v2881 = vrsqrt.pop %v2869
    %v2882 = vmul.f32 %v2881, %v2869
    %v2883 = vmul.f32 %v2882, %v2881
    %v2884 = vmul.f32 0.5, %v2883
    %v2885 = vsub.f32 1.5, %v2884
    %v2886 = vmul.f32 %v2881, %v2885
    %vm2887 = vweird.f32 %v2869
    %vm2888 = vweird.f32 %v2881
    %vm2889 = vmor %vm2887, %vm2888
    %v2890 = vsel %vm2889, %v2881, %v2886
    %v2891 = vrsqrt.pop %v2870
    %v2892 = vmul.f32 %v2891, %v2870
    %v2893 = vmul.f32 %v2892, %v2891
    %v2894 = vmul.f32 0.5, %v2893
    %v2895 = vsub.f32 1.5, %v2894
    %v2896 = vmul.f32 %v2891, %v2895
    %vm2897 = vweird.f32 %v2870
    %vm2898 = vweird.f32 %v2891
    %vm2899 = vmor %vm2897, %vm2898
    %v2900 = vsel %vm2899, %v2891, %v2896
    %v2901 = vmul.f32 %v2850, %v2880
    %v2902 = vmul.f32 %v2851, %v2890
    %v2903 = vmul.f32 %v2852, %v2900
    %s2904 = scalar_lea.vmem %s3, 4
    %v2905 = vld [vmem:[%s2904] sm:$0x1]
    %v2907 = vperm.slane %v2905, 0
    %v2909 = vmul.f32 %v2901, %v2907
    %v2910 = vmul.f32 %v2902, %v2907
    %v2911 = vmul.f32 %v2903, %v2907
    %s2912 = scalar_lea.vmem %s4, 4
    %v2913 = vld [vmem:[%s2912] sm:$0x1]
    %v2915 = vperm.slane %v2913, 0
    %v2917 = vadd.f32 %v2909, %v2915
    %v2918 = vadd.f32 %v2910, %v2915
    %v2919 = vadd.f32 %v2911, %v2915
    %s2920 = scalar_lea.vmem %s9, 32
    %v2921 = vld [vmem:[%s2920] sm:$0xff]
    %v2922 = vld [vmem:[%s2920 + $0x8] sm:$0xff]
    %v2923 = vld [vmem:[%s2920 + $0x10] sm:$0xff]
    %v2924 = vld [vmem:[%s2920 + $0x18] sm:$0xff]
    %s2925 = scalar_lea.vmem %s10, 1
    %v2926 = vld [vmem:[%s2925] sm:$0x1]
    %v2928 = vperm.slane %v2926, 0
    %v2931 = vsel %vm159, %v2917, 0
    %v2934 = vsel %vm159, %v2918, 0
    %v2937 = vsel %vm159, %v2919, 0
    %2939 = vmatpush.msra.mxu0 0.0
    %2940 = vmatpush.msra.mxu0 0.0
    %2941 = vmatpush.msra.mxu0 0.0
    %2942 = vmatpush.msra.mxu0 0.0
    %2943 = vmatpush.msra.mxu0 0.0
    %2944 = vmatpush.msra.mxu0 0.0
    %2945 = vmatpush.msra.mxu0 0.0
    %2946 = vmatpush.msra.mxu0 0.0
    %2947 = vmatpush.msra.mxu0 0.0
    %2948 = vmatpush.msra.mxu0 0.0
    %2949 = vmatpush.msra.mxu0 0.0
    %2950 = vmatpush.msra.mxu0 0.0
    %2951 = vmatpush.msra.mxu0 %v2924
    %2952 = vmatpush.msra.mxu0 %v2923
    %2953 = vmatpush.msra.mxu0 %v2922
    %2954 = vmatpush.msra.mxu0 %v2921
    %2955 = vmatmul.f32.gmra.mxu0 %v2931
    %v2956 = vpop.f32.mrf.mxu0
    %v2957 = vadd.f32 %v2928, %v2956
    %2958 = vmatmul.f32.gmra.mxu0 %v2934
    %v2959 = vpop.f32.mrf.mxu0
    %v2960 = vadd.f32 %v2928, %v2959
    %2961 = vmatmul.f32.gmra.mxu0 %v2937
    %v2962 = vpop.f32.mrf.mxu0
    %v2963 = vadd.f32 %v2928, %v2962
    %2964 = vdwg.mxu0
    %v2965 = vmul.f32 %v2957, -1.702
    %v2966 = vmul.f32 %v2960, -1.702
    %v2967 = vmul.f32 %v2963, -1.702
    %v2968 = vmul.f32 %v2965, 1.442695
    %v2969 = vpow.pop %v2968
    %v2970 = vmul.f32 %v2966, 1.442695
    %v2971 = vpow.pop %v2970
    %v2972 = vmul.f32 %v2967, 1.442695
    %v2973 = vpow.pop %v2972
    %v2974 = vadd.f32 %v2969, 1.0
    %v2975 = vadd.f32 %v2971, 1.0
    %v2976 = vadd.f32 %v2973, 1.0
    %v2977 = vrcp.pop %v2974
    %v2978 = vmul.f32 %v2974, %v2977
    %v2979 = vsub.f32 1.0, %v2978
    %v2980 = vmul.f32 %v2977, %v2979
    %v2981 = vadd.f32 %v2977, %v2980
    %vm2982 = vweird.f32 %v2974
    %vm2983 = vweird.f32 %v2977
    %vm2984 = vmor %vm2982, %vm2983
    %v2985 = vsel %vm2984, %v2977, %v2981
    %v2986 = vand.u32 2147483647, %v2974
    %vm2987 = vcmp.eq.f32.partialorder %v2986, 8.507059e+37
    %v2988 = vand.u32 %v2974, 2147483648
    %v2989 = vor.u32 1.1754944e-38, %v2988
    %v2990 = vsel %vm2987, %v2989, %v2985
    %v2991 = vmul.f32 1.0, %v2990
    %v2992 = vrcp.pop %v2975
    %v2993 = vmul.f32 %v2975, %v2992
    %v2994 = vsub.f32 1.0, %v2993
    %v2995 = vmul.f32 %v2992, %v2994
    %v2996 = vadd.f32 %v2992, %v2995
    %vm2997 = vweird.f32 %v2975
    %vm2998 = vweird.f32 %v2992
    %vm2999 = vmor %vm2997, %vm2998
    %v3000 = vsel %vm2999, %v2992, %v2996
    %v3001 = vand.u32 2147483647, %v2975
    %vm3002 = vcmp.eq.f32.partialorder %v3001, 8.507059e+37
    %v3003 = vand.u32 %v2975, 2147483648
    %v3004 = vor.u32 1.1754944e-38, %v3003
    %v3005 = vsel %vm3002, %v3004, %v3000
    %v3006 = vmul.f32 1.0, %v3005
    %v3007 = vrcp.pop %v2976
    %v3008 = vmul.f32 %v2976, %v3007
    %v3009 = vsub.f32 1.0, %v3008
    %v3010 = vmul.f32 %v3007, %v3009
    %v3011 = vadd.f32 %v3007, %v3010
    %vm3012 = vweird.f32 %v2976
    %vm3013 = vweird.f32 %v3007
    %vm3014 = vmor %vm3012, %vm3013
    %v3015 = vsel %vm3014, %v3007, %v3011
    %v3016 = vand.u32 2147483647, %v2976
    %vm3017 = vcmp.eq.f32.partialorder %v3016, 8.507059e+37
    %v3018 = vand.u32 %v2976, 2147483648
    %v3019 = vor.u32 1.1754944e-38, %v3018
    %v3020 = vsel %vm3017, %v3019, %v3015
    %v3021 = vmul.f32 1.0, %v3020
    %v3022 = vmul.f32 %v2957, %v2991
    %v3023 = vmul.f32 %v2960, %v3006
    %v3024 = vmul.f32 %v2963, %v3021
    %s3025 = scalar_lea.vmem %s11, 128
    %v3026 = vld [vmem:[%s3025] sm:$0xff]
    %v3027 = vld [vmem:[%s3025 + $0x8] sm:$0xff]
    %v3028 = vld [vmem:[%s3025 + $0x10] sm:$0xff]
    %v3029 = vld [vmem:[%s3025 + $0x18] sm:$0xff]
    %v3030 = vld [vmem:[%s3025 + $0x20] sm:$0xff]
    %v3031 = vld [vmem:[%s3025 + $0x28] sm:$0xff]
    %v3032 = vld [vmem:[%s3025 + $0x30] sm:$0xff]
    %v3033 = vld [vmem:[%s3025 + $0x38] sm:$0xff]
    %v3034 = vld [vmem:[%s3025 + $0x40] sm:$0xff]
    %v3035 = vld [vmem:[%s3025 + $0x48] sm:$0xff]
    %v3036 = vld [vmem:[%s3025 + $0x50] sm:$0xff]
    %v3037 = vld [vmem:[%s3025 + $0x58] sm:$0xff]
    %v3038 = vld [vmem:[%s3025 + $0x60] sm:$0xff]
    %v3039 = vld [vmem:[%s3025 + $0x68] sm:$0xff]
    %v3040 = vld [vmem:[%s3025 + $0x70] sm:$0xff]
    %v3041 = vld [vmem:[%s3025 + $0x78] sm:$0xff]
    %3042 = vmatpush.msra.mxu0 %v3041
    %3043 = vmatpush.msra.mxu0 %v3040
    %3044 = vmatpush.msra.mxu0 %v3039
    %3045 = vmatpush.msra.mxu0 %v3038
    %3046 = vmatpush.msra.mxu0 %v3037
    %3047 = vmatpush.msra.mxu0 %v3036
    %3048 = vmatpush.msra.mxu0 %v3035
    %3049 = vmatpush.msra.mxu0 %v3034
    %3050 = vmatpush.msra.mxu0 %v3033
    %3051 = vmatpush.msra.mxu0 %v3032
    %3052 = vmatpush.msra.mxu0 %v3031
    %3053 = vmatpush.msra.mxu0 %v3030
    %3054 = vmatpush.msra.mxu0 %v3029
    %3055 = vmatpush.msra.mxu0 %v3028
    %3056 = vmatpush.msra.mxu0 %v3027
    %3057 = vmatpush.msra.mxu0 %v3026
    %3058 = vmatmul.f32.gmra.mxu0 %v3022
    %v3059 = vpop.f32.mrf.mxu0
    %v3060 = vadd.f32 0.0, %v3059
    %3061 = vmatmul.f32.gmra.mxu0 %v3023
    %v3062 = vpop.f32.mrf.mxu0
    %v3063 = vadd.f32 0.0, %v3062
    %3064 = vmatmul.f32.gmra.mxu0 %v3024
    %v3065 = vpop.f32.mrf.mxu0
    %v3066 = vadd.f32 0.0, %v3065
    %3067 = vdwg.mxu0
    %v3068 = vadd.f32 %v2835, %v3060
    %v3069 = vadd.f32 %v2836, %v3063
    %v3070 = vadd.f32 %v2837, %v3066
    %s3071 = scalar_lea.vmem %s12, 1
    %v3072 = vld [vmem:[%s3071] sm:$0x1]
    %v3074 = vperm.slane %v3072, 0
    %v3076 = vadd.f32 %v3068, %v3074
    %v3077 = vadd.f32 %v3069, %v3074
    %v3078 = vadd.f32 %v3070, %v3074
    %v3079 = vld [vmem:[%s14] sm:$0x3]
    %v3081 = vsel %vm500, %v3079, 0
    %v3084 = vsel %vm544, %v3078, 0
    %3086 = vmatpush.msra.mxu0 0.0
    %3087 = vmatpush.msra.mxu0 0.0
    %3088 = vmatpush.msra.mxu0 0.0
    %3089 = vmatpush.msra.mxu0 0.0
    %3090 = vmatpush.msra.mxu0 0.0
    %3091 = vmatpush.msra.mxu0 0.0
    %3092 = vmatpush.msra.mxu0 0.0
    %3093 = vmatpush.msra.mxu0 0.0
    %3094 = vmatpush.msra.mxu0 0.0
    %3095 = vmatpush.msra.mxu0 0.0
    %3096 = vmatpush.msra.mxu0 0.0
    %3097 = vmatpush.msra.mxu0 0.0
    %3098 = vmatpush.msra.mxu0 0.0
    %3099 = vmatpush.msra.mxu0 %v3084
    %3100 = vmatpush.msra.mxu0 %v3077
    %3101 = vmatpush.msra.mxu0 %v3076
    %3102 = vmatmul.f32.gmra.mxu0 %v3081
    %v3103 = vpop.f32.mrf.mxu0
    %v3104 = vadd.f32 0.0, %v3103
    %3105 = vdwg.mxu0
    %v3106 = vsel %vm166, %v3104, 0.0
    %3107 = vadd.xlane.f32.xlu0 %v3106
    %v3108 = vpop.xlane.xlu0 %3107
    %v3109 = vmul.f32 %v3108, %v176
    %v3110 = vsub.f32 %v3104, %v3109
    %v3111 = vmul.f32 %v3110, %v3110
    %v3112 = vsel %vm166, %v3111, 0.0
    %3113 = vadd.xlane.f32.xlu0 %v3112
    %v3114 = vpop.xlane.xlu0 %3113
    %v3115 = vmul.f32 %v3114, %v176
    %v3116 = vadd.f32 %v3115, 1e-05
    %v3117 = vrsqrt.pop %v3116
    %v3118 = vmul.f32 %v3117, %v3116
    %v3119 = vmul.f32 %v3118, %v3117
    %v3120 = vmul.f32 0.5, %v3119
    %v3121 = vsub.f32 1.5, %v3120
    %v3122 = vmul.f32 %v3117, %v3121
    %vm3123 = vweird.f32 %v3116
    %vm3124 = vweird.f32 %v3117
    %vm3125 = vmor %vm3123, %vm3124
    %v3126 = vsel %vm3125, %v3117, %v3122
    %v3127 = vmul.f32 %v3110, %v3126
    %s3128 = scalar_lea.vmem %s3, 5
    %v3129 = vld [vmem:[%s3128] sm:$0x1]
    %v3131 = vperm.slane %v3129, 0
    %v3133 = vmul.f32 %v3127, %v3131
    %s3134 = scalar_lea.vmem %s4, 5
    %v3135 = vld [vmem:[%s3134] sm:$0x1]
    %v3137 = vperm.slane %v3135, 0
    %v3139 = vadd.f32 %v3133, %v3137
    %v3140 = vld [vmem:[%s15] sm:$0xff]
    %v3141 = vld [vmem:[%s15 + $0x8] sm:$0xff]
    %v3142 = vld [vmem:[%s15 + $0x10] sm:$0xff]
    %v3143 = vld [vmem:[%s15 + $0x18] sm:$0xff]
    %v3145 = vsel %vm159, %v3139, 0
    %3147 = vmatpush.msra.mxu0 0.0
    %3148 = vmatpush.msra.mxu0 0.0
    %3149 = vmatpush.msra.mxu0 0.0
    %3150 = vmatpush.msra.mxu0 0.0
    %3151 = vmatpush.msra.mxu0 0.0
    %3152 = vmatpush.msra.mxu0 0.0
    %3153 = vmatpush.msra.mxu0 0.0
    %3154 = vmatpush.msra.mxu0 0.0
    %3155 = vmatpush.msra.mxu0 0.0
    %3156 = vmatpush.msra.mxu0 0.0
    %3157 = vmatpush.msra.mxu0 0.0
    %3158 = vmatpush.msra.mxu0 0.0
    %3159 = vmatpush.msra.mxu0 %v3143
    %3160 = vmatpush.msra.mxu0 %v3142
    %3161 = vmatpush.msra.mxu0 %v3141
    %3162 = vmatpush.msra.mxu0 %v3140
    %3163 = vmatmul.f32.gmra.mxu0 %v3145
    %v3164 = vpop.f32.mrf.mxu0
    %v3165 = vadd.f32 0.0, %v3164
    %3166 = vdwg.mxu0
    %v3167 = vmul.f32 %v3165, %v3165
    %v3168 = vsel %vm544, %v3167, 0.0
    %3169 = vadd.xlane.f32.xlu0 %v3168
    %v3170 = vpop.xlane.xlu0 %3169
    %v3171 = vrsqrt.pop %v3170
    %v3172 = vmul.f32 %v3171, %v3170
    %v3173 = vmul.f32 %v3172, %v3171
    %v3174 = vmul.f32 0.5, %v3173
    %v3175 = vsub.f32 1.5, %v3174
    %v3176 = vmul.f32 %v3171, %v3175
    %vm3177 = vweird.f32 %v3170
    %vm3178 = vweird.f32 %v3171
    %vm3179 = vmor %vm3177, %vm3178
    %v3180 = vsel %vm3179, %v3171, %v3176
    %v3181 = vmul.f32 %v3165, %v3180
    %3182 = vst [vmem:[#allocation5] sm:$0x3] %v3181
    %s3183 = sld [smem:[#allocation2]]
    %v3184 = vld [vmem:[%s16] sm:$0xff]
    %v3185 = vld [vmem:[%s16 + $0x8] sm:$0xff]
    %v3186 = vld [vmem:[%s16 + $0x10] sm:$0xff]
    %v3187 = vld [vmem:[%s16 + $0x18] sm:$0xff]
    %v3188 = vld [vmem:[%s16 + $0x20] sm:$0xff]
    %v3189 = vld [vmem:[%s16 + $0x28] sm:$0xff]
    %v3190 = vld [vmem:[%s16 + $0x30] sm:$0xff]
    %v3191 = vld [vmem:[%s16 + $0x38] sm:$0xff]
    %v3192 = vld [vmem:[%s16 + $0x40] sm:$0xff]
    %v3193 = vld [vmem:[%s16 + $0x48] sm:$0xff]
    %v3194 = vld [vmem:[%s16 + $0x50] sm:$0xff]
    %v3195 = vld [vmem:[%s16 + $0x58] sm:$0xff]
    %v3196 = vld [vmem:[%s16 + $0x60] sm:$0xff]
    %v3197 = vld [vmem:[%s16 + $0x68] sm:$0xff]
    %v3198 = vld [vmem:[%s16 + $0x70] sm:$0xff]
    %v3199 = vld [vmem:[%s16 + $0x78] sm:$0xff]
    %3200 = vmatpush.msra.mxu0 %v3199
    %3201 = vmatpush.msra.mxu0 %v3198
    %3202 = vmatpush.msra.mxu0 %v3197
    %3203 = vmatpush.msra.mxu0 %v3196
    %3204 = vmatpush.msra.mxu0 %v3195
    %3205 = vmatpush.msra.mxu0 %v3194
    %3206 = vmatpush.msra.mxu0 %v3193
    %3207 = vmatpush.msra.mxu0 %v3192
    %3208 = vmatpush.msra.mxu0 %v3191
    %3209 = vmatpush.msra.mxu0 %v3190
    %3210 = vmatpush.msra.mxu0 %v3189
    %3211 = vmatpush.msra.mxu0 %v3188
    %3212 = vmatpush.msra.mxu0 %v3187
    %3213 = vmatpush.msra.mxu0 %v3186
    %3214 = vmatpush.msra.mxu0 %v3185
    %3215 = vmatpush.msra.mxu0 %v3184
    %3216 = vmatmul.f32.gmra.mxu0 %v3181
    %v3217 = vpop.f32.mrf.mxu0
    %v3218 = vadd.f32 0.0, %v3217
    %3219 = vdwg.mxu0
    %v3220 = vstv %s3183
    %v3221 = vmul.f32 %v3220, %v3218
    %3222 = vst [vmem:[#allocation3] sm:$0x3] %v3221
    // Predicated region
    $region70: #{vit_prompt_forward.1} parent=1 // pred_check
      _
    $region71: #{vit_prompt_forward.1} parent=1 // pred_check_branch
      %3224 = sbr.rel (0) target = $region73
    $region72: #{vit_prompt_forward.1} parent=1 // pred_region
      %3226 = vsyncadd [#allocation4], 0
      %s3228 = sshll.u32 [#allocation3], 4
      %s3229 = int_to_ptr.vmem [resolvable:$true] %s3228
      %s3230 = sshll.u32 %s17, 4
      %s3231 = int_to_ptr.hbm [resolvable:$true] %s3230
      %3233 = dma.vmem_to_hbm [thread:$0]  %s3229, 32, %s3231, [#allocation4]
    $region73: #{vit_prompt_forward.1} parent=1 // pred_fallthru
      _
    // Predicated region
    $region74: #{vit_prompt_forward.1} parent=1 // pred_check
      _
    $region75: #{vit_prompt_forward.1} parent=1 // pred_check_branch
      %3235 = sbr.rel (0) target = $region77
    $region76: #{vit_prompt_forward.1} parent=1 // pred_region
      %3237 = vsyncadd [#allocation6], 0
      %s3239 = sshll.u32 [#allocation5], 4
      %s3240 = int_to_ptr.vmem [resolvable:$true] %s3239
      %s3241 = sshll.u32 %s18, 4
      %s3242 = int_to_ptr.hbm [resolvable:$true] %s3241
      %3244 = dma.vmem_to_hbm [thread:$0]  %s3240, 32, %s3242, [#allocation6]
    $region77: #{vit_prompt_forward.1} parent=1 // pred_fallthru
      _
    // Predicated region
    $region78: #{vit_prompt_forward.1} parent=1 // pred_check
      _
    $region79: #{vit_prompt_forward.1} parent=1 // pred_check_branch
      %3246 = sbr.rel (0) target = $region81
    $region80: #{vit_prompt_forward.1} parent=1 // pred_region
      %3248 = dma.done [#allocation4], 32
    $region81: #{vit_prompt_forward.1} parent=1 // pred_fallthru
      _
    // Predicated region
    $region82: #{vit_prompt_forward.1} parent=1 // pred_check
      _
    $region83: #{vit_prompt_forward.1} parent=1 // pred_check_branch
      %3250 = sbr.rel (0) target = $region85
    $region84: #{vit_prompt_forward.1} parent=1 // pred_region
      %3252 = dma.done [#allocation6], 32
    $region85: #{vit_prompt_forward.1} parent=1 // pred_fallthru
      _
    %3253 = vsyncpa [#allocation4], 1
    %3254 = vsyncpa [#allocation6], 1

</llo_original>
